<compile_context>
chip_gen: v7x
topology: tpu7x:2x2x1
jax: 0.10.0
libtpu: 0.0.40
codegen_flags: <defaults>
</compile_context>

<pallas_src>
import jax
import jax.numpy as jnp
import numpy as np
from jax.experimental import pallas as pl
from jax.experimental.pallas import tpu as pltpu

HIDDEN_SIZE = 3
ATTENTION_SIZE = 4
INPUT_SIZE = 10
BATCH = 64          # hard-coded in the PyTorch module via `view(batch_size, 1, -1)`
SEQ = 8
F32 = jnp.float32

# ---- packed parameter panel layout (row offsets are multiples of 8 => aligned slices) ----
ROW_WI, ROW_WHH, ROW_WHD = 0, 24, 48          # (18,21) enc W_ih(+bias) | (18,6) enc W_hh | (18,6) dec W_hh
ROW_WQ, ROW_WK, ROW_WFC = 72, 80, 88          # (4,6) query | (4,6) key | (2,6) fc
ROW_BIAS, ROW_ATT, ROW_BFC = 96, 120, 128     # (18,3) [bh|bid|bhd] | (4,2) [b_att|ws] | (2,1) bfc
ROW_PERM = 136                                # (128,128) even/odd de-interleave permutation
PANEL_ROWS = ROW_PERM + 2 * BATCH             # 264
PANEL_COLS = 2 * BATCH                        # 128


def _full_spec(shape):
    """BlockSpec covering the whole array (grid=(1,))."""
    nd = len(shape)
    return pl.BlockSpec(shape, lambda i, _nd=nd: (0,) * _nd)


# ----------------------------------------------------------------------------
# Fused kernel: encoder GRU (bi) + dec_hidden view quirk + additive attention
#               + 1-step decoder GRU + final Linear     (all in (feat, batch) layout)
# ----------------------------------------------------------------------------
def seq2seq_fused_kernel(x_ref, panel_ref, out_ref, fwd_ref, bwd_ref):
    H, H2, A = HIDDEN_SIZE, 2 * HIDDEN_SIZE, ATTENTION_SIZE
    B, T = BATCH, SEQ
    G = 3 * H2                                                         # 18 fused gate rows

    # ---- encoder params (needed inside the recurrence) ----
    w_i = panel_ref[ROW_WI:ROW_WI + G, 0:2 * INPUT_SIZE + 1]           # (18, 21) [fwd|bwd|bias]
    w_hh = panel_ref[ROW_WHH:ROW_WHH + G, 0:H2]                        # (18, 6) block-diagonal
    bh_b = jnp.broadcast_to(panel_ref[ROW_BIAS:ROW_BIAS + G, 0:1], (G, B))   # hoisted broadcast

    # ---- (1) fused input projection for both directions (off the serial chain) ----
    # x_ref rows per column block t: [x(t) (10) | x(T-1-t) (10) | 1]; bias folded via ones row.
    gi_all = jnp.dot(w_i, x_ref[...], preferred_element_type=F32)      # (18, T*B)

    # ---- (2) joint fwd/bwd GRU recurrence: ONE MXU dot on the serial chain per step ----
    hc = jnp.zeros((H2, B), F32)                                       # rows = [h_fwd(3); h_bwd(3)]
    for t in range(T):                                                 # T = 8, static unroll
        gi = gi_all[:, t * B:(t + 1) * B]                              # (18, B), off-chain slice
        gh = jnp.dot(w_hh, hc, preferred_element_type=F32) + bh_b      # (18, B), the chain op
        r = jax.nn.sigmoid(gi[0:H2] + gh[0:H2])                        # rows gate-major [f;b]
        z = jax.nn.sigmoid(gi[H2:2 * H2] + gh[H2:2 * H2])
        n = jnp.tanh(gi[2 * H2:3 * H2] + r * gh[2 * H2:3 * H2])
        hc = (1.0 - z) * n + z * hc
        fwd_ref[t] = hc[0:H, :]                                        # enc_out[t, :, 0:H]
        bwd_ref[T - 1 - t] = hc[H:H2, :]                               # enc_out[T-1-t, :, H:2H]

    # ---- attention / decoder params (loaded after the loop to keep its live set small) ----
    wq_t = panel_ref[ROW_WQ:ROW_WQ + A, 0:H2]                          # (4, 6)
    wk_t = panel_ref[ROW_WK:ROW_WK + A, 0:H2]                          # (4, 6)
    w_hd = panel_ref[ROW_WHD:ROW_WHD + G, 0:H2]                        # (18, 6)
    wfc_t = panel_ref[ROW_WFC:ROW_WFC + 2, 0:H2]                       # (2, 6)
    bid_c = panel_ref[ROW_BIAS:ROW_BIAS + G, 1:2]                      # (18, 1) dec b_ih (input=0)
    bhd_c = panel_ref[ROW_BIAS:ROW_BIAS + G, 2:3]                      # (18, 1) dec b_hh
    b_att = panel_ref[ROW_ATT:ROW_ATT + A, 0:1]                        # (4, 1)  bq + bk + attn bias
    ws_c = panel_ref[ROW_ATT:ROW_ATT + A, 1:2]                         # (4, 1)  score_proj weight
    bfc_c = panel_ref[ROW_BFC:ROW_BFC + 2, 0:1]                        # (2, 1)
    perm = panel_ref[ROW_PERM:ROW_PERM + 2 * B, :]                     # (128, 128)

    # ---- (3) dec_hidden = enc_hidden.view(B,1,-1) quirk + query projection ----
    # dec_hidden[:, 0:H].T = even columns of [h_f | h_b], dec_hidden[:, H:2H].T = odd columns.
    hcat = jnp.concatenate([hc[0:H, :], hc[H:H2, :]], axis=1)          # (3, 2B) = [h_f | h_b]
    deint = jnp.dot(hcat, perm, preferred_element_type=F32)            # (3, 2B) = [even | odd]
    dh = jnp.concatenate([deint[:, 0:B], deint[:, B:2 * B]], axis=0)   # (6, B)
    qp = jnp.dot(wq_t, dh, preferred_element_type=F32) + b_att         # (4, B)

    # ---- (4) additive attention: scores kept as one (T, B) = (8, 64) block ----
    keys = []
    score_rows = []
    for t in range(T):
        k_t = jnp.concatenate([fwd_ref[t], bwd_ref[t]], axis=0)        # (6, B)
        keys.append(k_t)
        e_t = jnp.tanh(jnp.dot(wk_t, k_t, preferred_element_type=F32) + qp)   # (4, B)
        # score_proj as VPU multiply + sublane reduce (bias bs dropped: constant under softmax)
        score_rows.append(jnp.sum(ws_c * e_t, axis=0, keepdims=True))  # (1, B)
    scores = jnp.concatenate(score_rows, axis=0)                       # (T, B)
    m = jnp.max(scores, axis=0, keepdims=True)                         # single sublane reduce
    p = jnp.exp(scores - m)                                            # single exp block
    inv = pl.reciprocal(jnp.sum(p, axis=0, keepdims=True), approx=True)
    wgt = p * inv                                                      # softmax weights (T, B)

    ctx = jnp.zeros((H2, B), F32)                                      # context, (6, B)
    for t in range(T):
        ctx = ctx + wgt[t:t + 1, :] * keys[t]

    # ---- (5) one decoder GRU step (input is zeros -> only its input bias contributes) ----
    gh_d = jnp.dot(w_hd, ctx, preferred_element_type=F32) + bhd_c      # (18, B)
    r_d = jax.nn.sigmoid(bid_c[0:H2] + gh_d[0:H2])
    z_d = jax.nn.sigmoid(bid_c[H2:2 * H2] + gh_d[H2:2 * H2])
    n_d = jnp.tanh(bid_c[2 * H2:3 * H2] + r_d * gh_d[2 * H2:3 * H2])
    h_dec = (1.0 - z_d) * n_d + z_d * ctx                              # (6, B)

    # ---- (6) final Linear(6, 2): lane-dense (2, B) output ----
    out_ref[...] = jnp.dot(wfc_t, h_dec, preferred_element_type=F32) + bfc_c


# ----------------------------------------------------------------------------
# Host-side packing (done once per call; pure layout plumbing)
# ----------------------------------------------------------------------------
def _pack_x(x):
    """(B, T, I) batch-first -> (2I+1, T*B): rows [x(t) | x(T-1-t) | ones], column = t*B+b."""
    Bn, Tn, In = x.shape
    x_f = jnp.transpose(x, (2, 1, 0)).reshape(In, Tn * Bn)
    x_r = jnp.transpose(x[:, ::-1, :], (2, 1, 0)).reshape(In, Tn * Bn)
    ones = jnp.ones((1, Tn * Bn), F32)
    return jnp.concatenate([x_f, x_r, ones], axis=0).astype(F32)


def _pack_params(p):
    """Pack all weights/biases (pre-transposed / fused / block-diagonal) into one panel."""
    Hh, Aa, In = HIDDEN_SIZE, ATTENTION_SIZE, INPUT_SIZE
    Hd = 2 * Hh

    def gate(w, g):                       # columns of gate g (0=r, 1=z, 2=n)
        n = w.shape[1] // 3
        return w[:, g * n:(g + 1) * n]

    zi = jnp.zeros((Hh, In), F32)
    zh = jnp.zeros((Hh, Hh), F32)
    wi_rows, wh_rows, bi_rows, bh_rows = [], [], [], []
    for g in range(3):                    # fused row order: [r_f, r_b, z_f, z_b, n_f, n_b]
        wi_rows += [jnp.concatenate([gate(p['wif'], g).T, zi], axis=1),
                    jnp.concatenate([zi, gate(p['wib'], g).T], axis=1)]
        wh_rows += [jnp.concatenate([gate(p['whf'], g).T, zh], axis=1),
                    jnp.concatenate([zh, gate(p['whb'], g).T], axis=1)]
        bi_rows += [gate(p['bif'], g)[0], gate(p['bib'], g)[0]]
        bh_rows += [gate(p['bhf'], g)[0], gate(p['bhb'], g)[0]]
    w_i_c = jnp.concatenate(wi_rows, axis=0)          # (18, 2I)
    w_hh_c = jnp.concatenate(wh_rows, axis=0)         # (18, 6) block-diagonal
    bi_c = jnp.concatenate(bi_rows)[:, None]          # (18, 1)
    bh_c = jnp.concatenate(bh_rows)[:, None]          # (18, 1)

    # even/odd lane de-interleave permutation (reproduces enc_hidden.view(B,1,-1) pairing)
    perm = np.zeros((2 * BATCH, 2 * BATCH), np.float32)
    perm[2 * np.arange(BATCH), np.arange(BATCH)] = 1.0
    perm[2 * np.arange(BATCH) + 1, np.arange(BATCH) + BATCH] = 1.0

    panel = jnp.zeros((PANEL_ROWS, PANEL_COLS), F32)
    panel = panel.at[ROW_WI:ROW_WI + 3 * Hd, 0:2 * In].set(w_i_c)
    panel = panel.at[ROW_WI:ROW_WI + 3 * Hd, 2 * In:2 * In + 1].set(bi_c)  # bias via ones row
    panel = panel.at[ROW_WHH:ROW_WHH + 3 * Hd, 0:Hd].set(w_hh_c)
    panel = panel.at[ROW_WHD:ROW_WHD + 3 * Hd, 0:Hd].set(p['whd'].T)
    panel = panel.at[ROW_WQ:ROW_WQ + Aa, 0:Hd].set(p['wq'].T)
    panel = panel.at[ROW_WK:ROW_WK + Aa, 0:Hd].set(p['wk'].T)
    panel = panel.at[ROW_WFC:ROW_WFC + 2, 0:Hd].set(p['wfc'].T)
    panel = panel.at[ROW_BIAS:ROW_BIAS + 3 * Hd, 0:1].set(bh_c)
    panel = panel.at[ROW_BIAS:ROW_BIAS + 3 * Hd, 1:2].set(p['bid'].T)
    panel = panel.at[ROW_BIAS:ROW_BIAS + 3 * Hd, 2:3].set(p['bhd'].T)
    panel = panel.at[ROW_ATT:ROW_ATT + Aa, 0:1].set((p['bq'] + p['bk'] + p['ab']).T)
    panel = panel.at[ROW_ATT:ROW_ATT + Aa, 1:2].set(p['ws'])
    panel = panel.at[ROW_BFC:ROW_BFC + 2, 0:1].set(p['bfc'].T)
    panel = panel.at[ROW_PERM:ROW_PERM + 2 * BATCH, 0:2 * BATCH].set(jnp.asarray(perm))
    return panel


# ----------------------------------------------------------------------------
# Wrapper (single pallas_call)
# ----------------------------------------------------------------------------
def seq2seq_forward(x, params):
    assert x.shape == (BATCH, SEQ, INPUT_SIZE)
    x_stack = _pack_x(x)
    panel = _pack_params(params)

    out = pl.pallas_call(
        seq2seq_fused_kernel,
        grid=(1,),
        in_specs=[_full_spec(x_stack.shape), _full_spec(panel.shape)],
        out_specs=_full_spec((2, BATCH)),
        out_shape=jax.ShapeDtypeStruct((2, BATCH), F32),
        scratch_shapes=[
            pltpu.VMEM((SEQ, HIDDEN_SIZE, BATCH), F32),   # encoder fwd states (t, H, B)
            pltpu.VMEM((SEQ, HIDDEN_SIZE, BATCH), F32),   # encoder bwd states (t, H, B)
        ],
        compiler_params=pltpu.CompilerParams(dimension_semantics=("arbitrary",)),
    )(x_stack, panel)

    # kernel output is lane-dense (2, B); module output is fc(out): (B, 1, 2)
    return out.T.reshape(BATCH, 1, 2)


# ----------------------------------------------------------------------------
# Deterministic parameter init (shapes from the module's __init__)
# ----------------------------------------------------------------------------
def init_params(key):
    ks = jax.random.split(key, 20)

    def u(k, shape, scale=0.25):
        return jax.random.uniform(k, shape, F32, -scale, scale)

    H, A, I = HIDDEN_SIZE, ATTENTION_SIZE, INPUT_SIZE
    H2 = 2 * H
    p = {}
    # encoder GRU (bidirectional): weights stored pre-transposed (in, 3H), gate order [r,z,n]
    p['wif'] = u(ks[0], (I, 3 * H)); p['whf'] = u(ks[1], (H, 3 * H))
    p['bif'] = u(ks[2], (1, 3 * H)); p['bhf'] = u(ks[3], (1, 3 * H))
    p['wib'] = u(ks[4], (I, 3 * H)); p['whb'] = u(ks[5], (H, 3 * H))
    p['bib'] = u(ks[6], (1, 3 * H)); p['bhb'] = u(ks[7], (1, 3 * H))
    # additive attention
    p['wq'] = u(ks[8], (H2, A));  p['bq'] = u(ks[9], (1, A))
    p['wk'] = u(ks[10], (H2, A)); p['bk'] = u(ks[11], (1, A))
    p['ws'] = u(ks[12], (A, 1));  p['bs'] = u(ks[13], (1, 1))
    p['ab'] = u(ks[14], (1, A), 0.1)
    # TODO(synk): AdditiveAttention.locationConv (Conv1d(1,3,3)) is never used in forward -> omitted.
    # decoder GRU (input 2, hidden 6); dec_input is zeros so only its input bias matters
    p['bid'] = u(ks[15], (1, 3 * H2))
    p['whd'] = u(ks[16], (H2, 3 * H2)); p['bhd'] = u(ks[17], (1, 3 * H2))
    # fc: Linear(6, 2)
    p['wfc'] = u(ks[18], (H2, 2)); p['bfc'] = u(ks[19], (1, 2))
    return p


# ----------------------------------------------------------------------------
# Pure-JAX reference (same semantics as the PyTorch forward) for verification
# ----------------------------------------------------------------------------
def _gru_cell_ref(x_t, h, wi, wh, bi, bh):
    Hn = h.shape[-1]
    gi = x_t @ wi + bi
    gh = h @ wh + bh
    r = jax.nn.sigmoid(gi[:, :Hn] + gh[:, :Hn])
    z = jax.nn.sigmoid(gi[:, Hn:2 * Hn] + gh[:, Hn:2 * Hn])
    n = jnp.tanh(gi[:, 2 * Hn:] + r * gh[:, 2 * Hn:])
    return (1.0 - z) * n + z * h


def reference_forward(x, p):
    B, T, _ = x.shape
    H, H2 = HIDDEN_SIZE, 2 * HIDDEN_SIZE
    hf = jnp.zeros((B, H), F32)
    hb = jnp.zeros((B, H), F32)
    fwd, bwd = [], [None] * T
    for t in range(T):
        hf = _gru_cell_ref(x[:, t], hf, p['wif'], p['whf'], p['bif'], p['bhf'])
        fwd.append(hf)
    for t in range(T - 1, -1, -1):
        hb = _gru_cell_ref(x[:, t], hb, p['wib'], p['whb'], p['bib'], p['bhb'])
        bwd[t] = hb
    enc_out = jnp.stack([jnp.concatenate([fwd[t], bwd[t]], -1) for t in range(T)], axis=1)  # (B,T,2H)
    enc_hid = jnp.stack([hf, hb], axis=0)                                                   # (2,B,H)
    dec_hidden = enc_hid.reshape(B, 1, H2)        # raw-view quirk, matches PyTorch .view()
    kp = enc_out @ p['wk'] + p['bk']
    qp = dec_hidden @ p['wq'] + p['bq']
    e = jnp.tanh(kp + qp + p['ab'])
    scores = e @ p['ws'] + p['bs']                                                          # (B,T,1)
    w = jax.nn.softmax(scores, axis=1)
    wT = jnp.transpose(w, (0, 2, 1))                                                        # (B,1,T)
    ctx = jnp.einsum('bot,btd->bod', wT, enc_out)[:, 0, :]                                  # (B,2H)
    h1 = _gru_cell_ref(jnp.zeros((B, 2), F32), ctx,
                       jnp.zeros((2, 3 * H2), F32), p['whd'], p['bid'], p['bhd'])
    return (h1 @ p['wfc'] + p['bfc']).reshape(B, 1, 2)


if __name__ == "__main__":
    key = jax.random.PRNGKey(0)
    k_x, k_y, k_p = jax.random.split(key, 3)
    x = jax.random.normal(k_x, (BATCH, SEQ, INPUT_SIZE), F32)
    y = jax.random.normal(k_y, (BATCH, SEQ, 2), F32)   # unused by the forward (signature parity)
    params = init_params(k_p)

    out = seq2seq_forward(x, params)
    out = jax.block_until_ready(out)

    ref = reference_forward(x, params)
    assert out.shape == (BATCH, 1, 2)
    np.testing.assert_allclose(np.asarray(out), np.asarray(ref), rtol=2e-3, atol=2e-3)
    print("KERNEL_OK")
</pallas_src>

<mosaic_0001>
module attributes {stable_mosaic.version = 11 : i64} {
  func.func @seq2seq_fused_kernel(%arg0: i32, %arg1: memref<21x512xf32, #tpu.memory_space<vmem>>, %arg2: memref<264x128xf32, #tpu.memory_space<vmem>>, %arg3: memref<2x64xf32, #tpu.memory_space<vmem>>, %arg4: memref<8x3x64xf32, #tpu.memory_space<vmem>>, %arg5: memref<8x3x64xf32, #tpu.memory_space<vmem>>) attributes {dimension_semantics = [#tpu.dimension_semantics<arbitrary>], iteration_bounds = array<i64: 1>, scalar_prefetch = 0 : i64, scratch_operands = 2 : i64, tpu.core_type = #tpu.core_type<tc>, window_params = [{pipeline_mode = #tpu.pipeline_mode<synchronous>, transform_indices = @transform_0, window_bounds = array<i64: 21, 512>}, {pipeline_mode = #tpu.pipeline_mode<synchronous>, transform_indices = @transform_1, window_bounds = array<i64: 264, 128>}, {pipeline_mode = #tpu.pipeline_mode<synchronous>, transform_indices = @transform_2, window_bounds = array<i64: 2, 64>}]} {
    %c0 = arith.constant 0 : index
    %c0_0 = arith.constant 0 : index
    %0 = vector.load %arg2[%c0, %c0_0] : memref<264x128xf32, #tpu.memory_space<vmem>>, vector<18x21xf32>
    %c24 = arith.constant 24 : index
    %c0_1 = arith.constant 0 : index
    %1 = vector.load %arg2[%c24, %c0_1] : memref<264x128xf32, #tpu.memory_space<vmem>>, vector<18x6xf32>
    %c96 = arith.constant 96 : index
    %c0_2 = arith.constant 0 : index
    %2 = vector.load %arg2[%c96, %c0_2] : memref<264x128xf32, #tpu.memory_space<vmem>>, vector<18x1xf32>
    %3 = vector.shape_cast %2 : vector<18x1xf32> to vector<18x1xf32>
    %4 = vector.broadcast %3 : vector<18x1xf32> to vector<18x64xf32>
    %c0_3 = arith.constant 0 : index
    %c0_4 = arith.constant 0 : index
    %5 = vector.load %arg1[%c0_3, %c0_4] : memref<21x512xf32, #tpu.memory_space<vmem>>, vector<21x512xf32>
    %cst = arith.constant dense<0.000000e+00> : vector<18x512xf32>
    %6 = tpu.matmul %0, %5, %cst {dimension_numbers = #tpu.dot_dimension_numbers<[1], [0], [0], [1], [0, 0, 1, 1], [], []>} : vector<18x21xf32>, vector<21x512xf32>, vector<18x512xf32> -> vector<18x512xf32>
    %cst_5 = arith.constant 0.000000e+00 : f32
    %7 = vector.broadcast %cst_5 : f32 to vector<6x64xf32>
    %8 = vector.extract_strided_slice %6 {offsets = [0, 0], sizes = [18, 64], strides = [1, 1]} : vector<18x512xf32> to vector<18x64xf32>
    %cst_6 = arith.constant dense<0.000000e+00> : vector<18x64xf32>
    %9 = tpu.matmul %1, %7, %cst_6 {dimension_numbers = #tpu.dot_dimension_numbers<[1], [0], [0], [1], [0, 0, 1, 1], [], []>} : vector<18x6xf32>, vector<6x64xf32>, vector<18x64xf32> -> vector<18x64xf32>
    %10 = arith.addf %9, %4 : vector<18x64xf32>
    %11 = vector.extract_strided_slice %8 {offsets = [0, 0], sizes = [6, 64], strides = [1, 1]} : vector<18x64xf32> to vector<6x64xf32>
    %12 = vector.extract_strided_slice %10 {offsets = [0, 0], sizes = [6, 64], strides = [1, 1]} : vector<18x64xf32> to vector<6x64xf32>
    %13 = arith.addf %11, %12 : vector<6x64xf32>
    %14 = arith.negf %13 : vector<6x64xf32>
    %15 = math.exp %14 : vector<6x64xf32>
    %cst_7 = arith.constant 1.000000e+00 : f32
    %16 = vector.broadcast %cst_7 : f32 to vector<6x64xf32>
    %17 = arith.addf %16, %15 : vector<6x64xf32>
    %18 = arith.divf %16, %17 : vector<6x64xf32>
    %19 = vector.extract_strided_slice %8 {offsets = [6, 0], sizes = [6, 64], strides = [1, 1]} : vector<18x64xf32> to vector<6x64xf32>
    %20 = vector.extract_strided_slice %10 {offsets = [6, 0], sizes = [6, 64], strides = [1, 1]} : vector<18x64xf32> to vector<6x64xf32>
    %21 = arith.addf %19, %20 : vector<6x64xf32>
    %22 = arith.negf %21 : vector<6x64xf32>
    %23 = math.exp %22 : vector<6x64xf32>
    %cst_8 = arith.constant 1.000000e+00 : f32
    %24 = vector.broadcast %cst_8 : f32 to vector<6x64xf32>
    %25 = arith.addf %24, %23 : vector<6x64xf32>
    %26 = arith.divf %24, %25 : vector<6x64xf32>
    %27 = vector.extract_strided_slice %8 {offsets = [12, 0], sizes = [6, 64], strides = [1, 1]} : vector<18x64xf32> to vector<6x64xf32>
    %28 = vector.extract_strided_slice %10 {offsets = [12, 0], sizes = [6, 64], strides = [1, 1]} : vector<18x64xf32> to vector<6x64xf32>
    %29 = arith.mulf %18, %28 : vector<6x64xf32>
    %30 = arith.addf %27, %29 : vector<6x64xf32>
    %31 = math.tanh %30 : vector<6x64xf32>
    %cst_9 = arith.constant 1.000000e+00 : f32
    %32 = vector.broadcast %cst_9 : f32 to vector<6x64xf32>
    %33 = arith.subf %32, %26 : vector<6x64xf32>
    %34 = arith.mulf %33, %31 : vector<6x64xf32>
    %35 = arith.mulf %26, %7 : vector<6x64xf32>
    %36 = arith.addf %34, %35 : vector<6x64xf32>
    %37 = vector.extract_strided_slice %36 {offsets = [0, 0], sizes = [3, 64], strides = [1, 1]} : vector<6x64xf32> to vector<3x64xf32>
    %c0_10 = arith.constant 0 : index
    %c0_11 = arith.constant 0 : index
    %c0_12 = arith.constant 0 : index
    %38 = vector.load %arg4[%c0_10, %c0_11, %c0_12] : memref<8x3x64xf32, #tpu.memory_space<vmem>>, vector<1x3x64xf32>
    %39 = vector.shape_cast %38 : vector<1x3x64xf32> to vector<3x64xf32>
    %40 = vector.shape_cast %37 : vector<3x64xf32> to vector<1x3x64xf32>
    tpu.vector_store %arg4[%c0_10, %c0_11, %c0_12], %40 {strides = array<i32>} : memref<8x3x64xf32, #tpu.memory_space<vmem>>, vector<1x3x64xf32>,
    %41 = vector.extract_strided_slice %36 {offsets = [3, 0], sizes = [3, 64], strides = [1, 1]} : vector<6x64xf32> to vector<3x64xf32>
    %c7 = arith.constant 7 : index
    %c0_13 = arith.constant 0 : index
    %c0_14 = arith.constant 0 : index
    %42 = vector.load %arg5[%c7, %c0_13, %c0_14] : memref<8x3x64xf32, #tpu.memory_space<vmem>>, vector<1x3x64xf32>
    %43 = vector.shape_cast %42 : vector<1x3x64xf32> to vector<3x64xf32>
    %44 = vector.shape_cast %41 : vector<3x64xf32> to vector<1x3x64xf32>
    tpu.vector_store %arg5[%c7, %c0_13, %c0_14], %44 {strides = array<i32>} : memref<8x3x64xf32, #tpu.memory_space<vmem>>, vector<1x3x64xf32>,
    %45 = vector.extract_strided_slice %6 {offsets = [0, 64], sizes = [18, 64], strides = [1, 1]} : vector<18x512xf32> to vector<18x64xf32>
    %cst_15 = arith.constant dense<0.000000e+00> : vector<18x64xf32>
    %46 = tpu.matmul %1, %36, %cst_15 {dimension_numbers = #tpu.dot_dimension_numbers<[1], [0], [0], [1], [0, 0, 1, 1], [], []>} : vector<18x6xf32>, vector<6x64xf32>, vector<18x64xf32> -> vector<18x64xf32>
    %47 = arith.addf %46, %4 : vector<18x64xf32>
    %48 = vector.extract_strided_slice %45 {offsets = [0, 0], sizes = [6, 64], strides = [1, 1]} : vector<18x64xf32> to vector<6x64xf32>
    %49 = vector.extract_strided_slice %47 {offsets = [0, 0], sizes = [6, 64], strides = [1, 1]} : vector<18x64xf32> to vector<6x64xf32>
    %50 = arith.addf %48, %49 : vector<6x64xf32>
    %51 = arith.negf %50 : vector<6x64xf32>
    %52 = math.exp %51 : vector<6x64xf32>
    %cst_16 = arith.constant 1.000000e+00 : f32
    %53 = vector.broadcast %cst_16 : f32 to vector<6x64xf32>
    %54 = arith.addf %53, %52 : vector<6x64xf32>
    %55 = arith.divf %53, %54 : vector<6x64xf32>
    %56 = vector.extract_strided_slice %45 {offsets = [6, 0], sizes = [6, 64], strides = [1, 1]} : vector<18x64xf32> to vector<6x64xf32>
    %57 = vector.extract_strided_slice %47 {offsets = [6, 0], sizes = [6, 64], strides = [1, 1]} : vector<18x64xf32> to vector<6x64xf32>
    %58 = arith.addf %56, %57 : vector<6x64xf32>
    %59 = arith.negf %58 : vector<6x64xf32>
    %60 = math.exp %59 : vector<6x64xf32>
    %cst_17 = arith.constant 1.000000e+00 : f32
    %61 = vector.broadcast %cst_17 : f32 to vector<6x64xf32>
    %62 = arith.addf %61, %60 : vector<6x64xf32>
    %63 = arith.divf %61, %62 : vector<6x64xf32>
    %64 = vector.extract_strided_slice %45 {offsets = [12, 0], sizes = [6, 64], strides = [1, 1]} : vector<18x64xf32> to vector<6x64xf32>
    %65 = vector.extract_strided_slice %47 {offsets = [12, 0], sizes = [6, 64], strides = [1, 1]} : vector<18x64xf32> to vector<6x64xf32>
    %66 = arith.mulf %55, %65 : vector<6x64xf32>
    %67 = arith.addf %64, %66 : vector<6x64xf32>
    %68 = math.tanh %67 : vector<6x64xf32>
    %cst_18 = arith.constant 1.000000e+00 : f32
    %69 = vector.broadcast %cst_18 : f32 to vector<6x64xf32>
    %70 = arith.subf %69, %63 : vector<6x64xf32>
    %71 = arith.mulf %70, %68 : vector<6x64xf32>
    %72 = arith.mulf %63, %36 : vector<6x64xf32>
    %73 = arith.addf %71, %72 : vector<6x64xf32>
    %74 = vector.extract_strided_slice %73 {offsets = [0, 0], sizes = [3, 64], strides = [1, 1]} : vector<6x64xf32> to vector<3x64xf32>
    %c1 = arith.constant 1 : index
    %c0_19 = arith.constant 0 : index
    %c0_20 = arith.constant 0 : index
    %75 = vector.load %arg4[%c1, %c0_19, %c0_20] : memref<8x3x64xf32, #tpu.memory_space<vmem>>, vector<1x3x64xf32>
    %76 = vector.shape_cast %75 : vector<1x3x64xf32> to vector<3x64xf32>
    %77 = vector.shape_cast %74 : vector<3x64xf32> to vector<1x3x64xf32>
    tpu.vector_store %arg4[%c1, %c0_19, %c0_20], %77 {strides = array<i32>} : memref<8x3x64xf32, #tpu.memory_space<vmem>>, vector<1x3x64xf32>,
    %78 = vector.extract_strided_slice %73 {offsets = [3, 0], sizes = [3, 64], strides = [1, 1]} : vector<6x64xf32> to vector<3x64xf32>
    %c6 = arith.constant 6 : index
    %c0_21 = arith.constant 0 : index
    %c0_22 = arith.constant 0 : index
    %79 = vector.load %arg5[%c6, %c0_21, %c0_22] : memref<8x3x64xf32, #tpu.memory_space<vmem>>, vector<1x3x64xf32>
    %80 = vector.shape_cast %79 : vector<1x3x64xf32> to vector<3x64xf32>
    %81 = vector.shape_cast %78 : vector<3x64xf32> to vector<1x3x64xf32>
    tpu.vector_store %arg5[%c6, %c0_21, %c0_22], %81 {strides = array<i32>} : memref<8x3x64xf32, #tpu.memory_space<vmem>>, vector<1x3x64xf32>,
    %82 = vector.extract_strided_slice %6 {offsets = [0, 128], sizes = [18, 64], strides = [1, 1]} : vector<18x512xf32> to vector<18x64xf32>
    %cst_23 = arith.constant dense<0.000000e+00> : vector<18x64xf32>
    %83 = tpu.matmul %1, %73, %cst_23 {dimension_numbers = #tpu.dot_dimension_numbers<[1], [0], [0], [1], [0, 0, 1, 1], [], []>} : vector<18x6xf32>, vector<6x64xf32>, vector<18x64xf32> -> vector<18x64xf32>
    %84 = arith.addf %83, %4 : vector<18x64xf32>
    %85 = vector.extract_strided_slice %82 {offsets = [0, 0], sizes = [6, 64], strides = [1, 1]} : vector<18x64xf32> to vector<6x64xf32>
    %86 = vector.extract_strided_slice %84 {offsets = [0, 0], sizes = [6, 64], strides = [1, 1]} : vector<18x64xf32> to vector<6x64xf32>
    %87 = arith.addf %85, %86 : vector<6x64xf32>
    %88 = arith.negf %87 : vector<6x64xf32>
    %89 = math.exp %88 : vector<6x64xf32>
    %cst_24 = arith.constant 1.000000e+00 : f32
    %90 = vector.broadcast %cst_24 : f32 to vector<6x64xf32>
    %91 = arith.addf %90, %89 : vector<6x64xf32>
    %92 = arith.divf %90, %91 : vector<6x64xf32>
    %93 = vector.extract_strided_slice %82 {offsets = [6, 0], sizes = [6, 64], strides = [1, 1]} : vector<18x64xf32> to vector<6x64xf32>
    %94 = vector.extract_strided_slice %84 {offsets = [6, 0], sizes = [6, 64], strides = [1, 1]} : vector<18x64xf32> to vector<6x64xf32>
    %95 = arith.addf %93, %94 : vector<6x64xf32>
    %96 = arith.negf %95 : vector<6x64xf32>
    %97 = math.exp %96 : vector<6x64xf32>
    %cst_25 = arith.constant 1.000000e+00 : f32
    %98 = vector.broadcast %cst_25 : f32 to vector<6x64xf32>
    %99 = arith.addf %98, %97 : vector<6x64xf32>
    %100 = arith.divf %98, %99 : vector<6x64xf32>
    %101 = vector.extract_strided_slice %82 {offsets = [12, 0], sizes = [6, 64], strides = [1, 1]} : vector<18x64xf32> to vector<6x64xf32>
    %102 = vector.extract_strided_slice %84 {offsets = [12, 0], sizes = [6, 64], strides = [1, 1]} : vector<18x64xf32> to vector<6x64xf32>
    %103 = arith.mulf %92, %102 : vector<6x64xf32>
    %104 = arith.addf %101, %103 : vector<6x64xf32>
    %105 = math.tanh %104 : vector<6x64xf32>
    %cst_26 = arith.constant 1.000000e+00 : f32
    %106 = vector.broadcast %cst_26 : f32 to vector<6x64xf32>
    %107 = arith.subf %106, %100 : vector<6x64xf32>
    %108 = arith.mulf %107, %105 : vector<6x64xf32>
    %109 = arith.mulf %100, %73 : vector<6x64xf32>
    %110 = arith.addf %108, %109 : vector<6x64xf32>
    %111 = vector.extract_strided_slice %110 {offsets = [0, 0], sizes = [3, 64], strides = [1, 1]} : vector<6x64xf32> to vector<3x64xf32>
    %c2 = arith.constant 2 : index
    %c0_27 = arith.constant 0 : index
    %c0_28 = arith.constant 0 : index
    %112 = vector.load %arg4[%c2, %c0_27, %c0_28] : memref<8x3x64xf32, #tpu.memory_space<vmem>>, vector<1x3x64xf32>
    %113 = vector.shape_cast %112 : vector<1x3x64xf32> to vector<3x64xf32>
    %114 = vector.shape_cast %111 : vector<3x64xf32> to vector<1x3x64xf32>
    tpu.vector_store %arg4[%c2, %c0_27, %c0_28], %114 {strides = array<i32>} : memref<8x3x64xf32, #tpu.memory_space<vmem>>, vector<1x3x64xf32>,
    %115 = vector.extract_strided_slice %110 {offsets = [3, 0], sizes = [3, 64], strides = [1, 1]} : vector<6x64xf32> to vector<3x64xf32>
    %c5 = arith.constant 5 : index
    %c0_29 = arith.constant 0 : index
    %c0_30 = arith.constant 0 : index
    %116 = vector.load %arg5[%c5, %c0_29, %c0_30] : memref<8x3x64xf32, #tpu.memory_space<vmem>>, vector<1x3x64xf32>
    %117 = vector.shape_cast %116 : vector<1x3x64xf32> to vector<3x64xf32>
    %118 = vector.shape_cast %115 : vector<3x64xf32> to vector<1x3x64xf32>
    tpu.vector_store %arg5[%c5, %c0_29, %c0_30], %118 {strides = array<i32>} : memref<8x3x64xf32, #tpu.memory_space<vmem>>, vector<1x3x64xf32>,
    %119 = vector.extract_strided_slice %6 {offsets = [0, 192], sizes = [18, 64], strides = [1, 1]} : vector<18x512xf32> to vector<18x64xf32>
    %cst_31 = arith.constant dense<0.000000e+00> : vector<18x64xf32>
    %120 = tpu.matmul %1, %110, %cst_31 {dimension_numbers = #tpu.dot_dimension_numbers<[1], [0], [0], [1], [0, 0, 1, 1], [], []>} : vector<18x6xf32>, vector<6x64xf32>, vector<18x64xf32> -> vector<18x64xf32>
    %121 = arith.addf %120, %4 : vector<18x64xf32>
    %122 = vector.extract_strided_slice %119 {offsets = [0, 0], sizes = [6, 64], strides = [1, 1]} : vector<18x64xf32> to vector<6x64xf32>
    %123 = vector.extract_strided_slice %121 {offsets = [0, 0], sizes = [6, 64], strides = [1, 1]} : vector<18x64xf32> to vector<6x64xf32>
    %124 = arith.addf %122, %123 : vector<6x64xf32>
    %125 = arith.negf %124 : vector<6x64xf32>
    %126 = math.exp %125 : vector<6x64xf32>
    %cst_32 = arith.constant 1.000000e+00 : f32
    %127 = vector.broadcast %cst_32 : f32 to vector<6x64xf32>
    %128 = arith.addf %127, %126 : vector<6x64xf32>
    %129 = arith.divf %127, %128 : vector<6x64xf32>
    %130 = vector.extract_strided_slice %119 {offsets = [6, 0], sizes = [6, 64], strides = [1, 1]} : vector<18x64xf32> to vector<6x64xf32>
    %131 = vector.extract_strided_slice %121 {offsets = [6, 0], sizes = [6, 64], strides = [1, 1]} : vector<18x64xf32> to vector<6x64xf32>
    %132 = arith.addf %130, %131 : vector<6x64xf32>
    %133 = arith.negf %132 : vector<6x64xf32>
    %134 = math.exp %133 : vector<6x64xf32>
    %cst_33 = arith.constant 1.000000e+00 : f32
    %135 = vector.broadcast %cst_33 : f32 to vector<6x64xf32>
    %136 = arith.addf %135, %134 : vector<6x64xf32>
    %137 = arith.divf %135, %136 : vector<6x64xf32>
    %138 = vector.extract_strided_slice %119 {offsets = [12, 0], sizes = [6, 64], strides = [1, 1]} : vector<18x64xf32> to vector<6x64xf32>
    %139 = vector.extract_strided_slice %121 {offsets = [12, 0], sizes = [6, 64], strides = [1, 1]} : vector<18x64xf32> to vector<6x64xf32>
    %140 = arith.mulf %129, %139 : vector<6x64xf32>
    %141 = arith.addf %138, %140 : vector<6x64xf32>
    %142 = math.tanh %141 : vector<6x64xf32>
    %cst_34 = arith.constant 1.000000e+00 : f32
    %143 = vector.broadcast %cst_34 : f32 to vector<6x64xf32>
    %144 = arith.subf %143, %137 : vector<6x64xf32>
    %145 = arith.mulf %144, %142 : vector<6x64xf32>
    %146 = arith.mulf %137, %110 : vector<6x64xf32>
    %147 = arith.addf %145, %146 : vector<6x64xf32>
    %148 = vector.extract_strided_slice %147 {offsets = [0, 0], sizes = [3, 64], strides = [1, 1]} : vector<6x64xf32> to vector<3x64xf32>
    %c3 = arith.constant 3 : index
    %c0_35 = arith.constant 0 : index
    %c0_36 = arith.constant 0 : index
    %149 = vector.load %arg4[%c3, %c0_35, %c0_36] : memref<8x3x64xf32, #tpu.memory_space<vmem>>, vector<1x3x64xf32>
    %150 = vector.shape_cast %149 : vector<1x3x64xf32> to vector<3x64xf32>
    %151 = vector.shape_cast %148 : vector<3x64xf32> to vector<1x3x64xf32>
    tpu.vector_store %arg4[%c3, %c0_35, %c0_36], %151 {strides = array<i32>} : memref<8x3x64xf32, #tpu.memory_space<vmem>>, vector<1x3x64xf32>,
    %152 = vector.extract_strided_slice %147 {offsets = [3, 0], sizes = [3, 64], strides = [1, 1]} : vector<6x64xf32> to vector<3x64xf32>
    %c4 = arith.constant 4 : index
    %c0_37 = arith.constant 0 : index
    %c0_38 = arith.constant 0 : index
    %153 = vector.load %arg5[%c4, %c0_37, %c0_38] : memref<8x3x64xf32, #tpu.memory_space<vmem>>, vector<1x3x64xf32>
    %154 = vector.shape_cast %153 : vector<1x3x64xf32> to vector<3x64xf32>
    %155 = vector.shape_cast %152 : vector<3x64xf32> to vector<1x3x64xf32>
    tpu.vector_store %arg5[%c4, %c0_37, %c0_38], %155 {strides = array<i32>} : memref<8x3x64xf32, #tpu.memory_space<vmem>>, vector<1x3x64xf32>,
    %156 = vector.extract_strided_slice %6 {offsets = [0, 256], sizes = [18, 64], strides = [1, 1]} : vector<18x512xf32> to vector<18x64xf32>
    %cst_39 = arith.constant dense<0.000000e+00> : vector<18x64xf32>
    %157 = tpu.matmul %1, %147, %cst_39 {dimension_numbers = #tpu.dot_dimension_numbers<[1], [0], [0], [1], [0, 0, 1, 1], [], []>} : vector<18x6xf32>, vector<6x64xf32>, vector<18x64xf32> -> vector<18x64xf32>
    %158 = arith.addf %157, %4 : vector<18x64xf32>
    %159 = vector.extract_strided_slice %156 {offsets = [0, 0], sizes = [6, 64], strides = [1, 1]} : vector<18x64xf32> to vector<6x64xf32>
    %160 = vector.extract_strided_slice %158 {offsets = [0, 0], sizes = [6, 64], strides = [1, 1]} : vector<18x64xf32> to vector<6x64xf32>
    %161 = arith.addf %159, %160 : vector<6x64xf32>
    %162 = arith.negf %161 : vector<6x64xf32>
    %163 = math.exp %162 : vector<6x64xf32>
    %cst_40 = arith.constant 1.000000e+00 : f32
    %164 = vector.broadcast %cst_40 : f32 to vector<6x64xf32>
    %165 = arith.addf %164, %163 : vector<6x64xf32>
    %166 = arith.divf %164, %165 : vector<6x64xf32>
    %167 = vector.extract_strided_slice %156 {offsets = [6, 0], sizes = [6, 64], strides = [1, 1]} : vector<18x64xf32> to vector<6x64xf32>
    %168 = vector.extract_strided_slice %158 {offsets = [6, 0], sizes = [6, 64], strides = [1, 1]} : vector<18x64xf32> to vector<6x64xf32>
    %169 = arith.addf %167, %168 : vector<6x64xf32>
    %170 = arith.negf %169 : vector<6x64xf32>
    %171 = math.exp %170 : vector<6x64xf32>
    %cst_41 = arith.constant 1.000000e+00 : f32
    %172 = vector.broadcast %cst_41 : f32 to vector<6x64xf32>
    %173 = arith.addf %172, %171 : vector<6x64xf32>
    %174 = arith.divf %172, %173 : vector<6x64xf32>
    %175 = vector.extract_strided_slice %156 {offsets = [12, 0], sizes = [6, 64], strides = [1, 1]} : vector<18x64xf32> to vector<6x64xf32>
    %176 = vector.extract_strided_slice %158 {offsets = [12, 0], sizes = [6, 64], strides = [1, 1]} : vector<18x64xf32> to vector<6x64xf32>
    %177 = arith.mulf %166, %176 : vector<6x64xf32>
    %178 = arith.addf %175, %177 : vector<6x64xf32>
    %179 = math.tanh %178 : vector<6x64xf32>
    %cst_42 = arith.constant 1.000000e+00 : f32
    %180 = vector.broadcast %cst_42 : f32 to vector<6x64xf32>
    %181 = arith.subf %180, %174 : vector<6x64xf32>
    %182 = arith.mulf %181, %179 : vector<6x64xf32>
    %183 = arith.mulf %174, %147 : vector<6x64xf32>
    %184 = arith.addf %182, %183 : vector<6x64xf32>
    %185 = vector.extract_strided_slice %184 {offsets = [0, 0], sizes = [3, 64], strides = [1, 1]} : vector<6x64xf32> to vector<3x64xf32>
    %c4_43 = arith.constant 4 : index
    %c0_44 = arith.constant 0 : index
    %c0_45 = arith.constant 0 : index
    %186 = vector.load %arg4[%c4_43, %c0_44, %c0_45] : memref<8x3x64xf32, #tpu.memory_space<vmem>>, vector<1x3x64xf32>
    %187 = vector.shape_cast %186 : vector<1x3x64xf32> to vector<3x64xf32>
    %188 = vector.shape_cast %185 : vector<3x64xf32> to vector<1x3x64xf32>
    tpu.vector_store %arg4[%c4_43, %c0_44, %c0_45], %188 {strides = array<i32>} : memref<8x3x64xf32, #tpu.memory_space<vmem>>, vector<1x3x64xf32>,
    %189 = vector.extract_strided_slice %184 {offsets = [3, 0], sizes = [3, 64], strides = [1, 1]} : vector<6x64xf32> to vector<3x64xf32>
    %c3_46 = arith.constant 3 : index
    %c0_47 = arith.constant 0 : index
    %c0_48 = arith.constant 0 : index
    %190 = vector.load %arg5[%c3_46, %c0_47, %c0_48] : memref<8x3x64xf32, #tpu.memory_space<vmem>>, vector<1x3x64xf32>
    %191 = vector.shape_cast %190 : vector<1x3x64xf32> to vector<3x64xf32>
    %192 = vector.shape_cast %189 : vector<3x64xf32> to vector<1x3x64xf32>
    tpu.vector_store %arg5[%c3_46, %c0_47, %c0_48], %192 {strides = array<i32>} : memref<8x3x64xf32, #tpu.memory_space<vmem>>, vector<1x3x64xf32>,
    %193 = vector.extract_strided_slice %6 {offsets = [0, 320], sizes = [18, 64], strides = [1, 1]} : vector<18x512xf32> to vector<18x64xf32>
    %cst_49 = arith.constant dense<0.000000e+00> : vector<18x64xf32>
    %194 = tpu.matmul %1, %184, %cst_49 {dimension_numbers = #tpu.dot_dimension_numbers<[1], [0], [0], [1], [0, 0, 1, 1], [], []>} : vector<18x6xf32>, vector<6x64xf32>, vector<18x64xf32> -> vector<18x64xf32>
    %195 = arith.addf %194, %4 : vector<18x64xf32>
    %196 = vector.extract_strided_slice %193 {offsets = [0, 0], sizes = [6, 64], strides = [1, 1]} : vector<18x64xf32> to vector<6x64xf32>
    %197 = vector.extract_strided_slice %195 {offsets = [0, 0], sizes = [6, 64], strides = [1, 1]} : vector<18x64xf32> to vector<6x64xf32>
    %198 = arith.addf %196, %197 : vector<6x64xf32>
    %199 = arith.negf %198 : vector<6x64xf32>
    %200 = math.exp %199 : vector<6x64xf32>
    %cst_50 = arith.constant 1.000000e+00 : f32
    %201 = vector.broadcast %cst_50 : f32 to vector<6x64xf32>
    %202 = arith.addf %201, %200 : vector<6x64xf32>
    %203 = arith.divf %201, %202 : vector<6x64xf32>
    %204 = vector.extract_strided_slice %193 {offsets = [6, 0], sizes = [6, 64], strides = [1, 1]} : vector<18x64xf32> to vector<6x64xf32>
    %205 = vector.extract_strided_slice %195 {offsets = [6, 0], sizes = [6, 64], strides = [1, 1]} : vector<18x64xf32> to vector<6x64xf32>
    %206 = arith.addf %204, %205 : vector<6x64xf32>
    %207 = arith.negf %206 : vector<6x64xf32>
    %208 = math.exp %207 : vector<6x64xf32>
    %cst_51 = arith.constant 1.000000e+00 : f32
    %209 = vector.broadcast %cst_51 : f32 to vector<6x64xf32>
    %210 = arith.addf %209, %208 : vector<6x64xf32>
    %211 = arith.divf %209, %210 : vector<6x64xf32>
    %212 = vector.extract_strided_slice %193 {offsets = [12, 0], sizes = [6, 64], strides = [1, 1]} : vector<18x64xf32> to vector<6x64xf32>
    %213 = vector.extract_strided_slice %195 {offsets = [12, 0], sizes = [6, 64], strides = [1, 1]} : vector<18x64xf32> to vector<6x64xf32>
    %214 = arith.mulf %203, %213 : vector<6x64xf32>
    %215 = arith.addf %212, %214 : vector<6x64xf32>
    %216 = math.tanh %215 : vector<6x64xf32>
    %cst_52 = arith.constant 1.000000e+00 : f32
    %217 = vector.broadcast %cst_52 : f32 to vector<6x64xf32>
    %218 = arith.subf %217, %211 : vector<6x64xf32>
    %219 = arith.mulf %218, %216 : vector<6x64xf32>
    %220 = arith.mulf %211, %184 : vector<6x64xf32>
    %221 = arith.addf %219, %220 : vector<6x64xf32>
    %222 = vector.extract_strided_slice %221 {offsets = [0, 0], sizes = [3, 64], strides = [1, 1]} : vector<6x64xf32> to vector<3x64xf32>
    %c5_53 = arith.constant 5 : index
    %c0_54 = arith.constant 0 : index
    %c0_55 = arith.constant 0 : index
    %223 = vector.load %arg4[%c5_53, %c0_54, %c0_55] : memref<8x3x64xf32, #tpu.memory_space<vmem>>, vector<1x3x64xf32>
    %224 = vector.shape_cast %223 : vector<1x3x64xf32> to vector<3x64xf32>
    %225 = vector.shape_cast %222 : vector<3x64xf32> to vector<1x3x64xf32>
    tpu.vector_store %arg4[%c5_53, %c0_54, %c0_55], %225 {strides = array<i32>} : memref<8x3x64xf32, #tpu.memory_space<vmem>>, vector<1x3x64xf32>,
    %226 = vector.extract_strided_slice %221 {offsets = [3, 0], sizes = [3, 64], strides = [1, 1]} : vector<6x64xf32> to vector<3x64xf32>
    %c2_56 = arith.constant 2 : index
    %c0_57 = arith.constant 0 : index
    %c0_58 = arith.constant 0 : index
    %227 = vector.load %arg5[%c2_56, %c0_57, %c0_58] : memref<8x3x64xf32, #tpu.memory_space<vmem>>, vector<1x3x64xf32>
    %228 = vector.shape_cast %227 : vector<1x3x64xf32> to vector<3x64xf32>
    %229 = vector.shape_cast %226 : vector<3x64xf32> to vector<1x3x64xf32>
    tpu.vector_store %arg5[%c2_56, %c0_57, %c0_58], %229 {strides = array<i32>} : memref<8x3x64xf32, #tpu.memory_space<vmem>>, vector<1x3x64xf32>,
    %230 = vector.extract_strided_slice %6 {offsets = [0, 384], sizes = [18, 64], strides = [1, 1]} : vector<18x512xf32> to vector<18x64xf32>
    %cst_59 = arith.constant dense<0.000000e+00> : vector<18x64xf32>
    %231 = tpu.matmul %1, %221, %cst_59 {dimension_numbers = #tpu.dot_dimension_numbers<[1], [0], [0], [1], [0, 0, 1, 1], [], []>} : vector<18x6xf32>, vector<6x64xf32>, vector<18x64xf32> -> vector<18x64xf32>
    %232 = arith.addf %231, %4 : vector<18x64xf32>
    %233 = vector.extract_strided_slice %230 {offsets = [0, 0], sizes = [6, 64], strides = [1, 1]} : vector<18x64xf32> to vector<6x64xf32>
    %234 = vector.extract_strided_slice %232 {offsets = [0, 0], sizes = [6, 64], strides = [1, 1]} : vector<18x64xf32> to vector<6x64xf32>
    %235 = arith.addf %233, %234 : vector<6x64xf32>
    %236 = arith.negf %235 : vector<6x64xf32>
    %237 = math.exp %236 : vector<6x64xf32>
    %cst_60 = arith.constant 1.000000e+00 : f32
    %238 = vector.broadcast %cst_60 : f32 to vector<6x64xf32>
    %239 = arith.addf %238, %237 : vector<6x64xf32>
    %240 = arith.divf %238, %239 : vector<6x64xf32>
    %241 = vector.extract_strided_slice %230 {offsets = [6, 0], sizes = [6, 64], strides = [1, 1]} : vector<18x64xf32> to vector<6x64xf32>
    %242 = vector.extract_strided_slice %232 {offsets = [6, 0], sizes = [6, 64], strides = [1, 1]} : vector<18x64xf32> to vector<6x64xf32>
    %243 = arith.addf %241, %242 : vector<6x64xf32>
    %244 = arith.negf %243 : vector<6x64xf32>
    %245 = math.exp %244 : vector<6x64xf32>
    %cst_61 = arith.constant 1.000000e+00 : f32
    %246 = vector.broadcast %cst_61 : f32 to vector<6x64xf32>
    %247 = arith.addf %246, %245 : vector<6x64xf32>
    %248 = arith.divf %246, %247 : vector<6x64xf32>
    %249 = vector.extract_strided_slice %230 {offsets = [12, 0], sizes = [6, 64], strides = [1, 1]} : vector<18x64xf32> to vector<6x64xf32>
    %250 = vector.extract_strided_slice %232 {offsets = [12, 0], sizes = [6, 64], strides = [1, 1]} : vector<18x64xf32> to vector<6x64xf32>
    %251 = arith.mulf %240, %250 : vector<6x64xf32>
    %252 = arith.addf %249, %251 : vector<6x64xf32>
    %253 = math.tanh %252 : vector<6x64xf32>
    %cst_62 = arith.constant 1.000000e+00 : f32
    %254 = vector.broadcast %cst_62 : f32 to vector<6x64xf32>
    %255 = arith.subf %254, %248 : vector<6x64xf32>
    %256 = arith.mulf %255, %253 : vector<6x64xf32>
    %257 = arith.mulf %248, %221 : vector<6x64xf32>
    %258 = arith.addf %256, %257 : vector<6x64xf32>
    %259 = vector.extract_strided_slice %258 {offsets = [0, 0], sizes = [3, 64], strides = [1, 1]} : vector<6x64xf32> to vector<3x64xf32>
    %c6_63 = arith.constant 6 : index
    %c0_64 = arith.constant 0 : index
    %c0_65 = arith.constant 0 : index
    %260 = vector.load %arg4[%c6_63, %c0_64, %c0_65] : memref<8x3x64xf32, #tpu.memory_space<vmem>>, vector<1x3x64xf32>
    %261 = vector.shape_cast %260 : vector<1x3x64xf32> to vector<3x64xf32>
    %262 = vector.shape_cast %259 : vector<3x64xf32> to vector<1x3x64xf32>
    tpu.vector_store %arg4[%c6_63, %c0_64, %c0_65], %262 {strides = array<i32>} : memref<8x3x64xf32, #tpu.memory_space<vmem>>, vector<1x3x64xf32>,
    %263 = vector.extract_strided_slice %258 {offsets = [3, 0], sizes = [3, 64], strides = [1, 1]} : vector<6x64xf32> to vector<3x64xf32>
    %c1_66 = arith.constant 1 : index
    %c0_67 = arith.constant 0 : index
    %c0_68 = arith.constant 0 : index
    %264 = vector.load %arg5[%c1_66, %c0_67, %c0_68] : memref<8x3x64xf32, #tpu.memory_space<vmem>>, vector<1x3x64xf32>
    %265 = vector.shape_cast %264 : vector<1x3x64xf32> to vector<3x64xf32>
    %266 = vector.shape_cast %263 : vector<3x64xf32> to vector<1x3x64xf32>
    tpu.vector_store %arg5[%c1_66, %c0_67, %c0_68], %266 {strides = array<i32>} : memref<8x3x64xf32, #tpu.memory_space<vmem>>, vector<1x3x64xf32>,
    %267 = vector.extract_strided_slice %6 {offsets = [0, 448], sizes = [18, 64], strides = [1, 1]} : vector<18x512xf32> to vector<18x64xf32>
    %cst_69 = arith.constant dense<0.000000e+00> : vector<18x64xf32>
    %268 = tpu.matmul %1, %258, %cst_69 {dimension_numbers = #tpu.dot_dimension_numbers<[1], [0], [0], [1], [0, 0, 1, 1], [], []>} : vector<18x6xf32>, vector<6x64xf32>, vector<18x64xf32> -> vector<18x64xf32>
    %269 = arith.addf %268, %4 : vector<18x64xf32>
    %270 = vector.extract_strided_slice %267 {offsets = [0, 0], sizes = [6, 64], strides = [1, 1]} : vector<18x64xf32> to vector<6x64xf32>
    %271 = vector.extract_strided_slice %269 {offsets = [0, 0], sizes = [6, 64], strides = [1, 1]} : vector<18x64xf32> to vector<6x64xf32>
    %272 = arith.addf %270, %271 : vector<6x64xf32>
    %273 = arith.negf %272 : vector<6x64xf32>
    %274 = math.exp %273 : vector<6x64xf32>
    %cst_70 = arith.constant 1.000000e+00 : f32
    %275 = vector.broadcast %cst_70 : f32 to vector<6x64xf32>
    %276 = arith.addf %275, %274 : vector<6x64xf32>
    %277 = arith.divf %275, %276 : vector<6x64xf32>
    %278 = vector.extract_strided_slice %267 {offsets = [6, 0], sizes = [6, 64], strides = [1, 1]} : vector<18x64xf32> to vector<6x64xf32>
    %279 = vector.extract_strided_slice %269 {offsets = [6, 0], sizes = [6, 64], strides = [1, 1]} : vector<18x64xf32> to vector<6x64xf32>
    %280 = arith.addf %278, %279 : vector<6x64xf32>
    %281 = arith.negf %280 : vector<6x64xf32>
    %282 = math.exp %281 : vector<6x64xf32>
    %cst_71 = arith.constant 1.000000e+00 : f32
    %283 = vector.broadcast %cst_71 : f32 to vector<6x64xf32>
    %284 = arith.addf %283, %282 : vector<6x64xf32>
    %285 = arith.divf %283, %284 : vector<6x64xf32>
    %286 = vector.extract_strided_slice %267 {offsets = [12, 0], sizes = [6, 64], strides = [1, 1]} : vector<18x64xf32> to vector<6x64xf32>
    %287 = vector.extract_strided_slice %269 {offsets = [12, 0], sizes = [6, 64], strides = [1, 1]} : vector<18x64xf32> to vector<6x64xf32>
    %288 = arith.mulf %277, %287 : vector<6x64xf32>
    %289 = arith.addf %286, %288 : vector<6x64xf32>
    %290 = math.tanh %289 : vector<6x64xf32>
    %cst_72 = arith.constant 1.000000e+00 : f32
    %291 = vector.broadcast %cst_72 : f32 to vector<6x64xf32>
    %292 = arith.subf %291, %285 : vector<6x64xf32>
    %293 = arith.mulf %292, %290 : vector<6x64xf32>
    %294 = arith.mulf %285, %258 : vector<6x64xf32>
    %295 = arith.addf %293, %294 : vector<6x64xf32>
    %296 = vector.extract_strided_slice %295 {offsets = [0, 0], sizes = [3, 64], strides = [1, 1]} : vector<6x64xf32> to vector<3x64xf32>
    %c7_73 = arith.constant 7 : index
    %c0_74 = arith.constant 0 : index
    %c0_75 = arith.constant 0 : index
    %297 = vector.load %arg4[%c7_73, %c0_74, %c0_75] : memref<8x3x64xf32, #tpu.memory_space<vmem>>, vector<1x3x64xf32>
    %298 = vector.shape_cast %297 : vector<1x3x64xf32> to vector<3x64xf32>
    %299 = vector.shape_cast %296 : vector<3x64xf32> to vector<1x3x64xf32>
    tpu.vector_store %arg4[%c7_73, %c0_74, %c0_75], %299 {strides = array<i32>} : memref<8x3x64xf32, #tpu.memory_space<vmem>>, vector<1x3x64xf32>,
    %300 = vector.extract_strided_slice %295 {offsets = [3, 0], sizes = [3, 64], strides = [1, 1]} : vector<6x64xf32> to vector<3x64xf32>
    %c0_76 = arith.constant 0 : index
    %c0_77 = arith.constant 0 : index
    %c0_78 = arith.constant 0 : index
    %301 = vector.load %arg5[%c0_76, %c0_77, %c0_78] : memref<8x3x64xf32, #tpu.memory_space<vmem>>, vector<1x3x64xf32>
    %302 = vector.shape_cast %301 : vector<1x3x64xf32> to vector<3x64xf32>
    %303 = vector.shape_cast %300 : vector<3x64xf32> to vector<1x3x64xf32>
    tpu.vector_store %arg5[%c0_76, %c0_77, %c0_78], %303 {strides = array<i32>} : memref<8x3x64xf32, #tpu.memory_space<vmem>>, vector<1x3x64xf32>,
    %c72 = arith.constant 72 : index
    %c0_79 = arith.constant 0 : index
    %304 = vector.load %arg2[%c72, %c0_79] : memref<264x128xf32, #tpu.memory_space<vmem>>, vector<4x6xf32>
    %c80 = arith.constant 80 : index
    %c0_80 = arith.constant 0 : index
    %305 = vector.load %arg2[%c80, %c0_80] : memref<264x128xf32, #tpu.memory_space<vmem>>, vector<4x6xf32>
    %c48 = arith.constant 48 : index
    %c0_81 = arith.constant 0 : index
    %306 = vector.load %arg2[%c48, %c0_81] : memref<264x128xf32, #tpu.memory_space<vmem>>, vector<18x6xf32>
    %c88 = arith.constant 88 : index
    %c0_82 = arith.constant 0 : index
    %307 = vector.load %arg2[%c88, %c0_82] : memref<264x128xf32, #tpu.memory_space<vmem>>, vector<2x6xf32>
    %c96_83 = arith.constant 96 : index
    %c1_84 = arith.constant 1 : index
    %308 = vector.load %arg2[%c96_83, %c1_84] : memref<264x128xf32, #tpu.memory_space<vmem>>, vector<18x1xf32>
    %c96_85 = arith.constant 96 : index
    %c2_86 = arith.constant 2 : index
    %309 = vector.load %arg2[%c96_85, %c2_86] : memref<264x128xf32, #tpu.memory_space<vmem>>, vector<18x1xf32>
    %c120 = arith.constant 120 : index
    %c0_87 = arith.constant 0 : index
    %310 = vector.load %arg2[%c120, %c0_87] : memref<264x128xf32, #tpu.memory_space<vmem>>, vector<4x1xf32>
    %c120_88 = arith.constant 120 : index
    %c1_89 = arith.constant 1 : index
    %311 = vector.load %arg2[%c120_88, %c1_89] : memref<264x128xf32, #tpu.memory_space<vmem>>, vector<4x1xf32>
    %c128 = arith.constant 128 : index
    %c0_90 = arith.constant 0 : index
    %312 = vector.load %arg2[%c128, %c0_90] : memref<264x128xf32, #tpu.memory_space<vmem>>, vector<2x1xf32>
    %c136 = arith.constant 136 : index
    %c0_91 = arith.constant 0 : index
    %313 = vector.load %arg2[%c136, %c0_91] : memref<264x128xf32, #tpu.memory_space<vmem>>, vector<128x128xf32>
    %314 = vector.extract_strided_slice %295 {offsets = [0, 0], sizes = [3, 64], strides = [1, 1]} : vector<6x64xf32> to vector<3x64xf32>
    %315 = vector.extract_strided_slice %295 {offsets = [3, 0], sizes = [3, 64], strides = [1, 1]} : vector<6x64xf32> to vector<3x64xf32>
    %316 = tpu.concatenate %314, %315 in 1 : vector<3x64xf32>, vector<3x64xf32> -> vector<3x128xf32>
    %cst_92 = arith.constant dense<0.000000e+00> : vector<3x128xf32>
    %317 = tpu.matmul %316, %313, %cst_92 {dimension_numbers = #tpu.dot_dimension_numbers<[1], [0], [0], [1], [0, 0, 1, 1], [], []>} : vector<3x128xf32>, vector<128x128xf32>, vector<3x128xf32> -> vector<3x128xf32>
    %318 = vector.extract_strided_slice %317 {offsets = [0, 0], sizes = [3, 64], strides = [1, 1]} : vector<3x128xf32> to vector<3x64xf32>
    %319 = vector.extract_strided_slice %317 {offsets = [0, 64], sizes = [3, 64], strides = [1, 1]} : vector<3x128xf32> to vector<3x64xf32>
    %320 = tpu.concatenate %318, %319 in 0 : vector<3x64xf32>, vector<3x64xf32> -> vector<6x64xf32>
    %cst_93 = arith.constant dense<0.000000e+00> : vector<4x64xf32>
    %321 = tpu.matmul %304, %320, %cst_93 {dimension_numbers = #tpu.dot_dimension_numbers<[1], [0], [0], [1], [0, 0, 1, 1], [], []>} : vector<4x6xf32>, vector<6x64xf32>, vector<4x64xf32> -> vector<4x64xf32>
    %322 = vector.broadcast %310 : vector<4x1xf32> to vector<4x64xf32>
    %323 = arith.addf %321, %322 : vector<4x64xf32>
    %c0_94 = arith.constant 0 : index
    %c0_95 = arith.constant 0 : index
    %c0_96 = arith.constant 0 : index
    %324 = vector.load %arg4[%c0_94, %c0_95, %c0_96] : memref<8x3x64xf32, #tpu.memory_space<vmem>>, vector<1x3x64xf32>
    %325 = vector.shape_cast %324 : vector<1x3x64xf32> to vector<3x64xf32>
    %c0_97 = arith.constant 0 : index
    %c0_98 = arith.constant 0 : index
    %c0_99 = arith.constant 0 : index
    %326 = vector.load %arg5[%c0_97, %c0_98, %c0_99] : memref<8x3x64xf32, #tpu.memory_space<vmem>>, vector<1x3x64xf32>
    %327 = vector.shape_cast %326 : vector<1x3x64xf32> to vector<3x64xf32>
    %328 = tpu.concatenate %325, %327 in 0 : vector<3x64xf32>, vector<3x64xf32> -> vector<6x64xf32>
    %cst_100 = arith.constant dense<0.000000e+00> : vector<4x64xf32>
    %329 = tpu.matmul %305, %328, %cst_100 {dimension_numbers = #tpu.dot_dimension_numbers<[1], [0], [0], [1], [0, 0, 1, 1], [], []>} : vector<4x6xf32>, vector<6x64xf32>, vector<4x64xf32> -> vector<4x64xf32>
    %330 = arith.addf %329, %323 : vector<4x64xf32>
    %331 = math.tanh %330 : vector<4x64xf32>
    %332 = vector.broadcast %311 : vector<4x1xf32> to vector<4x64xf32>
    %333 = arith.mulf %332, %331 : vector<4x64xf32>
    %cst_101 = arith.constant dense<0.000000e+00> : vector<64xf32>
    %334 = vector.multi_reduction <add>, %333, %cst_101 [0] : vector<4x64xf32> to vector<64xf32>
    %335 = vector.shape_cast %334 : vector<64xf32> to vector<1x64xf32>
    %c1_102 = arith.constant 1 : index
    %c0_103 = arith.constant 0 : index
    %c0_104 = arith.constant 0 : index
    %336 = vector.load %arg4[%c1_102, %c0_103, %c0_104] : memref<8x3x64xf32, #tpu.memory_space<vmem>>, vector<1x3x64xf32>
    %337 = vector.shape_cast %336 : vector<1x3x64xf32> to vector<3x64xf32>
    %c1_105 = arith.constant 1 : index
    %c0_106 = arith.constant 0 : index
    %c0_107 = arith.constant 0 : index
    %338 = vector.load %arg5[%c1_105, %c0_106, %c0_107] : memref<8x3x64xf32, #tpu.memory_space<vmem>>, vector<1x3x64xf32>
    %339 = vector.shape_cast %338 : vector<1x3x64xf32> to vector<3x64xf32>
    %340 = tpu.concatenate %337, %339 in 0 : vector<3x64xf32>, vector<3x64xf32> -> vector<6x64xf32>
    %cst_108 = arith.constant dense<0.000000e+00> : vector<4x64xf32>
    %341 = tpu.matmul %305, %340, %cst_108 {dimension_numbers = #tpu.dot_dimension_numbers<[1], [0], [0], [1], [0, 0, 1, 1], [], []>} : vector<4x6xf32>, vector<6x64xf32>, vector<4x64xf32> -> vector<4x64xf32>
    %342 = arith.addf %341, %323 : vector<4x64xf32>
    %343 = math.tanh %342 : vector<4x64xf32>
    %344 = vector.broadcast %311 : vector<4x1xf32> to vector<4x64xf32>
    %345 = arith.mulf %344, %343 : vector<4x64xf32>
    %cst_109 = arith.constant dense<0.000000e+00> : vector<64xf32>
    %346 = vector.multi_reduction <add>, %345, %cst_109 [0] : vector<4x64xf32> to vector<64xf32>
    %347 = vector.shape_cast %346 : vector<64xf32> to vector<1x64xf32>
    %c2_110 = arith.constant 2 : index
    %c0_111 = arith.constant 0 : index
    %c0_112 = arith.constant 0 : index
    %348 = vector.load %arg4[%c2_110, %c0_111, %c0_112] : memref<8x3x64xf32, #tpu.memory_space<vmem>>, vector<1x3x64xf32>
    %349 = vector.shape_cast %348 : vector<1x3x64xf32> to vector<3x64xf32>
    %c2_113 = arith.constant 2 : index
    %c0_114 = arith.constant 0 : index
    %c0_115 = arith.constant 0 : index
    %350 = vector.load %arg5[%c2_113, %c0_114, %c0_115] : memref<8x3x64xf32, #tpu.memory_space<vmem>>, vector<1x3x64xf32>
    %351 = vector.shape_cast %350 : vector<1x3x64xf32> to vector<3x64xf32>
    %352 = tpu.concatenate %349, %351 in 0 : vector<3x64xf32>, vector<3x64xf32> -> vector<6x64xf32>
    %cst_116 = arith.constant dense<0.000000e+00> : vector<4x64xf32>
    %353 = tpu.matmul %305, %352, %cst_116 {dimension_numbers = #tpu.dot_dimension_numbers<[1], [0], [0], [1], [0, 0, 1, 1], [], []>} : vector<4x6xf32>, vector<6x64xf32>, vector<4x64xf32> -> vector<4x64xf32>
    %354 = arith.addf %353, %323 : vector<4x64xf32>
    %355 = math.tanh %354 : vector<4x64xf32>
    %356 = vector.broadcast %311 : vector<4x1xf32> to vector<4x64xf32>
    %357 = arith.mulf %356, %355 : vector<4x64xf32>
    %cst_117 = arith.constant dense<0.000000e+00> : vector<64xf32>
    %358 = vector.multi_reduction <add>, %357, %cst_117 [0] : vector<4x64xf32> to vector<64xf32>
    %359 = vector.shape_cast %358 : vector<64xf32> to vector<1x64xf32>
    %c3_118 = arith.constant 3 : index
    %c0_119 = arith.constant 0 : index
    %c0_120 = arith.constant 0 : index
    %360 = vector.load %arg4[%c3_118, %c0_119, %c0_120] : memref<8x3x64xf32, #tpu.memory_space<vmem>>, vector<1x3x64xf32>
    %361 = vector.shape_cast %360 : vector<1x3x64xf32> to vector<3x64xf32>
    %c3_121 = arith.constant 3 : index
    %c0_122 = arith.constant 0 : index
    %c0_123 = arith.constant 0 : index
    %362 = vector.load %arg5[%c3_121, %c0_122, %c0_123] : memref<8x3x64xf32, #tpu.memory_space<vmem>>, vector<1x3x64xf32>
    %363 = vector.shape_cast %362 : vector<1x3x64xf32> to vector<3x64xf32>
    %364 = tpu.concatenate %361, %363 in 0 : vector<3x64xf32>, vector<3x64xf32> -> vector<6x64xf32>
    %cst_124 = arith.constant dense<0.000000e+00> : vector<4x64xf32>
    %365 = tpu.matmul %305, %364, %cst_124 {dimension_numbers = #tpu.dot_dimension_numbers<[1], [0], [0], [1], [0, 0, 1, 1], [], []>} : vector<4x6xf32>, vector<6x64xf32>, vector<4x64xf32> -> vector<4x64xf32>
    %366 = arith.addf %365, %323 : vector<4x64xf32>
    %367 = math.tanh %366 : vector<4x64xf32>
    %368 = vector.broadcast %311 : vector<4x1xf32> to vector<4x64xf32>
    %369 = arith.mulf %368, %367 : vector<4x64xf32>
    %cst_125 = arith.constant dense<0.000000e+00> : vector<64xf32>
    %370 = vector.multi_reduction <add>, %369, %cst_125 [0] : vector<4x64xf32> to vector<64xf32>
    %371 = vector.shape_cast %370 : vector<64xf32> to vector<1x64xf32>
    %c4_126 = arith.constant 4 : index
    %c0_127 = arith.constant 0 : index
    %c0_128 = arith.constant 0 : index
    %372 = vector.load %arg4[%c4_126, %c0_127, %c0_128] : memref<8x3x64xf32, #tpu.memory_space<vmem>>, vector<1x3x64xf32>
    %373 = vector.shape_cast %372 : vector<1x3x64xf32> to vector<3x64xf32>
    %c4_129 = arith.constant 4 : index
    %c0_130 = arith.constant 0 : index
    %c0_131 = arith.constant 0 : index
    %374 = vector.load %arg5[%c4_129, %c0_130, %c0_131] : memref<8x3x64xf32, #tpu.memory_space<vmem>>, vector<1x3x64xf32>
    %375 = vector.shape_cast %374 : vector<1x3x64xf32> to vector<3x64xf32>
    %376 = tpu.concatenate %373, %375 in 0 : vector<3x64xf32>, vector<3x64xf32> -> vector<6x64xf32>
    %cst_132 = arith.constant dense<0.000000e+00> : vector<4x64xf32>
    %377 = tpu.matmul %305, %376, %cst_132 {dimension_numbers = #tpu.dot_dimension_numbers<[1], [0], [0], [1], [0, 0, 1, 1], [], []>} : vector<4x6xf32>, vector<6x64xf32>, vector<4x64xf32> -> vector<4x64xf32>
    %378 = arith.addf %377, %323 : vector<4x64xf32>
    %379 = math.tanh %378 : vector<4x64xf32>
    %380 = vector.broadcast %311 : vector<4x1xf32> to vector<4x64xf32>
    %381 = arith.mulf %380, %379 : vector<4x64xf32>
    %cst_133 = arith.constant dense<0.000000e+00> : vector<64xf32>
    %382 = vector.multi_reduction <add>, %381, %cst_133 [0] : vector<4x64xf32> to vector<64xf32>
    %383 = vector.shape_cast %382 : vector<64xf32> to vector<1x64xf32>
    %c5_134 = arith.constant 5 : index
    %c0_135 = arith.constant 0 : index
    %c0_136 = arith.constant 0 : index
    %384 = vector.load %arg4[%c5_134, %c0_135, %c0_136] : memref<8x3x64xf32, #tpu.memory_space<vmem>>, vector<1x3x64xf32>
    %385 = vector.shape_cast %384 : vector<1x3x64xf32> to vector<3x64xf32>
    %c5_137 = arith.constant 5 : index
    %c0_138 = arith.constant 0 : index
    %c0_139 = arith.constant 0 : index
    %386 = vector.load %arg5[%c5_137, %c0_138, %c0_139] : memref<8x3x64xf32, #tpu.memory_space<vmem>>, vector<1x3x64xf32>
    %387 = vector.shape_cast %386 : vector<1x3x64xf32> to vector<3x64xf32>
    %388 = tpu.concatenate %385, %387 in 0 : vector<3x64xf32>, vector<3x64xf32> -> vector<6x64xf32>
    %cst_140 = arith.constant dense<0.000000e+00> : vector<4x64xf32>
    %389 = tpu.matmul %305, %388, %cst_140 {dimension_numbers = #tpu.dot_dimension_numbers<[1], [0], [0], [1], [0, 0, 1, 1], [], []>} : vector<4x6xf32>, vector<6x64xf32>, vector<4x64xf32> -> vector<4x64xf32>
    %390 = arith.addf %389, %323 : vector<4x64xf32>
    %391 = math.tanh %390 : vector<4x64xf32>
    %392 = vector.broadcast %311 : vector<4x1xf32> to vector<4x64xf32>
    %393 = arith.mulf %392, %391 : vector<4x64xf32>
    %cst_141 = arith.constant dense<0.000000e+00> : vector<64xf32>
    %394 = vector.multi_reduction <add>, %393, %cst_141 [0] : vector<4x64xf32> to vector<64xf32>
    %395 = vector.shape_cast %394 : vector<64xf32> to vector<1x64xf32>
    %c6_142 = arith.constant 6 : index
    %c0_143 = arith.constant 0 : index
    %c0_144 = arith.constant 0 : index
    %396 = vector.load %arg4[%c6_142, %c0_143, %c0_144] : memref<8x3x64xf32, #tpu.memory_space<vmem>>, vector<1x3x64xf32>
    %397 = vector.shape_cast %396 : vector<1x3x64xf32> to vector<3x64xf32>
    %c6_145 = arith.constant 6 : index
    %c0_146 = arith.constant 0 : index
    %c0_147 = arith.constant 0 : index
    %398 = vector.load %arg5[%c6_145, %c0_146, %c0_147] : memref<8x3x64xf32, #tpu.memory_space<vmem>>, vector<1x3x64xf32>
    %399 = vector.shape_cast %398 : vector<1x3x64xf32> to vector<3x64xf32>
    %400 = tpu.concatenate %397, %399 in 0 : vector<3x64xf32>, vector<3x64xf32> -> vector<6x64xf32>
    %cst_148 = arith.constant dense<0.000000e+00> : vector<4x64xf32>
    %401 = tpu.matmul %305, %400, %cst_148 {dimension_numbers = #tpu.dot_dimension_numbers<[1], [0], [0], [1], [0, 0, 1, 1], [], []>} : vector<4x6xf32>, vector<6x64xf32>, vector<4x64xf32> -> vector<4x64xf32>
    %402 = arith.addf %401, %323 : vector<4x64xf32>
    %403 = math.tanh %402 : vector<4x64xf32>
    %404 = vector.broadcast %311 : vector<4x1xf32> to vector<4x64xf32>
    %405 = arith.mulf %404, %403 : vector<4x64xf32>
    %cst_149 = arith.constant dense<0.000000e+00> : vector<64xf32>
    %406 = vector.multi_reduction <add>, %405, %cst_149 [0] : vector<4x64xf32> to vector<64xf32>
    %407 = vector.shape_cast %406 : vector<64xf32> to vector<1x64xf32>
    %c7_150 = arith.constant 7 : index
    %c0_151 = arith.constant 0 : index
    %c0_152 = arith.constant 0 : index
    %408 = vector.load %arg4[%c7_150, %c0_151, %c0_152] : memref<8x3x64xf32, #tpu.memory_space<vmem>>, vector<1x3x64xf32>
    %409 = vector.shape_cast %408 : vector<1x3x64xf32> to vector<3x64xf32>
    %c7_153 = arith.constant 7 : index
    %c0_154 = arith.constant 0 : index
    %c0_155 = arith.constant 0 : index
    %410 = vector.load %arg5[%c7_153, %c0_154, %c0_155] : memref<8x3x64xf32, #tpu.memory_space<vmem>>, vector<1x3x64xf32>
    %411 = vector.shape_cast %410 : vector<1x3x64xf32> to vector<3x64xf32>
    %412 = tpu.concatenate %409, %411 in 0 : vector<3x64xf32>, vector<3x64xf32> -> vector<6x64xf32>
    %cst_156 = arith.constant dense<0.000000e+00> : vector<4x64xf32>
    %413 = tpu.matmul %305, %412, %cst_156 {dimension_numbers = #tpu.dot_dimension_numbers<[1], [0], [0], [1], [0, 0, 1, 1], [], []>} : vector<4x6xf32>, vector<6x64xf32>, vector<4x64xf32> -> vector<4x64xf32>
    %414 = arith.addf %413, %323 : vector<4x64xf32>
    %415 = math.tanh %414 : vector<4x64xf32>
    %416 = vector.broadcast %311 : vector<4x1xf32> to vector<4x64xf32>
    %417 = arith.mulf %416, %415 : vector<4x64xf32>
    %cst_157 = arith.constant dense<0.000000e+00> : vector<64xf32>
    %418 = vector.multi_reduction <add>, %417, %cst_157 [0] : vector<4x64xf32> to vector<64xf32>
    %419 = vector.shape_cast %418 : vector<64xf32> to vector<1x64xf32>
    %420 = tpu.concatenate %335, %347, %359, %371, %383, %395, %407, %419 in 0 : vector<1x64xf32>, vector<1x64xf32>, vector<1x64xf32>, vector<1x64xf32>, vector<1x64xf32>, vector<1x64xf32>, vector<1x64xf32>, vector<1x64xf32> -> vector<8x64xf32>
    %cst_158 = arith.constant dense<0xFF800000> : vector<64xf32>
    %421 = vector.multi_reduction <maximumf>, %420, %cst_158 [0] : vector<8x64xf32> to vector<64xf32>
    %422 = vector.shape_cast %421 : vector<64xf32> to vector<1x64xf32>
    %423 = vector.broadcast %422 : vector<1x64xf32> to vector<8x64xf32>
    %424 = arith.subf %420, %423 : vector<8x64xf32>
    %425 = math.exp %424 : vector<8x64xf32>
    %cst_159 = arith.constant dense<0.000000e+00> : vector<64xf32>
    %426 = vector.multi_reduction <add>, %425, %cst_159 [0] : vector<8x64xf32> to vector<64xf32>
    %427 = vector.shape_cast %426 : vector<64xf32> to vector<1x64xf32>
    %428 = tpu.reciprocal %427 {approx = true} : vector<1x64xf32> -> vector<1x64xf32>
    %429 = vector.broadcast %428 : vector<1x64xf32> to vector<8x64xf32>
    %430 = arith.mulf %425, %429 : vector<8x64xf32>
    %cst_160 = arith.constant 0.000000e+00 : f32
    %431 = vector.broadcast %cst_160 : f32 to vector<6x64xf32>
    %432 = vector.extract_strided_slice %430 {offsets = [0, 0], sizes = [1, 64], strides = [1, 1]} : vector<8x64xf32> to vector<1x64xf32>
    %433 = vector.broadcast %432 : vector<1x64xf32> to vector<6x64xf32>
    %434 = arith.mulf %433, %328 : vector<6x64xf32>
    %435 = arith.addf %431, %434 : vector<6x64xf32>
    %436 = vector.extract_strided_slice %430 {offsets = [1, 0], sizes = [1, 64], strides = [1, 1]} : vector<8x64xf32> to vector<1x64xf32>
    %437 = vector.broadcast %436 : vector<1x64xf32> to vector<6x64xf32>
    %438 = arith.mulf %437, %340 : vector<6x64xf32>
    %439 = arith.addf %435, %438 : vector<6x64xf32>
    %440 = vector.extract_strided_slice %430 {offsets = [2, 0], sizes = [1, 64], strides = [1, 1]} : vector<8x64xf32> to vector<1x64xf32>
    %441 = vector.broadcast %440 : vector<1x64xf32> to vector<6x64xf32>
    %442 = arith.mulf %441, %352 : vector<6x64xf32>
    %443 = arith.addf %439, %442 : vector<6x64xf32>
    %444 = vector.extract_strided_slice %430 {offsets = [3, 0], sizes = [1, 64], strides = [1, 1]} : vector<8x64xf32> to vector<1x64xf32>
    %445 = vector.broadcast %444 : vector<1x64xf32> to vector<6x64xf32>
    %446 = arith.mulf %445, %364 : vector<6x64xf32>
    %447 = arith.addf %443, %446 : vector<6x64xf32>
    %448 = vector.extract_strided_slice %430 {offsets = [4, 0], sizes = [1, 64], strides = [1, 1]} : vector<8x64xf32> to vector<1x64xf32>
    %449 = vector.broadcast %448 : vector<1x64xf32> to vector<6x64xf32>
    %450 = arith.mulf %449, %376 : vector<6x64xf32>
    %451 = arith.addf %447, %450 : vector<6x64xf32>
    %452 = vector.extract_strided_slice %430 {offsets = [5, 0], sizes = [1, 64], strides = [1, 1]} : vector<8x64xf32> to vector<1x64xf32>
    %453 = vector.broadcast %452 : vector<1x64xf32> to vector<6x64xf32>
    %454 = arith.mulf %453, %388 : vector<6x64xf32>
    %455 = arith.addf %451, %454 : vector<6x64xf32>
    %456 = vector.extract_strided_slice %430 {offsets = [6, 0], sizes = [1, 64], strides = [1, 1]} : vector<8x64xf32> to vector<1x64xf32>
    %457 = vector.broadcast %456 : vector<1x64xf32> to vector<6x64xf32>
    %458 = arith.mulf %457, %400 : vector<6x64xf32>
    %459 = arith.addf %455, %458 : vector<6x64xf32>
    %460 = vector.extract_strided_slice %430 {offsets = [7, 0], sizes = [1, 64], strides = [1, 1]} : vector<8x64xf32> to vector<1x64xf32>
    %461 = vector.broadcast %460 : vector<1x64xf32> to vector<6x64xf32>
    %462 = arith.mulf %461, %412 : vector<6x64xf32>
    %463 = arith.addf %459, %462 : vector<6x64xf32>
    %cst_161 = arith.constant dense<0.000000e+00> : vector<18x64xf32>
    %464 = tpu.matmul %306, %463, %cst_161 {dimension_numbers = #tpu.dot_dimension_numbers<[1], [0], [0], [1], [0, 0, 1, 1], [], []>} : vector<18x6xf32>, vector<6x64xf32>, vector<18x64xf32> -> vector<18x64xf32>
    %465 = vector.broadcast %309 : vector<18x1xf32> to vector<18x64xf32>
    %466 = arith.addf %464, %465 : vector<18x64xf32>
    %467 = vector.extract_strided_slice %308 {offsets = [0, 0], sizes = [6, 1], strides = [1, 1]} : vector<18x1xf32> to vector<6x1xf32>
    %468 = vector.extract_strided_slice %466 {offsets = [0, 0], sizes = [6, 64], strides = [1, 1]} : vector<18x64xf32> to vector<6x64xf32>
    %469 = vector.broadcast %467 : vector<6x1xf32> to vector<6x64xf32>
    %470 = arith.addf %469, %468 : vector<6x64xf32>
    %471 = arith.negf %470 : vector<6x64xf32>
    %472 = math.exp %471 : vector<6x64xf32>
    %cst_162 = arith.constant 1.000000e+00 : f32
    %473 = vector.broadcast %cst_162 : f32 to vector<6x64xf32>
    %474 = arith.addf %473, %472 : vector<6x64xf32>
    %475 = arith.divf %473, %474 : vector<6x64xf32>
    %476 = vector.extract_strided_slice %308 {offsets = [6, 0], sizes = [6, 1], strides = [1, 1]} : vector<18x1xf32> to vector<6x1xf32>
    %477 = vector.extract_strided_slice %466 {offsets = [6, 0], sizes = [6, 64], strides = [1, 1]} : vector<18x64xf32> to vector<6x64xf32>
    %478 = vector.broadcast %476 : vector<6x1xf32> to vector<6x64xf32>
    %479 = arith.addf %478, %477 : vector<6x64xf32>
    %480 = arith.negf %479 : vector<6x64xf32>
    %481 = math.exp %480 : vector<6x64xf32>
    %cst_163 = arith.constant 1.000000e+00 : f32
    %482 = vector.broadcast %cst_163 : f32 to vector<6x64xf32>
    %483 = arith.addf %482, %481 : vector<6x64xf32>
    %484 = arith.divf %482, %483 : vector<6x64xf32>
    %485 = vector.extract_strided_slice %308 {offsets = [12, 0], sizes = [6, 1], strides = [1, 1]} : vector<18x1xf32> to vector<6x1xf32>
    %486 = vector.extract_strided_slice %466 {offsets = [12, 0], sizes = [6, 64], strides = [1, 1]} : vector<18x64xf32> to vector<6x64xf32>
    %487 = arith.mulf %475, %486 : vector<6x64xf32>
    %488 = vector.broadcast %485 : vector<6x1xf32> to vector<6x64xf32>
    %489 = arith.addf %488, %487 : vector<6x64xf32>
    %490 = math.tanh %489 : vector<6x64xf32>
    %cst_164 = arith.constant 1.000000e+00 : f32
    %491 = vector.broadcast %cst_164 : f32 to vector<6x64xf32>
    %492 = arith.subf %491, %484 : vector<6x64xf32>
    %493 = arith.mulf %492, %490 : vector<6x64xf32>
    %494 = arith.mulf %484, %463 : vector<6x64xf32>
    %495 = arith.addf %493, %494 : vector<6x64xf32>
    %cst_165 = arith.constant dense<0.000000e+00> : vector<2x64xf32>
    %496 = tpu.matmul %307, %495, %cst_165 {dimension_numbers = #tpu.dot_dimension_numbers<[1], [0], [0], [1], [0, 0, 1, 1], [], []>} : vector<2x6xf32>, vector<6x64xf32>, vector<2x64xf32> -> vector<2x64xf32>
    %497 = vector.broadcast %312 : vector<2x1xf32> to vector<2x64xf32>
    %498 = arith.addf %496, %497 : vector<2x64xf32>
    %c0_166 = arith.constant 0 : index
    %c0_167 = arith.constant 0 : index
    %499 = vector.load %arg3[%c0_166, %c0_167] : memref<2x64xf32, #tpu.memory_space<vmem>>, vector<2x64xf32>
    tpu.vector_store %arg3[%c0_166, %c0_167], %498 {strides = array<i32>} : memref<2x64xf32, #tpu.memory_space<vmem>>, vector<2x64xf32>,
    return
  }
  func.func @transform_0(%arg0: i32) -> (i32, i32) {
    %c0_i32 = arith.constant 0 : i32
    %c0_i32_0 = arith.constant 0 : i32
    %c0_i32_1 = arith.constant 0 : i32
    return %c0_i32, %c0_i32_0 : i32, i32
  }
  func.func @transform_1(%arg0: i32) -> (i32, i32) {
    %c0_i32 = arith.constant 0 : i32
    %c0_i32_0 = arith.constant 0 : i32
    %c0_i32_1 = arith.constant 0 : i32
    return %c0_i32, %c0_i32_0 : i32, i32
  }
  func.func @transform_2(%arg0: i32) -> (i32, i32) {
    %c0_i32 = arith.constant 0 : i32
    %c0_i32_0 = arith.constant 0 : i32
    %c0_i32_1 = arith.constant 0 : i32
    return %c0_i32, %c0_i32_0 : i32, i32
  }
}

</mosaic_0001>

<llo_original>
// kernel: tpu_custom_call.1
$region0: #{tpu_custom_call.1}
  #allocation0 [shape = 'u32[]', space=smem, size = 0x4, offset = 0x4, fixed_abs, tag = 'smem constant byte address 0x4 - core index']
  #allocation1 [shape = 'u32[144,128]{1,0:T(1,128)}', space=vmem, size = 0x12000, scoped, tag = 'internal scratch']
  #allocation2 [shape = 'f32[8,3,64]{2,1,0:T(4,128)}', space=vmem, size = 0x4000, scoped, tag = 'scratch operand']
  #allocation3 [shape = 'f32[8,3,64]{2,1,0:T(4,128)}', space=vmem, size = 0x4000, scoped, tag = 'scratch operand']
  %s0 = inlined_call_operand.hbm [shape: f32[21,512], index: 0, kind: input, shape index: {}]
  %s1 = inlined_call_operand.hbm [shape: f32[264,128], index: 1, kind: input, shape index: {}]
  %s2 = inlined_call_operand.hbm [shape: f32[2,64], index: 2, kind: output, shape index: {}]
  %s3 = sld [smem:[#allocation0]]
  $region26: #{tpu_custom_call.1} parent=0
    _
  %s5 = ssub.s32 1, %s3
  %s6 = scalar_select 0, %s5, %s3
  $region1: #{tpu_custom_call.1} parent=0
    #allocation4 [shape = 'u8[49152]{0}', space=vmem, size = 0xc000, scoped, tag = 'input window, operand 0, single buffered']
    #allocation5 [shape = 's32[1]{0}', space=sflag, size = 0x4, scoped, tag = 'scoped memory for tpu_custom_call.1']
    #allocation6 [shape = 's32[1]{0}', space=sflag, size = 0x4, scoped, tag = 'scoped memory for tpu_custom_call.1']
    #allocation7 [shape = 'u8[135168]{0}', space=vmem, size = 0x21000, scoped, tag = 'input window, operand 1, single buffered']
    #allocation8 [shape = 's32[1]{0}', space=sflag, size = 0x4, scoped, tag = 'scoped memory for tpu_custom_call.1']
    #allocation9 [shape = 'u8[1024]{0}', space=vmem, size = 0x400, scoped, tag = 'output window, operand 0, single buffered']
    %7 = vsyncpa [#allocation5], 0
    %8 = vsyncpa [#allocation8], 0
    %9 = vsyncpa [#allocation6], 0
    // Predicated region
    $region2: #{tpu_custom_call.1} parent=1 // pred_check
      _
    $region3: #{tpu_custom_call.1} parent=1 // pred_check_branch
      %11 = sbr.rel (0) target = $region5
    $region4: #{tpu_custom_call.1} parent=1 // pred_region
      %s13 = ssub.s32 1536, 1536
      %14 = vsyncadd [#allocation5], %s13
      %s15 = sshll.u32 [#allocation4], 4
      %s16 = int_to_ptr.vmem [resolvable:$true] %s15
      %21 = dma.hbm_to_vmem [thread:$0]  %s0, 1536, %s16, [#allocation5], 512, 512, 32
    $region5: #{tpu_custom_call.1} parent=1 // pred_fallthru
      _
    // Predicated region
    $region6: #{tpu_custom_call.1} parent=1 // pred_check
      _
    $region7: #{tpu_custom_call.1} parent=1 // pred_check_branch
      %23 = sbr.rel (0) target = $region9
    $region8: #{tpu_custom_call.1} parent=1 // pred_region
      %s25 = ssub.s32 4224, 4224
      %26 = vsyncadd [#allocation8], %s25
      %s27 = sshll.u32 [#allocation7], 4
      %s28 = int_to_ptr.vmem [resolvable:$true] %s27
      %33 = dma.hbm_to_vmem [thread:$0]  %s1, 4224, %s28, [#allocation8], 128, 128, 8
    $region9: #{tpu_custom_call.1} parent=1 // pred_fallthru
      _
    // Predicated region
    $region10: #{tpu_custom_call.1} parent=1 // pred_check
      _
    $region11: #{tpu_custom_call.1} parent=1 // pred_check_branch
      %35 = sbr.rel (0) target = $region13
    $region12: #{tpu_custom_call.1} parent=1 // pred_region
      %36 = dma.done [#allocation5], 1536
    $region13: #{tpu_custom_call.1} parent=1 // pred_fallthru
      _
    // Predicated region
    $region14: #{tpu_custom_call.1} parent=1 // pred_check
      _
    $region15: #{tpu_custom_call.1} parent=1 // pred_check_branch
      %38 = sbr.rel (0) target = $region17
    $region16: #{tpu_custom_call.1} parent=1 // pred_region
      %39 = dma.done [#allocation8], 4224
    $region17: #{tpu_custom_call.1} parent=1 // pred_fallthru
      _
    %v40 = vld [vmem:[#allocation7] sm:$0xff]
    %v41 = vld [vmem:[#allocation7 + $0x8] sm:$0xff]
    %v42 = vld [vmem:[#allocation7 + $0x10] sm:$0x3]
    %v43 = vld [vmem:[#allocation7 + $0x18] sm:$0xff]
    %v44 = vld [vmem:[#allocation7 + $0x20] sm:$0xff]
    %v45 = vld [vmem:[#allocation7 + $0x28] sm:$0x3]
    %v46 = vld [vmem:[#allocation7 + $0x60] sm:$0xff]
    %v47 = vld [vmem:[#allocation7 + $0x68] sm:$0xff]
    %v48 = vld [vmem:[#allocation7 + $0x70] sm:$0x3]
    %50 = vset.pattern.permute.xlu0 0
    %51 = vperm.xlu0 %50, %v46
    %v52 = vpop.permute.xlu0 %51
    %55 = vset.pattern.permute.xlu0 0
    %56 = vperm.xlu0 %55, %v47
    %v57 = vpop.permute.xlu0 %56
    %60 = vset.pattern.permute.xlu0 0
    %61 = vperm.xlu0 %60, %v48
    %v62 = vpop.permute.xlu0 %61
    %v64 = vld [vmem:[#allocation4] sm:$0xff]
    %v65 = vld [vmem:[#allocation4 + $0x8] sm:$0xff]
    %v66 = vld [vmem:[#allocation4 + $0x10] sm:$0xff]
    %v67 = vld [vmem:[#allocation4 + $0x18] sm:$0xff]
    %v68 = vld [vmem:[#allocation4 + $0x20] sm:$0xff]
    %v69 = vld [vmem:[#allocation4 + $0x28] sm:$0xff]
    %v70 = vld [vmem:[#allocation4 + $0x30] sm:$0xff]
    %v71 = vld [vmem:[#allocation4 + $0x38] sm:$0xff]
    %v72 = vld [vmem:[#allocation4 + $0x40] sm:$0x1f]
    %v73 = vld [vmem:[#allocation4 + $0x48] sm:$0x1f]
    %v74 = vld [vmem:[#allocation4 + $0x50] sm:$0x1f]
    %v75 = vld [vmem:[#allocation4 + $0x58] sm:$0x1f]
    %vm76 = vcmask 171008
    %v78 = vsel %vm76, %v40, 0
    %v81 = vsel %vm76, %v41, 0
    %v84 = vsel %vm76, %v42, 0
    %vm86 = vcmask 1044480
    %v88 = vsel %vm86, %v72, 0
    %v91 = vsel %vm86, %v73, 0
    %v94 = vsel %vm86, %v74, 0
    %v97 = vsel %vm86, %v75, 0
    %99 = vmatprep.subr.mxu0 %v65
    %100 = vmatpush1.msra.mxu0 %v64
    %101 = vmatprep.subr.mxu0 %v69
    %102 = vmatpush1.msra.mxu0 %v68
    %103 = vmatprep.subr.mxu0 %v91
    %104 = vmatpush1.msra.mxu0 %v88
    %105 = vmatprep.subr.mxu0 0.0
    %106 = vmatpush1.msra.mxu0 0.0
    %107 = vmatprep.subr.mxu0 0.0
    %108 = vmatpush1.msra.mxu0 0.0
    %109 = vmatprep.subr.mxu0 0.0
    %110 = vmatpush1.msra.mxu0 0.0
    %111 = vmatprep.subr.mxu0 0.0
    %112 = vmatpush1.msra.mxu0 0.0
    %113 = vmatprep.subr.mxu0 0.0
    %114 = vmatpush1.msra.mxu0 0.0
    %115 = vmatprep.subr.mxu0 0.0
    %116 = vmatpush1.msra.mxu0 0.0
    %117 = vmatprep.subr.mxu0 0.0
    %118 = vmatpush1.msra.mxu0 0.0
    %119 = vmatprep.subr.mxu0 0.0
    %120 = vmatpush1.msra.mxu0 0.0
    %121 = vmatprep.subr.mxu0 0.0
    %122 = vmatpush1.msra.mxu0 0.0
    %123 = vmatprep.subr.mxu0 0.0
    %124 = vmatpush1.msra.mxu0 0.0
    %125 = vmatprep.subr.mxu0 0.0
    %126 = vmatpush1.msra.mxu0 0.0
    %127 = vmatprep.subr.mxu0 0.0
    %128 = vmatpush1.msra.mxu0 0.0
    %129 = vmatprep.subr.mxu0 0.0
    %130 = vmatpush1.msra.mxu0 0.0
    %131 = vmatprep.subr.mxu0 0.0
    %132 = vmatpush1.msra.mxu0 0.0
    %133 = vmatprep.subr.mxu0 0.0
    %134 = vmatpush1.msra.mxu0 0.0
    %135 = vmatprep.subr.mxu0 0.0
    %136 = vmatpush1.msra.mxu0 0.0
    %137 = vmatprep.subr.mxu0 0.0
    %138 = vmatpush1.msra.mxu0 0.0
    %139 = vmatprep.subr.mxu0 0.0
    %140 = vmatpush1.msra.mxu0 0.0
    %141 = vmatprep.subr.mxu0 0.0
    %142 = vmatpush1.msra.mxu0 0.0
    %143 = vmatprep.subr.mxu0 0.0
    %144 = vmatpush1.msra.mxu0 0.0
    %145 = vmatprep.subr.mxu0 0.0
    %146 = vmatpush1.msra.mxu0 0.0
    %147 = vmatprep.subr.mxu0 0.0
    %148 = vmatpush1.msra.mxu0 0.0
    %149 = vmatprep.subr.mxu0 0.0
    %150 = vmatpush1.msra.mxu0 0.0
    %151 = vmatprep.subr.mxu0 0.0
    %152 = vmatpush1.msra.mxu0 0.0
    %153 = vmatprep.subr.mxu0 0.0
    %154 = vmatpush1.msra.mxu0 0.0
    %155 = vmatprep.subr.mxu0 0.0
    %156 = vmatpush1.msra.mxu0 0.0
    %157 = vmatprep.subr.mxu0 0.0
    %158 = vmatpush1.msra.mxu0 0.0
    %159 = vmatprep.subr.mxu0 0.0
    %160 = vmatpush1.msra.mxu0 0.0
    %161 = vmatprep.subr.mxu0 0.0
    %162 = vmatpush1.msra.mxu0 0.0
    %163 = vmatprep.mubr.f32.mxu0 0.0
    %164 = vmatmul.mubr.f32.gmra.mrb[0].mxu0 %v78
    %v165 = vpop.f32.mrb[0].mxu0
    %v166 = vadd.f32 0.0, %v165
    %v167 = vpop.f32.mrb[0].mxu0
    %v168 = vadd.f32 0.0, %v167
    %169 = vmatprep.mubr.f32.mxu0 0.0
    %170 = vmatmul.mubr.f32.gmra.mrb[0].mxu0 %v81
    %v171 = vpop.f32.mrb[0].mxu0
    %v172 = vadd.f32 0.0, %v171
    %v173 = vpop.f32.mrb[0].mxu0
    %v174 = vadd.f32 0.0, %v173
    %175 = vmatprep.mubr.f32.mxu0 0.0
    %176 = vmatmul.mubr.f32.gmra.mrb[0].mxu0 %v84
    %v177 = vpop.f32.mrb[0].mxu0
    %v178 = vadd.f32 0.0, %v177
    %v179 = vpop.f32.mrb[0].mxu0
    %v180 = vadd.f32 0.0, %v179
    %181 = vdwg.mxu0
    %182 = vmatprep.subr.mxu0 %v67
    %183 = vmatpush1.msra.mxu0 %v66
    %184 = vmatprep.subr.mxu0 %v71
    %185 = vmatpush1.msra.mxu0 %v70
    %186 = vmatprep.subr.mxu0 %v97
    %187 = vmatpush1.msra.mxu0 %v94
    %188 = vmatprep.subr.mxu0 0.0
    %189 = vmatpush1.msra.mxu0 0.0
    %190 = vmatprep.subr.mxu0 0.0
    %191 = vmatpush1.msra.mxu0 0.0
    %192 = vmatprep.subr.mxu0 0.0
    %193 = vmatpush1.msra.mxu0 0.0
    %194 = vmatprep.subr.mxu0 0.0
    %195 = vmatpush1.msra.mxu0 0.0
    %196 = vmatprep.subr.mxu0 0.0
    %197 = vmatpush1.msra.mxu0 0.0
    %198 = vmatprep.subr.mxu0 0.0
    %199 = vmatpush1.msra.mxu0 0.0
    %200 = vmatprep.subr.mxu0 0.0
    %201 = vmatpush1.msra.mxu0 0.0
    %202 = vmatprep.subr.mxu0 0.0
    %203 = vmatpush1.msra.mxu0 0.0
    %204 = vmatprep.subr.mxu0 0.0
    %205 = vmatpush1.msra.mxu0 0.0
    %206 = vmatprep.subr.mxu0 0.0
    %207 = vmatpush1.msra.mxu0 0.0
    %208 = vmatprep.subr.mxu0 0.0
    %209 = vmatpush1.msra.mxu0 0.0
    %210 = vmatprep.subr.mxu0 0.0
    %211 = vmatpush1.msra.mxu0 0.0
    %212 = vmatprep.subr.mxu0 0.0
    %213 = vmatpush1.msra.mxu0 0.0
    %214 = vmatprep.subr.mxu0 0.0
    %215 = vmatpush1.msra.mxu0 0.0
    %216 = vmatprep.subr.mxu0 0.0
    %217 = vmatpush1.msra.mxu0 0.0
    %218 = vmatprep.subr.mxu0 0.0
    %219 = vmatpush1.msra.mxu0 0.0
    %220 = vmatprep.subr.mxu0 0.0
    %221 = vmatpush1.msra.mxu0 0.0
    %222 = vmatprep.subr.mxu0 0.0
    %223 = vmatpush1.msra.mxu0 0.0
    %224 = vmatprep.subr.mxu0 0.0
    %225 = vmatpush1.msra.mxu0 0.0
    %226 = vmatprep.subr.mxu0 0.0
    %227 = vmatpush1.msra.mxu0 0.0
    %228 = vmatprep.subr.mxu0 0.0
    %229 = vmatpush1.msra.mxu0 0.0
    %230 = vmatprep.subr.mxu0 0.0
    %231 = vmatpush1.msra.mxu0 0.0
    %232 = vmatprep.subr.mxu0 0.0
    %233 = vmatpush1.msra.mxu0 0.0
    %234 = vmatprep.subr.mxu0 0.0
    %235 = vmatpush1.msra.mxu0 0.0
    %236 = vmatprep.subr.mxu0 0.0
    %237 = vmatpush1.msra.mxu0 0.0
    %238 = vmatprep.subr.mxu0 0.0
    %239 = vmatpush1.msra.mxu0 0.0
    %240 = vmatprep.subr.mxu0 0.0
    %241 = vmatpush1.msra.mxu0 0.0
    %242 = vmatprep.subr.mxu0 0.0
    %243 = vmatpush1.msra.mxu0 0.0
    %244 = vmatprep.subr.mxu0 0.0
    %245 = vmatpush1.msra.mxu0 0.0
    %246 = vmatprep.mubr.f32.mxu0 0.0
    %247 = vmatmul.mubr.f32.gmra.mrb[0].mxu0 %v78
    %v248 = vpop.f32.mrb[0].mxu0
    %v249 = vadd.f32 0.0, %v248
    %v250 = vpop.f32.mrb[0].mxu0
    %v251 = vadd.f32 0.0, %v250
    %252 = vmatprep.mubr.f32.mxu0 0.0
    %253 = vmatmul.mubr.f32.gmra.mrb[0].mxu0 %v81
    %v254 = vpop.f32.mrb[0].mxu0
    %v255 = vadd.f32 0.0, %v254
    %v256 = vpop.f32.mrb[0].mxu0
    %v257 = vadd.f32 0.0, %v256
    %258 = vmatprep.mubr.f32.mxu0 0.0
    %259 = vmatmul.mubr.f32.gmra.mrb[0].mxu0 %v84
    %v260 = vpop.f32.mrb[0].mxu0
    %v261 = vadd.f32 0.0, %v260
    %v262 = vpop.f32.mrb[0].mxu0
    %v263 = vadd.f32 0.0, %v262
    %264 = vdwg.mxu0
    %vm265 = vcmask 48128
    %v267 = vsel %vm265, %v43, 0
    %v270 = vsel %vm265, %v44, 0
    %v273 = vsel %vm265, %v45, 0
    %vm275 = vcmask 1045504
    %v277 = vsel %vm275, 0.0, 0
    %279 = vmatprep.subr.mxu0 0.0
    %280 = vmatpush1.msra.mxu0 %v277
    %281 = vmatprep.subr.mxu0 0.0
    %282 = vmatpush1.msra.mxu0 0.0
    %283 = vmatprep.subr.mxu0 0.0
    %284 = vmatpush1.msra.mxu0 0.0
    %285 = vmatprep.subr.mxu0 0.0
    %286 = vmatpush1.msra.mxu0 0.0
    %287 = vmatprep.subr.mxu0 0.0
    %288 = vmatpush1.msra.mxu0 0.0
    %289 = vmatprep.subr.mxu0 0.0
    %290 = vmatpush1.msra.mxu0 0.0
    %291 = vmatprep.subr.mxu0 0.0
    %292 = vmatpush1.msra.mxu0 0.0
    %293 = vmatprep.subr.mxu0 0.0
    %294 = vmatpush1.msra.mxu0 0.0
    %295 = vmatprep.subr.mxu0 0.0
    %296 = vmatpush1.msra.mxu0 0.0
    %297 = vmatprep.subr.mxu0 0.0
    %298 = vmatpush1.msra.mxu0 0.0
    %299 = vmatprep.subr.mxu0 0.0
    %300 = vmatpush1.msra.mxu0 0.0
    %301 = vmatprep.subr.mxu0 0.0
    %302 = vmatpush1.msra.mxu0 0.0
    %303 = vmatprep.subr.mxu0 0.0
    %304 = vmatpush1.msra.mxu0 0.0
    %305 = vmatprep.subr.mxu0 0.0
    %306 = vmatpush1.msra.mxu0 0.0
    %307 = vmatprep.subr.mxu0 0.0
    %308 = vmatpush1.msra.mxu0 0.0
    %309 = vmatprep.subr.mxu0 0.0
    %310 = vmatpush1.msra.mxu0 0.0
    %311 = vmatprep.subr.mxu0 0.0
    %312 = vmatpush1.msra.mxu0 0.0
    %313 = vmatprep.subr.mxu0 0.0
    %314 = vmatpush1.msra.mxu0 0.0
    %315 = vmatprep.subr.mxu0 0.0
    %316 = vmatpush1.msra.mxu0 0.0
    %317 = vmatprep.subr.mxu0 0.0
    %318 = vmatpush1.msra.mxu0 0.0
    %319 = vmatprep.subr.mxu0 0.0
    %320 = vmatpush1.msra.mxu0 0.0
    %321 = vmatprep.subr.mxu0 0.0
    %322 = vmatpush1.msra.mxu0 0.0
    %323 = vmatprep.subr.mxu0 0.0
    %324 = vmatpush1.msra.mxu0 0.0
    %325 = vmatprep.subr.mxu0 0.0
    %326 = vmatpush1.msra.mxu0 0.0
    %327 = vmatprep.subr.mxu0 0.0
    %328 = vmatpush1.msra.mxu0 0.0
    %329 = vmatprep.subr.mxu0 0.0
    %330 = vmatpush1.msra.mxu0 0.0
    %331 = vmatprep.subr.mxu0 0.0
    %332 = vmatpush1.msra.mxu0 0.0
    %333 = vmatprep.subr.mxu0 0.0
    %334 = vmatpush1.msra.mxu0 0.0
    %335 = vmatprep.subr.mxu0 0.0
    %336 = vmatpush1.msra.mxu0 0.0
    %337 = vmatprep.subr.mxu0 0.0
    %338 = vmatpush1.msra.mxu0 0.0
    %339 = vmatprep.subr.mxu0 0.0
    %340 = vmatpush1.msra.mxu0 0.0
    %341 = vmatprep.subr.mxu0 0.0
    %342 = vmatpush1.msra.mxu0 0.0
    %343 = vmatprep.mubr.f32.mxu0 0.0
    %344 = vmatmul.mubr.f32.gmra.mrb[0].mxu0 %v267
    %v345 = vpop.f32.mrb[0].mxu0
    %v346 = vadd.f32 %v52, %v345
    %v347 = vpop.f32.mrb[0].mxu0
    %348 = vmatprep.mubr.f32.mxu0 0.0
    %349 = vmatmul.mubr.f32.gmra.mrb[0].mxu0 %v270
    %v350 = vpop.f32.mrb[0].mxu0
    %v351 = vadd.f32 %v57, %v350
    %v352 = vpop.f32.mrb[0].mxu0
    %353 = vmatprep.mubr.f32.mxu0 0.0
    %354 = vmatmul.mubr.f32.gmra.mrb[0].mxu0 %v273
    %v355 = vpop.f32.mrb[0].mxu0
    %v356 = vadd.f32 %v62, %v355
    %v357 = vpop.f32.mrb[0].mxu0
    %358 = vdwg.mxu0
    %v359 = vadd.f32 %v166, %v346
    %v360 = vxor.u32 %v359, 2147483648
    %v361 = vmul.f32 %v360, 1.442695
    %v362 = vpow.pop %v361
    %v363 = vadd.f32 %v362, 1.0
    %v364 = vrcp.pop %v363
    %v365 = vmul.f32 1.0, %v364
    %v366 = vadd.f32 %v172, %v351
    %v367 = vxor.u32 %v366, 2147483648
    %v368 = vmul.f32 %v367, 1.442695
    %v369 = vpow.pop %v368
    %v370 = vadd.f32 %v369, 1.0
    %v371 = vrcp.pop %v370
    %v372 = vmul.f32 1.0, %v371
    %vm375 = vcmask 1043456
    %v376 = vrot.slane %v351, 4
    %v377 = vrot.slane %v356, 4
    %v378 = vsel %vm375, %v376, %v377
    %v380 = vmul.f32 %v365, %v378
    %v382 = vrot.slane %v380, 4
    %v384 = vadd.f32 %v172, %v382
    %v385 = vadd.f32 %v178, %v382
    %v386 = vtanh.pop %v384
    %v387 = vtanh.pop %v385
    %v388 = vsub.f32 1.0, %v365
    %v389 = vsub.f32 1.0, %v372
    %vm392 = vcmask 1041408
    %v393 = vrot.slane %v386, 6
    %v394 = vrot.slane %v387, 6
    %v395 = vsel %vm392, %v393, %v394
    %v398 = vmul.f32 %v388, %v393
    %v399 = vmul.f32 %v389, %v395
    %v400 = vmul.f32 %v365, 0.0
    %v401 = vmul.f32 %v372, 0.0
    %v402 = vadd.f32 %v398, %v400
    %v403 = vadd.f32 %v399, %v401
    %vm404 = vcmask 523270
    %405 = vst.msk [vmem:[#allocation2 - $0x6] sm:$0xc0] %vm404, %v402
    %vm406 = vcmask 516096
    %407 = vst.msk [vmem:[#allocation2 + $0x2] sm:$0x1] %vm406, %v403
    %s408 = scalar_lea.vmem [#allocation3], 28
    %vm409 = vcmask 519169
    %410 = vst.msk [vmem:[%s408 - $0x1] sm:$0xe] %vm409, %v403
    %v413 = vrot.slane %v402, 6
    %v414 = vrot.slane %v403, 6
    %v415 = vsel %vm392, %v413, %v414
    %v416 = vsel %vm275, %v415, 0
    %418 = vmatprep.subr.mxu0 0.0
    %419 = vmatpush1.msra.mxu0 %v416
    %420 = vmatprep.subr.mxu0 0.0
    %421 = vmatpush1.msra.mxu0 0.0
    %422 = vmatprep.subr.mxu0 0.0
    %423 = vmatpush1.msra.mxu0 0.0
    %424 = vmatprep.subr.mxu0 0.0
    %425 = vmatpush1.msra.mxu0 0.0
    %426 = vmatprep.subr.mxu0 0.0
    %427 = vmatpush1.msra.mxu0 0.0
    %428 = vmatprep.subr.mxu0 0.0
    %429 = vmatpush1.msra.mxu0 0.0
    %430 = vmatprep.subr.mxu0 0.0
    %431 = vmatpush1.msra.mxu0 0.0
    %432 = vmatprep.subr.mxu0 0.0
    %433 = vmatpush1.msra.mxu0 0.0
    %434 = vmatprep.subr.mxu0 0.0
    %435 = vmatpush1.msra.mxu0 0.0
    %436 = vmatprep.subr.mxu0 0.0
    %437 = vmatpush1.msra.mxu0 0.0
    %438 = vmatprep.subr.mxu0 0.0
    %439 = vmatpush1.msra.mxu0 0.0
    %440 = vmatprep.subr.mxu0 0.0
    %441 = vmatpush1.msra.mxu0 0.0
    %442 = vmatprep.subr.mxu0 0.0
    %443 = vmatpush1.msra.mxu0 0.0
    %444 = vmatprep.subr.mxu0 0.0
    %445 = vmatpush1.msra.mxu0 0.0
    %446 = vmatprep.subr.mxu0 0.0
    %447 = vmatpush1.msra.mxu0 0.0
    %448 = vmatprep.subr.mxu0 0.0
    %449 = vmatpush1.msra.mxu0 0.0
    %450 = vmatprep.subr.mxu0 0.0
    %451 = vmatpush1.msra.mxu0 0.0
    %452 = vmatprep.subr.mxu0 0.0
    %453 = vmatpush1.msra.mxu0 0.0
    %454 = vmatprep.subr.mxu0 0.0
    %455 = vmatpush1.msra.mxu0 0.0
    %456 = vmatprep.subr.mxu0 0.0
    %457 = vmatpush1.msra.mxu0 0.0
    %458 = vmatprep.subr.mxu0 0.0
    %459 = vmatpush1.msra.mxu0 0.0
    %460 = vmatprep.subr.mxu0 0.0
    %461 = vmatpush1.msra.mxu0 0.0
    %462 = vmatprep.subr.mxu0 0.0
    %463 = vmatpush1.msra.mxu0 0.0
    %464 = vmatprep.subr.mxu0 0.0
    %465 = vmatpush1.msra.mxu0 0.0
    %466 = vmatprep.subr.mxu0 0.0
    %467 = vmatpush1.msra.mxu0 0.0
    %468 = vmatprep.subr.mxu0 0.0
    %469 = vmatpush1.msra.mxu0 0.0
    %470 = vmatprep.subr.mxu0 0.0
    %471 = vmatpush1.msra.mxu0 0.0
    %472 = vmatprep.subr.mxu0 0.0
    %473 = vmatpush1.msra.mxu0 0.0
    %474 = vmatprep.subr.mxu0 0.0
    %475 = vmatpush1.msra.mxu0 0.0
    %476 = vmatprep.subr.mxu0 0.0
    %477 = vmatpush1.msra.mxu0 0.0
    %478 = vmatprep.subr.mxu0 0.0
    %479 = vmatpush1.msra.mxu0 0.0
    %480 = vmatprep.subr.mxu0 0.0
    %481 = vmatpush1.msra.mxu0 0.0
    %482 = vmatprep.mubr.f32.mxu0 0.0
    %483 = vmatmul.mubr.f32.gmra.mrb[0].mxu0 %v267
    %v484 = vpop.f32.mrb[0].mxu0
    %v485 = vadd.f32 %v52, %v484
    %v486 = vpop.f32.mrb[0].mxu0
    %487 = vmatprep.mubr.f32.mxu0 0.0
    %488 = vmatmul.mubr.f32.gmra.mrb[0].mxu0 %v270
    %v489 = vpop.f32.mrb[0].mxu0
    %v490 = vadd.f32 %v57, %v489
    %v491 = vpop.f32.mrb[0].mxu0
    %492 = vmatprep.mubr.f32.mxu0 0.0
    %493 = vmatmul.mubr.f32.gmra.mrb[0].mxu0 %v273
    %v494 = vpop.f32.mrb[0].mxu0
    %v495 = vadd.f32 %v62, %v494
    %v496 = vpop.f32.mrb[0].mxu0
    %497 = vdwg.mxu0
    %499 = vrot.lane.b32.xlu0 %v485, 64
    %v500 = vpop.permute.xlu0 %499
    %v502 = vadd.f32 %v166, %v500
    %v503 = vxor.u32 %v502, 2147483648
    %v504 = vmul.f32 %v503, 1.442695
    %v505 = vpow.pop %v504
    %v506 = vadd.f32 %v505, 1.0
    %v507 = vrcp.pop %v506
    %v508 = vmul.f32 1.0, %v507
    %510 = vrot.lane.b32.xlu0 %v490, 64
    %v511 = vpop.permute.xlu0 %510
    %v513 = vadd.f32 %v172, %v511
    %v514 = vxor.u32 %v513, 2147483648
    %v515 = vmul.f32 %v514, 1.442695
    %v516 = vpow.pop %v515
    %v517 = vadd.f32 %v516, 1.0
    %v518 = vrcp.pop %v517
    %v519 = vmul.f32 1.0, %v518
    %v521 = vrot.slane %v490, 4
    %v522 = vrot.slane %v495, 4
    %v523 = vsel %vm375, %v521, %v522
    %524 = vrot.lane.b32.xlu0 %v523, 64
    %v525 = vpop.permute.xlu0 %524
    %v527 = vmul.f32 %v508, %v525
    %v529 = vrot.slane %v527, 4
    %v531 = vadd.f32 %v172, %v529
    %v532 = vadd.f32 %v178, %v529
    %v533 = vtanh.pop %v531
    %v534 = vtanh.pop %v532
    %v535 = vsub.f32 1.0, %v508
    %v536 = vsub.f32 1.0, %v519
    %v539 = vrot.slane %v533, 6
    %v540 = vrot.slane %v534, 6
    %v541 = vsel %vm392, %v539, %v540
    %v544 = vmul.f32 %v535, %v539
    %v545 = vmul.f32 %v536, %v541
    %546 = vrot.lane.b32.xlu0 %v402, 64
    %v547 = vpop.permute.xlu0 %546
    %548 = vrot.lane.b32.xlu0 %v403, 64
    %v549 = vpop.permute.xlu0 %548
    %v552 = vmul.f32 %v508, %v547
    %v553 = vmul.f32 %v519, %v549
    %v554 = vadd.f32 %v544, %v552
    %v555 = vadd.f32 %v545, %v553
    %558 = vrot.lane.b32.xlu0 %v554, 64
    %v559 = vpop.permute.xlu0 %558
    %560 = vrot.lane.b32.xlu0 %v555, 64
    %v561 = vpop.permute.xlu0 %560
    %s564 = scalar_lea.vmem [#allocation2], 4
    %565 = vst.msk [vmem:[%s564 - $0x6] sm:$0xc0] %vm404, %v559
    %566 = vst.msk [vmem:[%s564 + $0x2] sm:$0x1] %vm406, %v561
    %s567 = scalar_lea.vmem [#allocation3], 24
    %568 = vst.msk [vmem:[%s567 - $0x1] sm:$0xe] %vm409, %v561
    %v569 = vrot.slane %v554, 6
    %v570 = vrot.slane %v555, 6
    %v571 = vsel %vm392, %v569, %v570
    %572 = vrot.lane.b32.xlu0 %v571, 64
    %v573 = vpop.permute.xlu0 %572
    %v574 = vsel %vm275, %v573, 0
    %576 = vmatprep.subr.mxu0 0.0
    %577 = vmatpush1.msra.mxu0 %v574
    %578 = vmatprep.subr.mxu0 0.0
    %579 = vmatpush1.msra.mxu0 0.0
    %580 = vmatprep.subr.mxu0 0.0
    %581 = vmatpush1.msra.mxu0 0.0
    %582 = vmatprep.subr.mxu0 0.0
    %583 = vmatpush1.msra.mxu0 0.0
    %584 = vmatprep.subr.mxu0 0.0
    %585 = vmatpush1.msra.mxu0 0.0
    %586 = vmatprep.subr.mxu0 0.0
    %587 = vmatpush1.msra.mxu0 0.0
    %588 = vmatprep.subr.mxu0 0.0
    %589 = vmatpush1.msra.mxu0 0.0
    %590 = vmatprep.subr.mxu0 0.0
    %591 = vmatpush1.msra.mxu0 0.0
    %592 = vmatprep.subr.mxu0 0.0
    %593 = vmatpush1.msra.mxu0 0.0
    %594 = vmatprep.subr.mxu0 0.0
    %595 = vmatpush1.msra.mxu0 0.0
    %596 = vmatprep.subr.mxu0 0.0
    %597 = vmatpush1.msra.mxu0 0.0
    %598 = vmatprep.subr.mxu0 0.0
    %599 = vmatpush1.msra.mxu0 0.0
    %600 = vmatprep.subr.mxu0 0.0
    %601 = vmatpush1.msra.mxu0 0.0
    %602 = vmatprep.subr.mxu0 0.0
    %603 = vmatpush1.msra.mxu0 0.0
    %604 = vmatprep.subr.mxu0 0.0
    %605 = vmatpush1.msra.mxu0 0.0
    %606 = vmatprep.subr.mxu0 0.0
    %607 = vmatpush1.msra.mxu0 0.0
    %608 = vmatprep.subr.mxu0 0.0
    %609 = vmatpush1.msra.mxu0 0.0
    %610 = vmatprep.subr.mxu0 0.0
    %611 = vmatpush1.msra.mxu0 0.0
    %612 = vmatprep.subr.mxu0 0.0
    %613 = vmatpush1.msra.mxu0 0.0
    %614 = vmatprep.subr.mxu0 0.0
    %615 = vmatpush1.msra.mxu0 0.0
    %616 = vmatprep.subr.mxu0 0.0
    %617 = vmatpush1.msra.mxu0 0.0
    %618 = vmatprep.subr.mxu0 0.0
    %619 = vmatpush1.msra.mxu0 0.0
    %620 = vmatprep.subr.mxu0 0.0
    %621 = vmatpush1.msra.mxu0 0.0
    %622 = vmatprep.subr.mxu0 0.0
    %623 = vmatpush1.msra.mxu0 0.0
    %624 = vmatprep.subr.mxu0 0.0
    %625 = vmatpush1.msra.mxu0 0.0
    %626 = vmatprep.subr.mxu0 0.0
    %627 = vmatpush1.msra.mxu0 0.0
    %628 = vmatprep.subr.mxu0 0.0
    %629 = vmatpush1.msra.mxu0 0.0
    %630 = vmatprep.subr.mxu0 0.0
    %631 = vmatpush1.msra.mxu0 0.0
    %632 = vmatprep.subr.mxu0 0.0
    %633 = vmatpush1.msra.mxu0 0.0
    %634 = vmatprep.subr.mxu0 0.0
    %635 = vmatpush1.msra.mxu0 0.0
    %636 = vmatprep.subr.mxu0 0.0
    %637 = vmatpush1.msra.mxu0 0.0
    %638 = vmatprep.subr.mxu0 0.0
    %639 = vmatpush1.msra.mxu0 0.0
    %640 = vmatprep.mubr.f32.mxu0 0.0
    %641 = vmatmul.mubr.f32.gmra.mrb[0].mxu0 %v267
    %v642 = vpop.f32.mrb[0].mxu0
    %v643 = vadd.f32 %v52, %v642
    %v644 = vpop.f32.mrb[0].mxu0
    %645 = vmatprep.mubr.f32.mxu0 0.0
    %646 = vmatmul.mubr.f32.gmra.mrb[0].mxu0 %v270
    %v647 = vpop.f32.mrb[0].mxu0
    %v648 = vadd.f32 %v57, %v647
    %v649 = vpop.f32.mrb[0].mxu0
    %650 = vmatprep.mubr.f32.mxu0 0.0
    %651 = vmatmul.mubr.f32.gmra.mrb[0].mxu0 %v273
    %v652 = vpop.f32.mrb[0].mxu0
    %v653 = vadd.f32 %v62, %v652
    %v654 = vpop.f32.mrb[0].mxu0
    %655 = vdwg.mxu0
    %v656 = vadd.f32 %v168, %v643
    %v657 = vxor.u32 %v656, 2147483648
    %v658 = vmul.f32 %v657, 1.442695
    %v659 = vpow.pop %v658
    %v660 = vadd.f32 %v659, 1.0
    %v661 = vrcp.pop %v660
    %v662 = vmul.f32 1.0, %v661
    %v663 = vadd.f32 %v174, %v648
    %v664 = vxor.u32 %v663, 2147483648
    %v665 = vmul.f32 %v664, 1.442695
    %v666 = vpow.pop %v665
    %v667 = vadd.f32 %v666, 1.0
    %v668 = vrcp.pop %v667
    %v669 = vmul.f32 1.0, %v668
    %v672 = vrot.slane %v648, 4
    %v673 = vrot.slane %v653, 4
    %v674 = vsel %vm375, %v672, %v673
    %v676 = vmul.f32 %v662, %v674
    %v678 = vrot.slane %v676, 4
    %v680 = vadd.f32 %v174, %v678
    %v681 = vadd.f32 %v180, %v678
    %v682 = vtanh.pop %v680
    %v683 = vtanh.pop %v681
    %v684 = vsub.f32 1.0, %v662
    %v685 = vsub.f32 1.0, %v669
    %v688 = vrot.slane %v682, 6
    %v689 = vrot.slane %v683, 6
    %v690 = vsel %vm392, %v688, %v689
    %v693 = vmul.f32 %v684, %v688
    %v694 = vmul.f32 %v685, %v690
    %v695 = vmul.f32 %v662, %v559
    %v696 = vmul.f32 %v669, %v561
    %v697 = vadd.f32 %v693, %v695
    %v698 = vadd.f32 %v694, %v696
    %s699 = scalar_lea.vmem [#allocation2], 8
    %700 = vst.msk [vmem:[%s699 - $0x6] sm:$0xc0] %vm404, %v697
    %701 = vst.msk [vmem:[%s699 + $0x2] sm:$0x1] %vm406, %v698
    %s702 = scalar_lea.vmem [#allocation3], 20
    %703 = vst.msk [vmem:[%s702 - $0x1] sm:$0xe] %vm409, %v698
    %v706 = vrot.slane %v697, 6
    %v707 = vrot.slane %v698, 6
    %v708 = vsel %vm392, %v706, %v707
    %v709 = vsel %vm275, %v708, 0
    %711 = vmatprep.subr.mxu0 0.0
    %712 = vmatpush1.msra.mxu0 %v709
    %713 = vmatprep.subr.mxu0 0.0
    %714 = vmatpush1.msra.mxu0 0.0
    %715 = vmatprep.subr.mxu0 0.0
    %716 = vmatpush1.msra.mxu0 0.0
    %717 = vmatprep.subr.mxu0 0.0
    %718 = vmatpush1.msra.mxu0 0.0
    %719 = vmatprep.subr.mxu0 0.0
    %720 = vmatpush1.msra.mxu0 0.0
    %721 = vmatprep.subr.mxu0 0.0
    %722 = vmatpush1.msra.mxu0 0.0
    %723 = vmatprep.subr.mxu0 0.0
    %724 = vmatpush1.msra.mxu0 0.0
    %725 = vmatprep.subr.mxu0 0.0
    %726 = vmatpush1.msra.mxu0 0.0
    %727 = vmatprep.subr.mxu0 0.0
    %728 = vmatpush1.msra.mxu0 0.0
    %729 = vmatprep.subr.mxu0 0.0
    %730 = vmatpush1.msra.mxu0 0.0
    %731 = vmatprep.subr.mxu0 0.0
    %732 = vmatpush1.msra.mxu0 0.0
    %733 = vmatprep.subr.mxu0 0.0
    %734 = vmatpush1.msra.mxu0 0.0
    %735 = vmatprep.subr.mxu0 0.0
    %736 = vmatpush1.msra.mxu0 0.0
    %737 = vmatprep.subr.mxu0 0.0
    %738 = vmatpush1.msra.mxu0 0.0
    %739 = vmatprep.subr.mxu0 0.0
    %740 = vmatpush1.msra.mxu0 0.0
    %741 = vmatprep.subr.mxu0 0.0
    %742 = vmatpush1.msra.mxu0 0.0
    %743 = vmatprep.subr.mxu0 0.0
    %744 = vmatpush1.msra.mxu0 0.0
    %745 = vmatprep.subr.mxu0 0.0
    %746 = vmatpush1.msra.mxu0 0.0
    %747 = vmatprep.subr.mxu0 0.0
    %748 = vmatpush1.msra.mxu0 0.0
    %749 = vmatprep.subr.mxu0 0.0
    %750 = vmatpush1.msra.mxu0 0.0
    %751 = vmatprep.subr.mxu0 0.0
    %752 = vmatpush1.msra.mxu0 0.0
    %753 = vmatprep.subr.mxu0 0.0
    %754 = vmatpush1.msra.mxu0 0.0
    %755 = vmatprep.subr.mxu0 0.0
    %756 = vmatpush1.msra.mxu0 0.0
    %757 = vmatprep.subr.mxu0 0.0
    %758 = vmatpush1.msra.mxu0 0.0
    %759 = vmatprep.subr.mxu0 0.0
    %760 = vmatpush1.msra.mxu0 0.0
    %761 = vmatprep.subr.mxu0 0.0
    %762 = vmatpush1.msra.mxu0 0.0
    %763 = vmatprep.subr.mxu0 0.0
    %764 = vmatpush1.msra.mxu0 0.0
    %765 = vmatprep.subr.mxu0 0.0
    %766 = vmatpush1.msra.mxu0 0.0
    %767 = vmatprep.subr.mxu0 0.0
    %768 = vmatpush1.msra.mxu0 0.0
    %769 = vmatprep.subr.mxu0 0.0
    %770 = vmatpush1.msra.mxu0 0.0
    %771 = vmatprep.subr.mxu0 0.0
    %772 = vmatpush1.msra.mxu0 0.0
    %773 = vmatprep.subr.mxu0 0.0
    %774 = vmatpush1.msra.mxu0 0.0
    %775 = vmatprep.mubr.f32.mxu0 0.0
    %776 = vmatmul.mubr.f32.gmra.mrb[0].mxu0 %v267
    %v777 = vpop.f32.mrb[0].mxu0
    %v778 = vadd.f32 %v52, %v777
    %v779 = vpop.f32.mrb[0].mxu0
    %780 = vmatprep.mubr.f32.mxu0 0.0
    %781 = vmatmul.mubr.f32.gmra.mrb[0].mxu0 %v270
    %v782 = vpop.f32.mrb[0].mxu0
    %v783 = vadd.f32 %v57, %v782
    %v784 = vpop.f32.mrb[0].mxu0
    %785 = vmatprep.mubr.f32.mxu0 0.0
    %786 = vmatmul.mubr.f32.gmra.mrb[0].mxu0 %v273
    %v787 = vpop.f32.mrb[0].mxu0
    %v788 = vadd.f32 %v62, %v787
    %v789 = vpop.f32.mrb[0].mxu0
    %790 = vdwg.mxu0
    %792 = vrot.lane.b32.xlu0 %v778, 64
    %v793 = vpop.permute.xlu0 %792
    %v795 = vadd.f32 %v168, %v793
    %v796 = vxor.u32 %v795, 2147483648
    %v797 = vmul.f32 %v796, 1.442695
    %v798 = vpow.pop %v797
    %v799 = vadd.f32 %v798, 1.0
    %v800 = vrcp.pop %v799
    %v801 = vmul.f32 1.0, %v800
    %803 = vrot.lane.b32.xlu0 %v783, 64
    %v804 = vpop.permute.xlu0 %803
    %v806 = vadd.f32 %v174, %v804
    %v807 = vxor.u32 %v806, 2147483648
    %v808 = vmul.f32 %v807, 1.442695
    %v809 = vpow.pop %v808
    %v810 = vadd.f32 %v809, 1.0
    %v811 = vrcp.pop %v810
    %v812 = vmul.f32 1.0, %v811
    %v814 = vrot.slane %v783, 4
    %v815 = vrot.slane %v788, 4
    %v816 = vsel %vm375, %v814, %v815
    %817 = vrot.lane.b32.xlu0 %v816, 64
    %v818 = vpop.permute.xlu0 %817
    %v820 = vmul.f32 %v801, %v818
    %v822 = vrot.slane %v820, 4
    %v824 = vadd.f32 %v174, %v822
    %v825 = vadd.f32 %v180, %v822
    %v826 = vtanh.pop %v824
    %v827 = vtanh.pop %v825
    %v828 = vsub.f32 1.0, %v801
    %v829 = vsub.f32 1.0, %v812
    %v832 = vrot.slane %v826, 6
    %v833 = vrot.slane %v827, 6
    %v834 = vsel %vm392, %v832, %v833
    %v837 = vmul.f32 %v828, %v832
    %v838 = vmul.f32 %v829, %v834
    %839 = vrot.lane.b32.xlu0 %v697, 64
    %v840 = vpop.permute.xlu0 %839
    %841 = vrot.lane.b32.xlu0 %v698, 64
    %v842 = vpop.permute.xlu0 %841
    %v845 = vmul.f32 %v801, %v840
    %v846 = vmul.f32 %v812, %v842
    %v847 = vadd.f32 %v837, %v845
    %v848 = vadd.f32 %v838, %v846
    %851 = vrot.lane.b32.xlu0 %v847, 64
    %v852 = vpop.permute.xlu0 %851
    %853 = vrot.lane.b32.xlu0 %v848, 64
    %v854 = vpop.permute.xlu0 %853
    %s857 = scalar_lea.vmem [#allocation2], 12
    %858 = vst.msk [vmem:[%s857 - $0x6] sm:$0xc0] %vm404, %v852
    %859 = vst.msk [vmem:[%s857 + $0x2] sm:$0x1] %vm406, %v854
    %s860 = scalar_lea.vmem [#allocation3], 16
    %861 = vst.msk [vmem:[%s860 - $0x1] sm:$0xe] %vm409, %v854
    %v862 = vrot.slane %v847, 6
    %v863 = vrot.slane %v848, 6
    %v864 = vsel %vm392, %v862, %v863
    %865 = vrot.lane.b32.xlu0 %v864, 64
    %v866 = vpop.permute.xlu0 %865
    %v867 = vsel %vm275, %v866, 0
    %869 = vmatprep.subr.mxu0 0.0
    %870 = vmatpush1.msra.mxu0 %v867
    %871 = vmatprep.subr.mxu0 0.0
    %872 = vmatpush1.msra.mxu0 0.0
    %873 = vmatprep.subr.mxu0 0.0
    %874 = vmatpush1.msra.mxu0 0.0
    %875 = vmatprep.subr.mxu0 0.0
    %876 = vmatpush1.msra.mxu0 0.0
    %877 = vmatprep.subr.mxu0 0.0
    %878 = vmatpush1.msra.mxu0 0.0
    %879 = vmatprep.subr.mxu0 0.0
    %880 = vmatpush1.msra.mxu0 0.0
    %881 = vmatprep.subr.mxu0 0.0
    %882 = vmatpush1.msra.mxu0 0.0
    %883 = vmatprep.subr.mxu0 0.0
    %884 = vmatpush1.msra.mxu0 0.0
    %885 = vmatprep.subr.mxu0 0.0
    %886 = vmatpush1.msra.mxu0 0.0
    %887 = vmatprep.subr.mxu0 0.0
    %888 = vmatpush1.msra.mxu0 0.0
    %889 = vmatprep.subr.mxu0 0.0
    %890 = vmatpush1.msra.mxu0 0.0
    %891 = vmatprep.subr.mxu0 0.0
    %892 = vmatpush1.msra.mxu0 0.0
    %893 = vmatprep.subr.mxu0 0.0
    %894 = vmatpush1.msra.mxu0 0.0
    %895 = vmatprep.subr.mxu0 0.0
    %896 = vmatpush1.msra.mxu0 0.0
    %897 = vmatprep.subr.mxu0 0.0
    %898 = vmatpush1.msra.mxu0 0.0
    %899 = vmatprep.subr.mxu0 0.0
    %900 = vmatpush1.msra.mxu0 0.0
    %901 = vmatprep.subr.mxu0 0.0
    %902 = vmatpush1.msra.mxu0 0.0
    %903 = vmatprep.subr.mxu0 0.0
    %904 = vmatpush1.msra.mxu0 0.0
    %905 = vmatprep.subr.mxu0 0.0
    %906 = vmatpush1.msra.mxu0 0.0
    %907 = vmatprep.subr.mxu0 0.0
    %908 = vmatpush1.msra.mxu0 0.0
    %909 = vmatprep.subr.mxu0 0.0
    %910 = vmatpush1.msra.mxu0 0.0
    %911 = vmatprep.subr.mxu0 0.0
    %912 = vmatpush1.msra.mxu0 0.0
    %913 = vmatprep.subr.mxu0 0.0
    %914 = vmatpush1.msra.mxu0 0.0
    %915 = vmatprep.subr.mxu0 0.0
    %916 = vmatpush1.msra.mxu0 0.0
    %917 = vmatprep.subr.mxu0 0.0
    %918 = vmatpush1.msra.mxu0 0.0
    %919 = vmatprep.subr.mxu0 0.0
    %920 = vmatpush1.msra.mxu0 0.0
    %921 = vmatprep.subr.mxu0 0.0
    %922 = vmatpush1.msra.mxu0 0.0
    %923 = vmatprep.subr.mxu0 0.0
    %924 = vmatpush1.msra.mxu0 0.0
    %925 = vmatprep.subr.mxu0 0.0
    %926 = vmatpush1.msra.mxu0 0.0
    %927 = vmatprep.subr.mxu0 0.0
    %928 = vmatpush1.msra.mxu0 0.0
    %929 = vmatprep.subr.mxu0 0.0
    %930 = vmatpush1.msra.mxu0 0.0
    %931 = vmatprep.subr.mxu0 0.0
    %932 = vmatpush1.msra.mxu0 0.0
    %933 = vmatprep.mubr.f32.mxu0 0.0
    %934 = vmatmul.mubr.f32.gmra.mrb[0].mxu0 %v267
    %v935 = vpop.f32.mrb[0].mxu0
    %v936 = vadd.f32 %v52, %v935
    %v937 = vpop.f32.mrb[0].mxu0
    %938 = vmatprep.mubr.f32.mxu0 0.0
    %939 = vmatmul.mubr.f32.gmra.mrb[0].mxu0 %v270
    %v940 = vpop.f32.mrb[0].mxu0
    %v941 = vadd.f32 %v57, %v940
    %v942 = vpop.f32.mrb[0].mxu0
    %943 = vmatprep.mubr.f32.mxu0 0.0
    %944 = vmatmul.mubr.f32.gmra.mrb[0].mxu0 %v273
    %v945 = vpop.f32.mrb[0].mxu0
    %v946 = vadd.f32 %v62, %v945
    %v947 = vpop.f32.mrb[0].mxu0
    %948 = vdwg.mxu0
    %v949 = vadd.f32 %v249, %v936
    %v950 = vxor.u32 %v949, 2147483648
    %v951 = vmul.f32 %v950, 1.442695
    %v952 = vpow.pop %v951
    %v953 = vadd.f32 %v952, 1.0
    %v954 = vrcp.pop %v953
    %v955 = vmul.f32 1.0, %v954
    %v956 = vadd.f32 %v255, %v941
    %v957 = vxor.u32 %v956, 2147483648
    %v958 = vmul.f32 %v957, 1.442695
    %v959 = vpow.pop %v958
    %v960 = vadd.f32 %v959, 1.0
    %v961 = vrcp.pop %v960
    %v962 = vmul.f32 1.0, %v961
    %v965 = vrot.slane %v941, 4
    %v966 = vrot.slane %v946, 4
    %v967 = vsel %vm375, %v965, %v966
    %v969 = vmul.f32 %v955, %v967
    %v971 = vrot.slane %v969, 4
    %v973 = vadd.f32 %v255, %v971
    %v974 = vadd.f32 %v261, %v971
    %v975 = vtanh.pop %v973
    %v976 = vtanh.pop %v974
    %v977 = vsub.f32 1.0, %v955
    %v978 = vsub.f32 1.0, %v962
    %v981 = vrot.slane %v975, 6
    %v982 = vrot.slane %v976, 6
    %v983 = vsel %vm392, %v981, %v982
    %v986 = vmul.f32 %v977, %v981
    %v987 = vmul.f32 %v978, %v983
    %v988 = vmul.f32 %v955, %v852
    %v989 = vmul.f32 %v962, %v854
    %v990 = vadd.f32 %v986, %v988
    %v991 = vadd.f32 %v987, %v989
    %s992 = scalar_lea.vmem [#allocation2], 16
    %993 = vst.msk [vmem:[%s992 - $0x6] sm:$0xc0] %vm404, %v990
    %994 = vst.msk [vmem:[%s992 + $0x2] sm:$0x1] %vm406, %v991
    %s995 = scalar_lea.vmem [#allocation3], 12
    %996 = vst.msk [vmem:[%s995 - $0x1] sm:$0xe] %vm409, %v991
    %v999 = vrot.slane %v990, 6
    %v1000 = vrot.slane %v991, 6
    %v1001 = vsel %vm392, %v999, %v1000
    %v1002 = vsel %vm275, %v1001, 0
    %1004 = vmatprep.subr.mxu0 0.0
    %1005 = vmatpush1.msra.mxu0 %v1002
    %1006 = vmatprep.subr.mxu0 0.0
    %1007 = vmatpush1.msra.mxu0 0.0
    %1008 = vmatprep.subr.mxu0 0.0
    %1009 = vmatpush1.msra.mxu0 0.0
    %1010 = vmatprep.subr.mxu0 0.0
    %1011 = vmatpush1.msra.mxu0 0.0
    %1012 = vmatprep.subr.mxu0 0.0
    %1013 = vmatpush1.msra.mxu0 0.0
    %1014 = vmatprep.subr.mxu0 0.0
    %1015 = vmatpush1.msra.mxu0 0.0
    %1016 = vmatprep.subr.mxu0 0.0
    %1017 = vmatpush1.msra.mxu0 0.0
    %1018 = vmatprep.subr.mxu0 0.0
    %1019 = vmatpush1.msra.mxu0 0.0
    %1020 = vmatprep.subr.mxu0 0.0
    %1021 = vmatpush1.msra.mxu0 0.0
    %1022 = vmatprep.subr.mxu0 0.0
    %1023 = vmatpush1.msra.mxu0 0.0
    %1024 = vmatprep.subr.mxu0 0.0
    %1025 = vmatpush1.msra.mxu0 0.0
    %1026 = vmatprep.subr.mxu0 0.0
    %1027 = vmatpush1.msra.mxu0 0.0
    %1028 = vmatprep.subr.mxu0 0.0
    %1029 = vmatpush1.msra.mxu0 0.0
    %1030 = vmatprep.subr.mxu0 0.0
    %1031 = vmatpush1.msra.mxu0 0.0
    %1032 = vmatprep.subr.mxu0 0.0
    %1033 = vmatpush1.msra.mxu0 0.0
    %1034 = vmatprep.subr.mxu0 0.0
    %1035 = vmatpush1.msra.mxu0 0.0
    %1036 = vmatprep.subr.mxu0 0.0
    %1037 = vmatpush1.msra.mxu0 0.0
    %1038 = vmatprep.subr.mxu0 0.0
    %1039 = vmatpush1.msra.mxu0 0.0
    %1040 = vmatprep.subr.mxu0 0.0
    %1041 = vmatpush1.msra.mxu0 0.0
    %1042 = vmatprep.subr.mxu0 0.0
    %1043 = vmatpush1.msra.mxu0 0.0
    %1044 = vmatprep.subr.mxu0 0.0
    %1045 = vmatpush1.msra.mxu0 0.0
    %1046 = vmatprep.subr.mxu0 0.0
    %1047 = vmatpush1.msra.mxu0 0.0
    %1048 = vmatprep.subr.mxu0 0.0
    %1049 = vmatpush1.msra.mxu0 0.0
    %1050 = vmatprep.subr.mxu0 0.0
    %1051 = vmatpush1.msra.mxu0 0.0
    %1052 = vmatprep.subr.mxu0 0.0
    %1053 = vmatpush1.msra.mxu0 0.0
    %1054 = vmatprep.subr.mxu0 0.0
    %1055 = vmatpush1.msra.mxu0 0.0
    %1056 = vmatprep.subr.mxu0 0.0
    %1057 = vmatpush1.msra.mxu0 0.0
    %1058 = vmatprep.subr.mxu0 0.0
    %1059 = vmatpush1.msra.mxu0 0.0
    %1060 = vmatprep.subr.mxu0 0.0
    %1061 = vmatpush1.msra.mxu0 0.0
    %1062 = vmatprep.subr.mxu0 0.0
    %1063 = vmatpush1.msra.mxu0 0.0
    %1064 = vmatprep.subr.mxu0 0.0
    %1065 = vmatpush1.msra.mxu0 0.0
    %1066 = vmatprep.subr.mxu0 0.0
    %1067 = vmatpush1.msra.mxu0 0.0
    %1068 = vmatprep.mubr.f32.mxu0 0.0
    %1069 = vmatmul.mubr.f32.gmra.mrb[0].mxu0 %v267
    %v1070 = vpop.f32.mrb[0].mxu0
    %v1071 = vadd.f32 %v52, %v1070
    %v1072 = vpop.f32.mrb[0].mxu0
    %1073 = vmatprep.mubr.f32.mxu0 0.0
    %1074 = vmatmul.mubr.f32.gmra.mrb[0].mxu0 %v270
    %v1075 = vpop.f32.mrb[0].mxu0
    %v1076 = vadd.f32 %v57, %v1075
    %v1077 = vpop.f32.mrb[0].mxu0
    %1078 = vmatprep.mubr.f32.mxu0 0.0
    %1079 = vmatmul.mubr.f32.gmra.mrb[0].mxu0 %v273
    %v1080 = vpop.f32.mrb[0].mxu0
    %v1081 = vadd.f32 %v62, %v1080
    %v1082 = vpop.f32.mrb[0].mxu0
    %1083 = vdwg.mxu0
    %1085 = vrot.lane.b32.xlu0 %v1071, 64
    %v1086 = vpop.permute.xlu0 %1085
    %v1088 = vadd.f32 %v249, %v1086
    %v1089 = vxor.u32 %v1088, 2147483648
    %v1090 = vmul.f32 %v1089, 1.442695
    %v1091 = vpow.pop %v1090
    %v1092 = vadd.f32 %v1091, 1.0
    %v1093 = vrcp.pop %v1092
    %v1094 = vmul.f32 1.0, %v1093
    %1096 = vrot.lane.b32.xlu0 %v1076, 64
    %v1097 = vpop.permute.xlu0 %1096
    %v1099 = vadd.f32 %v255, %v1097
    %v1100 = vxor.u32 %v1099, 2147483648
    %v1101 = vmul.f32 %v1100, 1.442695
    %v1102 = vpow.pop %v1101
    %v1103 = vadd.f32 %v1102, 1.0
    %v1104 = vrcp.pop %v1103
    %v1105 = vmul.f32 1.0, %v1104
    %v1107 = vrot.slane %v1076, 4
    %v1108 = vrot.slane %v1081, 4
    %v1109 = vsel %vm375, %v1107, %v1108
    %1110 = vrot.lane.b32.xlu0 %v1109, 64
    %v1111 = vpop.permute.xlu0 %1110
    %v1113 = vmul.f32 %v1094, %v1111
    %v1115 = vrot.slane %v1113, 4
    %v1117 = vadd.f32 %v255, %v1115
    %v1118 = vadd.f32 %v261, %v1115
    %v1119 = vtanh.pop %v1117
    %v1120 = vtanh.pop %v1118
    %v1121 = vsub.f32 1.0, %v1094
    %v1122 = vsub.f32 1.0, %v1105
    %v1125 = vrot.slane %v1119, 6
    %v1126 = vrot.slane %v1120, 6
    %v1127 = vsel %vm392, %v1125, %v1126
    %v1130 = vmul.f32 %v1121, %v1125
    %v1131 = vmul.f32 %v1122, %v1127
    %1132 = vrot.lane.b32.xlu0 %v990, 64
    %v1133 = vpop.permute.xlu0 %1132
    %1134 = vrot.lane.b32.xlu0 %v991, 64
    %v1135 = vpop.permute.xlu0 %1134
    %v1138 = vmul.f32 %v1094, %v1133
    %v1139 = vmul.f32 %v1105, %v1135
    %v1140 = vadd.f32 %v1130, %v1138
    %v1141 = vadd.f32 %v1131, %v1139
    %1144 = vrot.lane.b32.xlu0 %v1140, 64
    %v1145 = vpop.permute.xlu0 %1144
    %1146 = vrot.lane.b32.xlu0 %v1141, 64
    %v1147 = vpop.permute.xlu0 %1146
    %s1150 = scalar_lea.vmem [#allocation2], 20
    %1151 = vst.msk [vmem:[%s1150 - $0x6] sm:$0xc0] %vm404, %v1145
    %1152 = vst.msk [vmem:[%s1150 + $0x2] sm:$0x1] %vm406, %v1147
    %s1153 = scalar_lea.vmem [#allocation3], 8
    %1154 = vst.msk [vmem:[%s1153 - $0x1] sm:$0xe] %vm409, %v1147
    %v1155 = vrot.slane %v1140, 6
    %v1156 = vrot.slane %v1141, 6
    %v1157 = vsel %vm392, %v1155, %v1156
    %1158 = vrot.lane.b32.xlu0 %v1157, 64
    %v1159 = vpop.permute.xlu0 %1158
    %v1160 = vsel %vm275, %v1159, 0
    %1162 = vmatprep.subr.mxu0 0.0
    %1163 = vmatpush1.msra.mxu0 %v1160
    %1164 = vmatprep.subr.mxu0 0.0
    %1165 = vmatpush1.msra.mxu0 0.0
    %1166 = vmatprep.subr.mxu0 0.0
    %1167 = vmatpush1.msra.mxu0 0.0
    %1168 = vmatprep.subr.mxu0 0.0
    %1169 = vmatpush1.msra.mxu0 0.0
    %1170 = vmatprep.subr.mxu0 0.0
    %1171 = vmatpush1.msra.mxu0 0.0
    %1172 = vmatprep.subr.mxu0 0.0
    %1173 = vmatpush1.msra.mxu0 0.0
    %1174 = vmatprep.subr.mxu0 0.0
    %1175 = vmatpush1.msra.mxu0 0.0
    %1176 = vmatprep.subr.mxu0 0.0
    %1177 = vmatpush1.msra.mxu0 0.0
    %1178 = vmatprep.subr.mxu0 0.0
    %1179 = vmatpush1.msra.mxu0 0.0
    %1180 = vmatprep.subr.mxu0 0.0
    %1181 = vmatpush1.msra.mxu0 0.0
    %1182 = vmatprep.subr.mxu0 0.0
    %1183 = vmatpush1.msra.mxu0 0.0
    %1184 = vmatprep.subr.mxu0 0.0
    %1185 = vmatpush1.msra.mxu0 0.0
    %1186 = vmatprep.subr.mxu0 0.0
    %1187 = vmatpush1.msra.mxu0 0.0
    %1188 = vmatprep.subr.mxu0 0.0
    %1189 = vmatpush1.msra.mxu0 0.0
    %1190 = vmatprep.subr.mxu0 0.0
    %1191 = vmatpush1.msra.mxu0 0.0
    %1192 = vmatprep.subr.mxu0 0.0
    %1193 = vmatpush1.msra.mxu0 0.0
    %1194 = vmatprep.subr.mxu0 0.0
    %1195 = vmatpush1.msra.mxu0 0.0
    %1196 = vmatprep.subr.mxu0 0.0
    %1197 = vmatpush1.msra.mxu0 0.0
    %1198 = vmatprep.subr.mxu0 0.0
    %1199 = vmatpush1.msra.mxu0 0.0
    %1200 = vmatprep.subr.mxu0 0.0
    %1201 = vmatpush1.msra.mxu0 0.0
    %1202 = vmatprep.subr.mxu0 0.0
    %1203 = vmatpush1.msra.mxu0 0.0
    %1204 = vmatprep.subr.mxu0 0.0
    %1205 = vmatpush1.msra.mxu0 0.0
    %1206 = vmatprep.subr.mxu0 0.0
    %1207 = vmatpush1.msra.mxu0 0.0
    %1208 = vmatprep.subr.mxu0 0.0
    %1209 = vmatpush1.msra.mxu0 0.0
    %1210 = vmatprep.subr.mxu0 0.0
    %1211 = vmatpush1.msra.mxu0 0.0
    %1212 = vmatprep.subr.mxu0 0.0
    %1213 = vmatpush1.msra.mxu0 0.0
    %1214 = vmatprep.subr.mxu0 0.0
    %1215 = vmatpush1.msra.mxu0 0.0
    %1216 = vmatprep.subr.mxu0 0.0
    %1217 = vmatpush1.msra.mxu0 0.0
    %1218 = vmatprep.subr.mxu0 0.0
    %1219 = vmatpush1.msra.mxu0 0.0
    %1220 = vmatprep.subr.mxu0 0.0
    %1221 = vmatpush1.msra.mxu0 0.0
    %1222 = vmatprep.subr.mxu0 0.0
    %1223 = vmatpush1.msra.mxu0 0.0
    %1224 = vmatprep.subr.mxu0 0.0
    %1225 = vmatpush1.msra.mxu0 0.0
    %1226 = vmatprep.mubr.f32.mxu0 0.0
    %1227 = vmatmul.mubr.f32.gmra.mrb[0].mxu0 %v267
    %v1228 = vpop.f32.mrb[0].mxu0
    %v1229 = vadd.f32 %v52, %v1228
    %v1230 = vpop.f32.mrb[0].mxu0
    %1231 = vmatprep.mubr.f32.mxu0 0.0
    %1232 = vmatmul.mubr.f32.gmra.mrb[0].mxu0 %v270
    %v1233 = vpop.f32.mrb[0].mxu0
    %v1234 = vadd.f32 %v57, %v1233
    %v1235 = vpop.f32.mrb[0].mxu0
    %1236 = vmatprep.mubr.f32.mxu0 0.0
    %1237 = vmatmul.mubr.f32.gmra.mrb[0].mxu0 %v273
    %v1238 = vpop.f32.mrb[0].mxu0
    %v1239 = vadd.f32 %v62, %v1238
    %v1240 = vpop.f32.mrb[0].mxu0
    %1241 = vdwg.mxu0
    %v1242 = vadd.f32 %v251, %v1229
    %v1243 = vxor.u32 %v1242, 2147483648
    %v1244 = vmul.f32 %v1243, 1.442695
    %v1245 = vpow.pop %v1244
    %v1246 = vadd.f32 %v1245, 1.0
    %v1247 = vrcp.pop %v1246
    %v1248 = vmul.f32 1.0, %v1247
    %v1249 = vadd.f32 %v257, %v1234
    %v1250 = vxor.u32 %v1249, 2147483648
    %v1251 = vmul.f32 %v1250, 1.442695
    %v1252 = vpow.pop %v1251
    %v1253 = vadd.f32 %v1252, 1.0
    %v1254 = vrcp.pop %v1253
    %v1255 = vmul.f32 1.0, %v1254
    %v1258 = vrot.slane %v1234, 4
    %v1259 = vrot.slane %v1239, 4
    %v1260 = vsel %vm375, %v1258, %v1259
    %v1262 = vmul.f32 %v1248, %v1260
    %v1264 = vrot.slane %v1262, 4
    %v1266 = vadd.f32 %v257, %v1264
    %v1267 = vadd.f32 %v263, %v1264
    %v1268 = vtanh.pop %v1266
    %v1269 = vtanh.pop %v1267
    %v1270 = vsub.f32 1.0, %v1248
    %v1271 = vsub.f32 1.0, %v1255
    %v1274 = vrot.slane %v1268, 6
    %v1275 = vrot.slane %v1269, 6
    %v1276 = vsel %vm392, %v1274, %v1275
    %v1279 = vmul.f32 %v1270, %v1274
    %v1280 = vmul.f32 %v1271, %v1276
    %v1281 = vmul.f32 %v1248, %v1145
    %v1282 = vmul.f32 %v1255, %v1147
    %v1283 = vadd.f32 %v1279, %v1281
    %v1284 = vadd.f32 %v1280, %v1282
    %s1285 = scalar_lea.vmem [#allocation2], 24
    %1286 = vst.msk [vmem:[%s1285 - $0x6] sm:$0xc0] %vm404, %v1283
    %1287 = vst.msk [vmem:[%s1285 + $0x2] sm:$0x1] %vm406, %v1284
    %s1288 = scalar_lea.vmem [#allocation3], 4
    %1289 = vst.msk [vmem:[%s1288 - $0x1] sm:$0xe] %vm409, %v1284
    %v1292 = vrot.slane %v1283, 6
    %v1293 = vrot.slane %v1284, 6
    %v1294 = vsel %vm392, %v1292, %v1293
    %v1295 = vsel %vm275, %v1294, 0
    %1297 = vmatprep.subr.mxu0 0.0
    %1298 = vmatpush1.msra.mxu0 %v1295
    %1299 = vmatprep.subr.mxu0 0.0
    %1300 = vmatpush1.msra.mxu0 0.0
    %1301 = vmatprep.subr.mxu0 0.0
    %1302 = vmatpush1.msra.mxu0 0.0
    %1303 = vmatprep.subr.mxu0 0.0
    %1304 = vmatpush1.msra.mxu0 0.0
    %1305 = vmatprep.subr.mxu0 0.0
    %1306 = vmatpush1.msra.mxu0 0.0
    %1307 = vmatprep.subr.mxu0 0.0
    %1308 = vmatpush1.msra.mxu0 0.0
    %1309 = vmatprep.subr.mxu0 0.0
    %1310 = vmatpush1.msra.mxu0 0.0
    %1311 = vmatprep.subr.mxu0 0.0
    %1312 = vmatpush1.msra.mxu0 0.0
    %1313 = vmatprep.subr.mxu0 0.0
    %1314 = vmatpush1.msra.mxu0 0.0
    %1315 = vmatprep.subr.mxu0 0.0
    %1316 = vmatpush1.msra.mxu0 0.0
    %1317 = vmatprep.subr.mxu0 0.0
    %1318 = vmatpush1.msra.mxu0 0.0
    %1319 = vmatprep.subr.mxu0 0.0
    %1320 = vmatpush1.msra.mxu0 0.0
    %1321 = vmatprep.subr.mxu0 0.0
    %1322 = vmatpush1.msra.mxu0 0.0
    %1323 = vmatprep.subr.mxu0 0.0
    %1324 = vmatpush1.msra.mxu0 0.0
    %1325 = vmatprep.subr.mxu0 0.0
    %1326 = vmatpush1.msra.mxu0 0.0
    %1327 = vmatprep.subr.mxu0 0.0
    %1328 = vmatpush1.msra.mxu0 0.0
    %1329 = vmatprep.subr.mxu0 0.0
    %1330 = vmatpush1.msra.mxu0 0.0
    %1331 = vmatprep.subr.mxu0 0.0
    %1332 = vmatpush1.msra.mxu0 0.0
    %1333 = vmatprep.subr.mxu0 0.0
    %1334 = vmatpush1.msra.mxu0 0.0
    %1335 = vmatprep.subr.mxu0 0.0
    %1336 = vmatpush1.msra.mxu0 0.0
    %1337 = vmatprep.subr.mxu0 0.0
    %1338 = vmatpush1.msra.mxu0 0.0
    %1339 = vmatprep.subr.mxu0 0.0
    %1340 = vmatpush1.msra.mxu0 0.0
    %1341 = vmatprep.subr.mxu0 0.0
    %1342 = vmatpush1.msra.mxu0 0.0
    %1343 = vmatprep.subr.mxu0 0.0
    %1344 = vmatpush1.msra.mxu0 0.0
    %1345 = vmatprep.subr.mxu0 0.0
    %1346 = vmatpush1.msra.mxu0 0.0
    %1347 = vmatprep.subr.mxu0 0.0
    %1348 = vmatpush1.msra.mxu0 0.0
    %1349 = vmatprep.subr.mxu0 0.0
    %1350 = vmatpush1.msra.mxu0 0.0
    %1351 = vmatprep.subr.mxu0 0.0
    %1352 = vmatpush1.msra.mxu0 0.0
    %1353 = vmatprep.subr.mxu0 0.0
    %1354 = vmatpush1.msra.mxu0 0.0
    %1355 = vmatprep.subr.mxu0 0.0
    %1356 = vmatpush1.msra.mxu0 0.0
    %1357 = vmatprep.subr.mxu0 0.0
    %1358 = vmatpush1.msra.mxu0 0.0
    %1359 = vmatprep.subr.mxu0 0.0
    %1360 = vmatpush1.msra.mxu0 0.0
    %1361 = vmatprep.mubr.f32.mxu0 0.0
    %1362 = vmatmul.mubr.f32.gmra.mrb[0].mxu0 %v267
    %v1363 = vpop.f32.mrb[0].mxu0
    %v1364 = vadd.f32 %v52, %v1363
    %v1365 = vpop.f32.mrb[0].mxu0
    %1366 = vmatprep.mubr.f32.mxu0 0.0
    %1367 = vmatmul.mubr.f32.gmra.mrb[0].mxu0 %v270
    %v1368 = vpop.f32.mrb[0].mxu0
    %v1369 = vadd.f32 %v57, %v1368
    %v1370 = vpop.f32.mrb[0].mxu0
    %1371 = vmatprep.mubr.f32.mxu0 0.0
    %1372 = vmatmul.mubr.f32.gmra.mrb[0].mxu0 %v273
    %v1373 = vpop.f32.mrb[0].mxu0
    %v1374 = vadd.f32 %v62, %v1373
    %v1375 = vpop.f32.mrb[0].mxu0
    %1376 = vdwg.mxu0
    %1378 = vrot.lane.b32.xlu0 %v1364, 64
    %v1379 = vpop.permute.xlu0 %1378
    %v1381 = vadd.f32 %v251, %v1379
    %v1382 = vxor.u32 %v1381, 2147483648
    %v1383 = vmul.f32 %v1382, 1.442695
    %v1384 = vpow.pop %v1383
    %v1385 = vadd.f32 %v1384, 1.0
    %v1386 = vrcp.pop %v1385
    %v1387 = vmul.f32 1.0, %v1386
    %1389 = vrot.lane.b32.xlu0 %v1369, 64
    %v1390 = vpop.permute.xlu0 %1389
    %v1392 = vadd.f32 %v257, %v1390
    %v1393 = vxor.u32 %v1392, 2147483648
    %v1394 = vmul.f32 %v1393, 1.442695
    %v1395 = vpow.pop %v1394
    %v1396 = vadd.f32 %v1395, 1.0
    %v1397 = vrcp.pop %v1396
    %v1398 = vmul.f32 1.0, %v1397
    %v1400 = vrot.slane %v1369, 4
    %v1401 = vrot.slane %v1374, 4
    %v1402 = vsel %vm375, %v1400, %v1401
    %1403 = vrot.lane.b32.xlu0 %v1402, 64
    %v1404 = vpop.permute.xlu0 %1403
    %v1406 = vmul.f32 %v1387, %v1404
    %v1408 = vrot.slane %v1406, 4
    %v1410 = vadd.f32 %v257, %v1408
    %v1411 = vadd.f32 %v263, %v1408
    %v1412 = vtanh.pop %v1410
    %v1413 = vtanh.pop %v1411
    %v1414 = vsub.f32 1.0, %v1387
    %v1415 = vsub.f32 1.0, %v1398
    %v1418 = vrot.slane %v1412, 6
    %v1419 = vrot.slane %v1413, 6
    %v1420 = vsel %vm392, %v1418, %v1419
    %v1423 = vmul.f32 %v1414, %v1418
    %v1424 = vmul.f32 %v1415, %v1420
    %1425 = vrot.lane.b32.xlu0 %v1283, 64
    %v1426 = vpop.permute.xlu0 %1425
    %1427 = vrot.lane.b32.xlu0 %v1284, 64
    %v1428 = vpop.permute.xlu0 %1427
    %v1431 = vmul.f32 %v1387, %v1426
    %v1432 = vmul.f32 %v1398, %v1428
    %v1433 = vadd.f32 %v1423, %v1431
    %v1434 = vadd.f32 %v1424, %v1432
    %1437 = vrot.lane.b32.xlu0 %v1433, 64
    %v1438 = vpop.permute.xlu0 %1437
    %1439 = vrot.lane.b32.xlu0 %v1434, 64
    %v1440 = vpop.permute.xlu0 %1439
    %s1443 = scalar_lea.vmem [#allocation2], 28
    %1444 = vst.msk [vmem:[%s1443 - $0x6] sm:$0xc0] %vm404, %v1438
    %1445 = vst.msk [vmem:[%s1443 + $0x2] sm:$0x1] %vm406, %v1440
    %1446 = vst.msk [vmem:[#allocation3 - $0x1] sm:$0xe] %vm409, %v1440
    %v1447 = vld [vmem:[#allocation7 + $0x48] sm:$0xf]
    %v1448 = vld [vmem:[#allocation7 + $0x50] sm:$0xf]
    %v1449 = vld [vmem:[#allocation7 + $0x30] sm:$0xff]
    %v1450 = vld [vmem:[#allocation7 + $0x38] sm:$0xff]
    %v1451 = vld [vmem:[#allocation7 + $0x40] sm:$0x3]
    %v1452 = vld [vmem:[#allocation7 + $0x58] sm:$0x3]
    %v1453 = vld [vmem:[#allocation7 + $0x60] sm:$0xff]
    %v1454 = vld [vmem:[#allocation7 + $0x68] sm:$0xff]
    %v1455 = vld [vmem:[#allocation7 + $0x70] sm:$0x3]
    %v1456 = vld [vmem:[#allocation7 + $0x78] sm:$0xf]
    %v1457 = vld [vmem:[#allocation7 + $0x80] sm:$0x3]
    %v1458 = vld [vmem:[#allocation7 + $0x88] sm:$0xff]
    %v1459 = vld [vmem:[#allocation7 + $0x90] sm:$0xff]
    %v1460 = vld [vmem:[#allocation7 + $0x98] sm:$0xff]
    %v1461 = vld [vmem:[#allocation7 + $0xa0] sm:$0xff]
    %v1462 = vld [vmem:[#allocation7 + $0xa8] sm:$0xff]
    %v1463 = vld [vmem:[#allocation7 + $0xb0] sm:$0xff]
    %v1464 = vld [vmem:[#allocation7 + $0xb8] sm:$0xff]
    %v1465 = vld [vmem:[#allocation7 + $0xc0] sm:$0xff]
    %v1466 = vld [vmem:[#allocation7 + $0xc8] sm:$0xff]
    %v1467 = vld [vmem:[#allocation7 + $0xd0] sm:$0xff]
    %v1468 = vld [vmem:[#allocation7 + $0xd8] sm:$0xff]
    %v1469 = vld [vmem:[#allocation7 + $0xe0] sm:$0xff]
    %v1470 = vld [vmem:[#allocation7 + $0xe8] sm:$0xff]
    %v1471 = vld [vmem:[#allocation7 + $0xf0] sm:$0xff]
    %v1472 = vld [vmem:[#allocation7 + $0xf8] sm:$0xff]
    %v1473 = vld [vmem:[#allocation7 + $0x100] sm:$0xff]
    %v1474 = vrot.slane %v1434, 3
    %vm1476 = vcmask 523264
    %v1477 = vsel %vm1476, %v1438, %v1474
    %v1478 = vsel %vm1476, %v1440, %v1474
    %v1481 = vrot.slane %v1477, 6
    %v1482 = vrot.slane %v1478, 6
    %v1483 = vsel %vm392, %v1481, %v1482
    %1485 = vmatprep.subr.mxu0 0.0
    %1486 = vmatpush1.msra.mxu0 %v1458
    %1487 = vmatprep.subr.mxu0 0.0
    %1488 = vmatpush1.msra.mxu0 %v1459
    %1489 = vmatprep.subr.mxu0 0.0
    %1490 = vmatpush1.msra.mxu0 %v1460
    %1491 = vmatprep.subr.mxu0 0.0
    %1492 = vmatpush1.msra.mxu0 %v1461
    %1493 = vmatprep.subr.mxu0 0.0
    %1494 = vmatpush1.msra.mxu0 %v1462
    %1495 = vmatprep.subr.mxu0 0.0
    %1496 = vmatpush1.msra.mxu0 %v1463
    %1497 = vmatprep.subr.mxu0 0.0
    %1498 = vmatpush1.msra.mxu0 %v1464
    %1499 = vmatprep.subr.mxu0 0.0
    %1500 = vmatpush1.msra.mxu0 %v1465
    %1501 = vmatprep.subr.mxu0 0.0
    %1502 = vmatpush1.msra.mxu0 %v1466
    %1503 = vmatprep.subr.mxu0 0.0
    %1504 = vmatpush1.msra.mxu0 %v1467
    %1505 = vmatprep.subr.mxu0 0.0
    %1506 = vmatpush1.msra.mxu0 %v1468
    %1507 = vmatprep.subr.mxu0 0.0
    %1508 = vmatpush1.msra.mxu0 %v1469
    %1509 = vmatprep.subr.mxu0 0.0
    %1510 = vmatpush1.msra.mxu0 %v1470
    %1511 = vmatprep.subr.mxu0 0.0
    %1512 = vmatpush1.msra.mxu0 %v1471
    %1513 = vmatprep.subr.mxu0 0.0
    %1514 = vmatpush1.msra.mxu0 %v1472
    %1515 = vmatprep.subr.mxu0 0.0
    %1516 = vmatpush1.msra.mxu0 %v1473
    %1517 = vmatprep.subr.mxu0 0.0
    %1518 = vmatpush1.msra.mxu0 0.0
    %1519 = vmatprep.subr.mxu0 0.0
    %1520 = vmatpush1.msra.mxu0 0.0
    %1521 = vmatprep.subr.mxu0 0.0
    %1522 = vmatpush1.msra.mxu0 0.0
    %1523 = vmatprep.subr.mxu0 0.0
    %1524 = vmatpush1.msra.mxu0 0.0
    %1525 = vmatprep.subr.mxu0 0.0
    %1526 = vmatpush1.msra.mxu0 0.0
    %1527 = vmatprep.subr.mxu0 0.0
    %1528 = vmatpush1.msra.mxu0 0.0
    %1529 = vmatprep.subr.mxu0 0.0
    %1530 = vmatpush1.msra.mxu0 0.0
    %1531 = vmatprep.subr.mxu0 0.0
    %1532 = vmatpush1.msra.mxu0 0.0
    %1533 = vmatprep.subr.mxu0 0.0
    %1534 = vmatpush1.msra.mxu0 0.0
    %1535 = vmatprep.subr.mxu0 0.0
    %1536 = vmatpush1.msra.mxu0 0.0
    %1537 = vmatprep.subr.mxu0 0.0
    %1538 = vmatpush1.msra.mxu0 0.0
    %1539 = vmatprep.subr.mxu0 0.0
    %1540 = vmatpush1.msra.mxu0 0.0
    %1541 = vmatprep.subr.mxu0 0.0
    %1542 = vmatpush1.msra.mxu0 0.0
    %1543 = vmatprep.subr.mxu0 0.0
    %1544 = vmatpush1.msra.mxu0 0.0
    %1545 = vmatprep.subr.mxu0 0.0
    %1546 = vmatpush1.msra.mxu0 0.0
    %1547 = vmatprep.subr.mxu0 0.0
    %1548 = vmatpush1.msra.mxu0 0.0
    %1549 = vmatprep.mubr.f32.mxu0 0.0
    %1550 = vmatmul.mubr.f32.gmra.mrb[0].mxu0 %v1483
    %v1551 = vpop.f32.mrb[0].mxu0
    %v1552 = vadd.f32 0.0, %v1551
    %v1553 = vpop.f32.mrb[0].mxu0
    %1554 = vdwg.mxu0
    %v1556 = vrot.slane %v1552, 5
    %1557 = vrot.lane.b32.xlu0 %v1556, 64
    %v1558 = vpop.permute.xlu0 %1557
    %vm1560 = vcmask 1042432
    %v1561 = vsel %vm1560, %v1552, %v1558
    %1563 = vset.pattern.permute.xlu0 0
    %1564 = vperm.xlu0 %1563, %v1456
    %v1565 = vpop.permute.xlu0 %1564
    %v1568 = vsel %vm265, %v1447, 0
    %v1571 = vsel %vm275, %v1561, 0
    %1573 = vmatprep.subr.mxu0 0.0
    %1574 = vmatpush1.msra.mxu0 %v1571
    %1575 = vmatprep.subr.mxu0 0.0
    %1576 = vmatpush1.msra.mxu0 0.0
    %1577 = vmatprep.subr.mxu0 0.0
    %1578 = vmatpush1.msra.mxu0 0.0
    %1579 = vmatprep.subr.mxu0 0.0
    %1580 = vmatpush1.msra.mxu0 0.0
    %1581 = vmatprep.subr.mxu0 0.0
    %1582 = vmatpush1.msra.mxu0 0.0
    %1583 = vmatprep.subr.mxu0 0.0
    %1584 = vmatpush1.msra.mxu0 0.0
    %1585 = vmatprep.subr.mxu0 0.0
    %1586 = vmatpush1.msra.mxu0 0.0
    %1587 = vmatprep.subr.mxu0 0.0
    %1588 = vmatpush1.msra.mxu0 0.0
    %1589 = vmatprep.subr.mxu0 0.0
    %1590 = vmatpush1.msra.mxu0 0.0
    %1591 = vmatprep.subr.mxu0 0.0
    %1592 = vmatpush1.msra.mxu0 0.0
    %1593 = vmatprep.subr.mxu0 0.0
    %1594 = vmatpush1.msra.mxu0 0.0
    %1595 = vmatprep.subr.mxu0 0.0
    %1596 = vmatpush1.msra.mxu0 0.0
    %1597 = vmatprep.subr.mxu0 0.0
    %1598 = vmatpush1.msra.mxu0 0.0
    %1599 = vmatprep.subr.mxu0 0.0
    %1600 = vmatpush1.msra.mxu0 0.0
    %1601 = vmatprep.subr.mxu0 0.0
    %1602 = vmatpush1.msra.mxu0 0.0
    %1603 = vmatprep.subr.mxu0 0.0
    %1604 = vmatpush1.msra.mxu0 0.0
    %1605 = vmatprep.subr.mxu0 0.0
    %1606 = vmatpush1.msra.mxu0 0.0
    %1607 = vmatprep.subr.mxu0 0.0
    %1608 = vmatpush1.msra.mxu0 0.0
    %1609 = vmatprep.subr.mxu0 0.0
    %1610 = vmatpush1.msra.mxu0 0.0
    %1611 = vmatprep.subr.mxu0 0.0
    %1612 = vmatpush1.msra.mxu0 0.0
    %1613 = vmatprep.subr.mxu0 0.0
    %1614 = vmatpush1.msra.mxu0 0.0
    %1615 = vmatprep.subr.mxu0 0.0
    %1616 = vmatpush1.msra.mxu0 0.0
    %1617 = vmatprep.subr.mxu0 0.0
    %1618 = vmatpush1.msra.mxu0 0.0
    %1619 = vmatprep.subr.mxu0 0.0
    %1620 = vmatpush1.msra.mxu0 0.0
    %1621 = vmatprep.subr.mxu0 0.0
    %1622 = vmatpush1.msra.mxu0 0.0
    %1623 = vmatprep.subr.mxu0 0.0
    %1624 = vmatpush1.msra.mxu0 0.0
    %1625 = vmatprep.subr.mxu0 0.0
    %1626 = vmatpush1.msra.mxu0 0.0
    %1627 = vmatprep.subr.mxu0 0.0
    %1628 = vmatpush1.msra.mxu0 0.0
    %1629 = vmatprep.subr.mxu0 0.0
    %1630 = vmatpush1.msra.mxu0 0.0
    %1631 = vmatprep.subr.mxu0 0.0
    %1632 = vmatpush1.msra.mxu0 0.0
    %1633 = vmatprep.subr.mxu0 0.0
    %1634 = vmatpush1.msra.mxu0 0.0
    %1635 = vmatprep.subr.mxu0 0.0
    %1636 = vmatpush1.msra.mxu0 0.0
    %1637 = vmatprep.mubr.f32.mxu0 0.0
    %1638 = vmatmul.mubr.f32.gmra.mrb[0].mxu0 %v1568
    %v1639 = vpop.f32.mrb[0].mxu0
    %v1640 = vadd.f32 %v1565, %v1639
    %v1641 = vpop.f32.mrb[0].mxu0
    %1642 = vdwg.mxu0
    %v1643 = vld [vmem:[#allocation2] sm:$0x7]
    %v1644 = vld [vmem:[#allocation3] sm:$0x7]
    %v1646 = vrot.slane %v1644, 5
    %v1648 = vsel %vm1560, %v1643, %v1646
    %v1650 = vsel %vm265, %v1448, 0
    %v1653 = vsel %vm275, %v1648, 0
    %1655 = vmatprep.subr.mxu0 0.0
    %1656 = vmatpush1.msra.mxu0 %v1653
    %1657 = vmatprep.subr.mxu0 0.0
    %1658 = vmatpush1.msra.mxu0 0.0
    %1659 = vmatprep.subr.mxu0 0.0
    %1660 = vmatpush1.msra.mxu0 0.0
    %1661 = vmatprep.subr.mxu0 0.0
    %1662 = vmatpush1.msra.mxu0 0.0
    %1663 = vmatprep.subr.mxu0 0.0
    %1664 = vmatpush1.msra.mxu0 0.0
    %1665 = vmatprep.subr.mxu0 0.0
    %1666 = vmatpush1.msra.mxu0 0.0
    %1667 = vmatprep.subr.mxu0 0.0
    %1668 = vmatpush1.msra.mxu0 0.0
    %1669 = vmatprep.subr.mxu0 0.0
    %1670 = vmatpush1.msra.mxu0 0.0
    %1671 = vmatprep.subr.mxu0 0.0
    %1672 = vmatpush1.msra.mxu0 0.0
    %1673 = vmatprep.subr.mxu0 0.0
    %1674 = vmatpush1.msra.mxu0 0.0
    %1675 = vmatprep.subr.mxu0 0.0
    %1676 = vmatpush1.msra.mxu0 0.0
    %1677 = vmatprep.subr.mxu0 0.0
    %1678 = vmatpush1.msra.mxu0 0.0
    %1679 = vmatprep.subr.mxu0 0.0
    %1680 = vmatpush1.msra.mxu0 0.0
    %1681 = vmatprep.subr.mxu0 0.0
    %1682 = vmatpush1.msra.mxu0 0.0
    %1683 = vmatprep.subr.mxu0 0.0
    %1684 = vmatpush1.msra.mxu0 0.0
    %1685 = vmatprep.subr.mxu0 0.0
    %1686 = vmatpush1.msra.mxu0 0.0
    %1687 = vmatprep.subr.mxu0 0.0
    %1688 = vmatpush1.msra.mxu0 0.0
    %1689 = vmatprep.subr.mxu0 0.0
    %1690 = vmatpush1.msra.mxu0 0.0
    %1691 = vmatprep.subr.mxu0 0.0
    %1692 = vmatpush1.msra.mxu0 0.0
    %1693 = vmatprep.subr.mxu0 0.0
    %1694 = vmatpush1.msra.mxu0 0.0
    %1695 = vmatprep.subr.mxu0 0.0
    %1696 = vmatpush1.msra.mxu0 0.0
    %1697 = vmatprep.subr.mxu0 0.0
    %1698 = vmatpush1.msra.mxu0 0.0
    %1699 = vmatprep.subr.mxu0 0.0
    %1700 = vmatpush1.msra.mxu0 0.0
    %1701 = vmatprep.subr.mxu0 0.0
    %1702 = vmatpush1.msra.mxu0 0.0
    %1703 = vmatprep.subr.mxu0 0.0
    %1704 = vmatpush1.msra.mxu0 0.0
    %1705 = vmatprep.subr.mxu0 0.0
    %1706 = vmatpush1.msra.mxu0 0.0
    %1707 = vmatprep.subr.mxu0 0.0
    %1708 = vmatpush1.msra.mxu0 0.0
    %1709 = vmatprep.subr.mxu0 0.0
    %1710 = vmatpush1.msra.mxu0 0.0
    %1711 = vmatprep.subr.mxu0 0.0
    %1712 = vmatpush1.msra.mxu0 0.0
    %1713 = vmatprep.subr.mxu0 0.0
    %1714 = vmatpush1.msra.mxu0 0.0
    %1715 = vmatprep.subr.mxu0 0.0
    %1716 = vmatpush1.msra.mxu0 0.0
    %1717 = vmatprep.subr.mxu0 0.0
    %1718 = vmatpush1.msra.mxu0 0.0
    %1719 = vmatprep.mubr.f32.mxu0 0.0
    %1720 = vmatmul.mubr.f32.gmra.mrb[0].mxu0 %v1650
    %v1721 = vpop.f32.mrb[0].mxu0
    %v1722 = vadd.f32 %v1640, %v1721
    %v1723 = vpop.f32.mrb[0].mxu0
    %1724 = vdwg.mxu0
    %v1725 = vtanh.pop %v1722
    %1726 = vset.pattern.permute.xlu0 1
    %1727 = vperm.xlu0 %1726, %v1456
    %v1728 = vpop.permute.xlu0 %1727
    %v1730 = vmul.f32 %v1728, %v1725
    %vm1731 = vcmask 519168
    %v1732 = vsel %vm1731, %v1730, 0.0
    %v1733 = vrot.slane %v1732, 4
    %v1734 = vadd.f32 %v1732, %v1733
    %v1735 = vrot.slane %v1734, 2
    %v1736 = vadd.f32 %v1734, %v1735
    %v1737 = vrot.slane %v1736, 1
    %v1738 = vadd.f32 %v1736, %v1737
    %v1739 = vld [vmem:[%s564] sm:$0x7]
    %v1740 = vld [vmem:[%s1288] sm:$0x7]
    %v1742 = vrot.slane %v1740, 5
    %v1744 = vsel %vm1560, %v1739, %v1742
    %v1746 = vsel %vm275, %v1744, 0
    %1748 = vmatprep.subr.mxu0 0.0
    %1749 = vmatpush1.msra.mxu0 %v1746
    %1750 = vmatprep.subr.mxu0 0.0
    %1751 = vmatpush1.msra.mxu0 0.0
    %1752 = vmatprep.subr.mxu0 0.0
    %1753 = vmatpush1.msra.mxu0 0.0
    %1754 = vmatprep.subr.mxu0 0.0
    %1755 = vmatpush1.msra.mxu0 0.0
    %1756 = vmatprep.subr.mxu0 0.0
    %1757 = vmatpush1.msra.mxu0 0.0
    %1758 = vmatprep.subr.mxu0 0.0
    %1759 = vmatpush1.msra.mxu0 0.0
    %1760 = vmatprep.subr.mxu0 0.0
    %1761 = vmatpush1.msra.mxu0 0.0
    %1762 = vmatprep.subr.mxu0 0.0
    %1763 = vmatpush1.msra.mxu0 0.0
    %1764 = vmatprep.subr.mxu0 0.0
    %1765 = vmatpush1.msra.mxu0 0.0
    %1766 = vmatprep.subr.mxu0 0.0
    %1767 = vmatpush1.msra.mxu0 0.0
    %1768 = vmatprep.subr.mxu0 0.0
    %1769 = vmatpush1.msra.mxu0 0.0
    %1770 = vmatprep.subr.mxu0 0.0
    %1771 = vmatpush1.msra.mxu0 0.0
    %1772 = vmatprep.subr.mxu0 0.0
    %1773 = vmatpush1.msra.mxu0 0.0
    %1774 = vmatprep.subr.mxu0 0.0
    %1775 = vmatpush1.msra.mxu0 0.0
    %1776 = vmatprep.subr.mxu0 0.0
    %1777 = vmatpush1.msra.mxu0 0.0
    %1778 = vmatprep.subr.mxu0 0.0
    %1779 = vmatpush1.msra.mxu0 0.0
    %1780 = vmatprep.subr.mxu0 0.0
    %1781 = vmatpush1.msra.mxu0 0.0
    %1782 = vmatprep.subr.mxu0 0.0
    %1783 = vmatpush1.msra.mxu0 0.0
    %1784 = vmatprep.subr.mxu0 0.0
    %1785 = vmatpush1.msra.mxu0 0.0
    %1786 = vmatprep.subr.mxu0 0.0
    %1787 = vmatpush1.msra.mxu0 0.0
    %1788 = vmatprep.subr.mxu0 0.0
    %1789 = vmatpush1.msra.mxu0 0.0
    %1790 = vmatprep.subr.mxu0 0.0
    %1791 = vmatpush1.msra.mxu0 0.0
    %1792 = vmatprep.subr.mxu0 0.0
    %1793 = vmatpush1.msra.mxu0 0.0
    %1794 = vmatprep.subr.mxu0 0.0
    %1795 = vmatpush1.msra.mxu0 0.0
    %1796 = vmatprep.subr.mxu0 0.0
    %1797 = vmatpush1.msra.mxu0 0.0
    %1798 = vmatprep.subr.mxu0 0.0
    %1799 = vmatpush1.msra.mxu0 0.0
    %1800 = vmatprep.subr.mxu0 0.0
    %1801 = vmatpush1.msra.mxu0 0.0
    %1802 = vmatprep.subr.mxu0 0.0
    %1803 = vmatpush1.msra.mxu0 0.0
    %1804 = vmatprep.subr.mxu0 0.0
    %1805 = vmatpush1.msra.mxu0 0.0
    %1806 = vmatprep.subr.mxu0 0.0
    %1807 = vmatpush1.msra.mxu0 0.0
    %1808 = vmatprep.subr.mxu0 0.0
    %1809 = vmatpush1.msra.mxu0 0.0
    %1810 = vmatprep.subr.mxu0 0.0
    %1811 = vmatpush1.msra.mxu0 0.0
    %1812 = vmatprep.mubr.f32.mxu0 0.0
    %1813 = vmatmul.mubr.f32.gmra.mrb[0].mxu0 %v1650
    %v1814 = vpop.f32.mrb[0].mxu0
    %v1815 = vadd.f32 %v1640, %v1814
    %v1816 = vpop.f32.mrb[0].mxu0
    %1817 = vdwg.mxu0
    %v1818 = vtanh.pop %v1815
    %v1819 = vmul.f32 %v1728, %v1818
    %v1820 = vsel %vm1731, %v1819, 0.0
    %v1821 = vrot.slane %v1820, 4
    %v1822 = vadd.f32 %v1820, %v1821
    %v1823 = vrot.slane %v1822, 2
    %v1824 = vadd.f32 %v1822, %v1823
    %v1825 = vrot.slane %v1824, 1
    %v1826 = vadd.f32 %v1824, %v1825
    %v1827 = vld [vmem:[%s699] sm:$0x7]
    %v1828 = vld [vmem:[%s1153] sm:$0x7]
    %v1830 = vrot.slane %v1828, 5
    %v1832 = vsel %vm1560, %v1827, %v1830
    %v1834 = vsel %vm275, %v1832, 0
    %1836 = vmatprep.subr.mxu0 0.0
    %1837 = vmatpush1.msra.mxu0 %v1834
    %1838 = vmatprep.subr.mxu0 0.0
    %1839 = vmatpush1.msra.mxu0 0.0
    %1840 = vmatprep.subr.mxu0 0.0
    %1841 = vmatpush1.msra.mxu0 0.0
    %1842 = vmatprep.subr.mxu0 0.0
    %1843 = vmatpush1.msra.mxu0 0.0
    %1844 = vmatprep.subr.mxu0 0.0
    %1845 = vmatpush1.msra.mxu0 0.0
    %1846 = vmatprep.subr.mxu0 0.0
    %1847 = vmatpush1.msra.mxu0 0.0
    %1848 = vmatprep.subr.mxu0 0.0
    %1849 = vmatpush1.msra.mxu0 0.0
    %1850 = vmatprep.subr.mxu0 0.0
    %1851 = vmatpush1.msra.mxu0 0.0
    %1852 = vmatprep.subr.mxu0 0.0
    %1853 = vmatpush1.msra.mxu0 0.0
    %1854 = vmatprep.subr.mxu0 0.0
    %1855 = vmatpush1.msra.mxu0 0.0
    %1856 = vmatprep.subr.mxu0 0.0
    %1857 = vmatpush1.msra.mxu0 0.0
    %1858 = vmatprep.subr.mxu0 0.0
    %1859 = vmatpush1.msra.mxu0 0.0
    %1860 = vmatprep.subr.mxu0 0.0
    %1861 = vmatpush1.msra.mxu0 0.0
    %1862 = vmatprep.subr.mxu0 0.0
    %1863 = vmatpush1.msra.mxu0 0.0
    %1864 = vmatprep.subr.mxu0 0.0
    %1865 = vmatpush1.msra.mxu0 0.0
    %1866 = vmatprep.subr.mxu0 0.0
    %1867 = vmatpush1.msra.mxu0 0.0
    %1868 = vmatprep.subr.mxu0 0.0
    %1869 = vmatpush1.msra.mxu0 0.0
    %1870 = vmatprep.subr.mxu0 0.0
    %1871 = vmatpush1.msra.mxu0 0.0
    %1872 = vmatprep.subr.mxu0 0.0
    %1873 = vmatpush1.msra.mxu0 0.0
    %1874 = vmatprep.subr.mxu0 0.0
    %1875 = vmatpush1.msra.mxu0 0.0
    %1876 = vmatprep.subr.mxu0 0.0
    %1877 = vmatpush1.msra.mxu0 0.0
    %1878 = vmatprep.subr.mxu0 0.0
    %1879 = vmatpush1.msra.mxu0 0.0
    %1880 = vmatprep.subr.mxu0 0.0
    %1881 = vmatpush1.msra.mxu0 0.0
    %1882 = vmatprep.subr.mxu0 0.0
    %1883 = vmatpush1.msra.mxu0 0.0
    %1884 = vmatprep.subr.mxu0 0.0
    %1885 = vmatpush1.msra.mxu0 0.0
    %1886 = vmatprep.subr.mxu0 0.0
    %1887 = vmatpush1.msra.mxu0 0.0
    %1888 = vmatprep.subr.mxu0 0.0
    %1889 = vmatpush1.msra.mxu0 0.0
    %1890 = vmatprep.subr.mxu0 0.0
    %1891 = vmatpush1.msra.mxu0 0.0
    %1892 = vmatprep.subr.mxu0 0.0
    %1893 = vmatpush1.msra.mxu0 0.0
    %1894 = vmatprep.subr.mxu0 0.0
    %1895 = vmatpush1.msra.mxu0 0.0
    %1896 = vmatprep.subr.mxu0 0.0
    %1897 = vmatpush1.msra.mxu0 0.0
    %1898 = vmatprep.subr.mxu0 0.0
    %1899 = vmatpush1.msra.mxu0 0.0
    %1900 = vmatprep.mubr.f32.mxu0 0.0
    %1901 = vmatmul.mubr.f32.gmra.mrb[0].mxu0 %v1650
    %v1902 = vpop.f32.mrb[0].mxu0
    %v1903 = vadd.f32 %v1640, %v1902
    %v1904 = vpop.f32.mrb[0].mxu0
    %1905 = vdwg.mxu0
    %v1906 = vtanh.pop %v1903
    %v1907 = vmul.f32 %v1728, %v1906
    %v1908 = vsel %vm1731, %v1907, 0.0
    %v1909 = vrot.slane %v1908, 4
    %v1910 = vadd.f32 %v1908, %v1909
    %v1911 = vrot.slane %v1910, 2
    %v1912 = vadd.f32 %v1910, %v1911
    %v1913 = vrot.slane %v1912, 1
    %v1914 = vadd.f32 %v1912, %v1913
    %v1915 = vld [vmem:[%s857] sm:$0x7]
    %v1916 = vld [vmem:[%s995] sm:$0x7]
    %v1918 = vrot.slane %v1916, 5
    %v1920 = vsel %vm1560, %v1915, %v1918
    %v1922 = vsel %vm275, %v1920, 0
    %1924 = vmatprep.subr.mxu0 0.0
    %1925 = vmatpush1.msra.mxu0 %v1922
    %1926 = vmatprep.subr.mxu0 0.0
    %1927 = vmatpush1.msra.mxu0 0.0
    %1928 = vmatprep.subr.mxu0 0.0
    %1929 = vmatpush1.msra.mxu0 0.0
    %1930 = vmatprep.subr.mxu0 0.0
    %1931 = vmatpush1.msra.mxu0 0.0
    %1932 = vmatprep.subr.mxu0 0.0
    %1933 = vmatpush1.msra.mxu0 0.0
    %1934 = vmatprep.subr.mxu0 0.0
    %1935 = vmatpush1.msra.mxu0 0.0
    %1936 = vmatprep.subr.mxu0 0.0
    %1937 = vmatpush1.msra.mxu0 0.0
    %1938 = vmatprep.subr.mxu0 0.0
    %1939 = vmatpush1.msra.mxu0 0.0
    %1940 = vmatprep.subr.mxu0 0.0
    %1941 = vmatpush1.msra.mxu0 0.0
    %1942 = vmatprep.subr.mxu0 0.0
    %1943 = vmatpush1.msra.mxu0 0.0
    %1944 = vmatprep.subr.mxu0 0.0
    %1945 = vmatpush1.msra.mxu0 0.0
    %1946 = vmatprep.subr.mxu0 0.0
    %1947 = vmatpush1.msra.mxu0 0.0
    %1948 = vmatprep.subr.mxu0 0.0
    %1949 = vmatpush1.msra.mxu0 0.0
    %1950 = vmatprep.subr.mxu0 0.0
    %1951 = vmatpush1.msra.mxu0 0.0
    %1952 = vmatprep.subr.mxu0 0.0
    %1953 = vmatpush1.msra.mxu0 0.0
    %1954 = vmatprep.subr.mxu0 0.0
    %1955 = vmatpush1.msra.mxu0 0.0
    %1956 = vmatprep.subr.mxu0 0.0
    %1957 = vmatpush1.msra.mxu0 0.0
    %1958 = vmatprep.subr.mxu0 0.0
    %1959 = vmatpush1.msra.mxu0 0.0
    %1960 = vmatprep.subr.mxu0 0.0
    %1961 = vmatpush1.msra.mxu0 0.0
    %1962 = vmatprep.subr.mxu0 0.0
    %1963 = vmatpush1.msra.mxu0 0.0
    %1964 = vmatprep.subr.mxu0 0.0
    %1965 = vmatpush1.msra.mxu0 0.0
    %1966 = vmatprep.subr.mxu0 0.0
    %1967 = vmatpush1.msra.mxu0 0.0
    %1968 = vmatprep.subr.mxu0 0.0
    %1969 = vmatpush1.msra.mxu0 0.0
    %1970 = vmatprep.subr.mxu0 0.0
    %1971 = vmatpush1.msra.mxu0 0.0
    %1972 = vmatprep.subr.mxu0 0.0
    %1973 = vmatpush1.msra.mxu0 0.0
    %1974 = vmatprep.subr.mxu0 0.0
    %1975 = vmatpush1.msra.mxu0 0.0
    %1976 = vmatprep.subr.mxu0 0.0
    %1977 = vmatpush1.msra.mxu0 0.0
    %1978 = vmatprep.subr.mxu0 0.0
    %1979 = vmatpush1.msra.mxu0 0.0
    %1980 = vmatprep.subr.mxu0 0.0
    %1981 = vmatpush1.msra.mxu0 0.0
    %1982 = vmatprep.subr.mxu0 0.0
    %1983 = vmatpush1.msra.mxu0 0.0
    %1984 = vmatprep.subr.mxu0 0.0
    %1985 = vmatpush1.msra.mxu0 0.0
    %1986 = vmatprep.subr.mxu0 0.0
    %1987 = vmatpush1.msra.mxu0 0.0
    %1988 = vmatprep.mubr.f32.mxu0 0.0
    %1989 = vmatmul.mubr.f32.gmra.mrb[0].mxu0 %v1650
    %v1990 = vpop.f32.mrb[0].mxu0
    %v1991 = vadd.f32 %v1640, %v1990
    %v1992 = vpop.f32.mrb[0].mxu0
    %1993 = vdwg.mxu0
    %v1994 = vtanh.pop %v1991
    %v1995 = vmul.f32 %v1728, %v1994
    %v1996 = vsel %vm1731, %v1995, 0.0
    %v1997 = vrot.slane %v1996, 4
    %v1998 = vadd.f32 %v1996, %v1997
    %v1999 = vrot.slane %v1998, 2
    %v2000 = vadd.f32 %v1998, %v1999
    %v2001 = vrot.slane %v2000, 1
    %v2002 = vadd.f32 %v2000, %v2001
    %v2003 = vld [vmem:[%s992] sm:$0x7]
    %v2004 = vld [vmem:[%s860] sm:$0x7]
    %v2006 = vrot.slane %v2004, 5
    %v2008 = vsel %vm1560, %v2003, %v2006
    %v2010 = vsel %vm275, %v2008, 0
    %2012 = vmatprep.subr.mxu0 0.0
    %2013 = vmatpush1.msra.mxu0 %v2010
    %2014 = vmatprep.subr.mxu0 0.0
    %2015 = vmatpush1.msra.mxu0 0.0
    %2016 = vmatprep.subr.mxu0 0.0
    %2017 = vmatpush1.msra.mxu0 0.0
    %2018 = vmatprep.subr.mxu0 0.0
    %2019 = vmatpush1.msra.mxu0 0.0
    %2020 = vmatprep.subr.mxu0 0.0
    %2021 = vmatpush1.msra.mxu0 0.0
    %2022 = vmatprep.subr.mxu0 0.0
    %2023 = vmatpush1.msra.mxu0 0.0
    %2024 = vmatprep.subr.mxu0 0.0
    %2025 = vmatpush1.msra.mxu0 0.0
    %2026 = vmatprep.subr.mxu0 0.0
    %2027 = vmatpush1.msra.mxu0 0.0
    %2028 = vmatprep.subr.mxu0 0.0
    %2029 = vmatpush1.msra.mxu0 0.0
    %2030 = vmatprep.subr.mxu0 0.0
    %2031 = vmatpush1.msra.mxu0 0.0
    %2032 = vmatprep.subr.mxu0 0.0
    %2033 = vmatpush1.msra.mxu0 0.0
    %2034 = vmatprep.subr.mxu0 0.0
    %2035 = vmatpush1.msra.mxu0 0.0
    %2036 = vmatprep.subr.mxu0 0.0
    %2037 = vmatpush1.msra.mxu0 0.0
    %2038 = vmatprep.subr.mxu0 0.0
    %2039 = vmatpush1.msra.mxu0 0.0
    %2040 = vmatprep.subr.mxu0 0.0
    %2041 = vmatpush1.msra.mxu0 0.0
    %2042 = vmatprep.subr.mxu0 0.0
    %2043 = vmatpush1.msra.mxu0 0.0
    %2044 = vmatprep.subr.mxu0 0.0
    %2045 = vmatpush1.msra.mxu0 0.0
    %2046 = vmatprep.subr.mxu0 0.0
    %2047 = vmatpush1.msra.mxu0 0.0
    %2048 = vmatprep.subr.mxu0 0.0
    %2049 = vmatpush1.msra.mxu0 0.0
    %2050 = vmatprep.subr.mxu0 0.0
    %2051 = vmatpush1.msra.mxu0 0.0
    %2052 = vmatprep.subr.mxu0 0.0
    %2053 = vmatpush1.msra.mxu0 0.0
    %2054 = vmatprep.subr.mxu0 0.0
    %2055 = vmatpush1.msra.mxu0 0.0
    %2056 = vmatprep.subr.mxu0 0.0
    %2057 = vmatpush1.msra.mxu0 0.0
    %2058 = vmatprep.subr.mxu0 0.0
    %2059 = vmatpush1.msra.mxu0 0.0
    %2060 = vmatprep.subr.mxu0 0.0
    %2061 = vmatpush1.msra.mxu0 0.0
    %2062 = vmatprep.subr.mxu0 0.0
    %2063 = vmatpush1.msra.mxu0 0.0
    %2064 = vmatprep.subr.mxu0 0.0
    %2065 = vmatpush1.msra.mxu0 0.0
    %2066 = vmatprep.subr.mxu0 0.0
    %2067 = vmatpush1.msra.mxu0 0.0
    %2068 = vmatprep.subr.mxu0 0.0
    %2069 = vmatpush1.msra.mxu0 0.0
    %2070 = vmatprep.subr.mxu0 0.0
    %2071 = vmatpush1.msra.mxu0 0.0
    %2072 = vmatprep.subr.mxu0 0.0
    %2073 = vmatpush1.msra.mxu0 0.0
    %2074 = vmatprep.subr.mxu0 0.0
    %2075 = vmatpush1.msra.mxu0 0.0
    %2076 = vmatprep.mubr.f32.mxu0 0.0
    %2077 = vmatmul.mubr.f32.gmra.mrb[0].mxu0 %v1650
    %v2078 = vpop.f32.mrb[0].mxu0
    %v2079 = vadd.f32 %v1640, %v2078
    %v2080 = vpop.f32.mrb[0].mxu0
    %2081 = vdwg.mxu0
    %v2082 = vtanh.pop %v2079
    %v2083 = vmul.f32 %v1728, %v2082
    %v2084 = vsel %vm1731, %v2083, 0.0
    %v2085 = vrot.slane %v2084, 4
    %v2086 = vadd.f32 %v2084, %v2085
    %v2087 = vrot.slane %v2086, 2
    %v2088 = vadd.f32 %v2086, %v2087
    %v2089 = vrot.slane %v2088, 1
    %v2090 = vadd.f32 %v2088, %v2089
    %v2091 = vld [vmem:[%s1150] sm:$0x7]
    %v2092 = vld [vmem:[%s702] sm:$0x7]
    %v2094 = vrot.slane %v2092, 5
    %v2096 = vsel %vm1560, %v2091, %v2094
    %v2098 = vsel %vm275, %v2096, 0
    %2100 = vmatprep.subr.mxu0 0.0
    %2101 = vmatpush1.msra.mxu0 %v2098
    %2102 = vmatprep.subr.mxu0 0.0
    %2103 = vmatpush1.msra.mxu0 0.0
    %2104 = vmatprep.subr.mxu0 0.0
    %2105 = vmatpush1.msra.mxu0 0.0
    %2106 = vmatprep.subr.mxu0 0.0
    %2107 = vmatpush1.msra.mxu0 0.0
    %2108 = vmatprep.subr.mxu0 0.0
    %2109 = vmatpush1.msra.mxu0 0.0
    %2110 = vmatprep.subr.mxu0 0.0
    %2111 = vmatpush1.msra.mxu0 0.0
    %2112 = vmatprep.subr.mxu0 0.0
    %2113 = vmatpush1.msra.mxu0 0.0
    %2114 = vmatprep.subr.mxu0 0.0
    %2115 = vmatpush1.msra.mxu0 0.0
    %2116 = vmatprep.subr.mxu0 0.0
    %2117 = vmatpush1.msra.mxu0 0.0
    %2118 = vmatprep.subr.mxu0 0.0
    %2119 = vmatpush1.msra.mxu0 0.0
    %2120 = vmatprep.subr.mxu0 0.0
    %2121 = vmatpush1.msra.mxu0 0.0
    %2122 = vmatprep.subr.mxu0 0.0
    %2123 = vmatpush1.msra.mxu0 0.0
    %2124 = vmatprep.subr.mxu0 0.0
    %2125 = vmatpush1.msra.mxu0 0.0
    %2126 = vmatprep.subr.mxu0 0.0
    %2127 = vmatpush1.msra.mxu0 0.0
    %2128 = vmatprep.subr.mxu0 0.0
    %2129 = vmatpush1.msra.mxu0 0.0
    %2130 = vmatprep.subr.mxu0 0.0
    %2131 = vmatpush1.msra.mxu0 0.0
    %2132 = vmatprep.subr.mxu0 0.0
    %2133 = vmatpush1.msra.mxu0 0.0
    %2134 = vmatprep.subr.mxu0 0.0
    %2135 = vmatpush1.msra.mxu0 0.0
    %2136 = vmatprep.subr.mxu0 0.0
    %2137 = vmatpush1.msra.mxu0 0.0
    %2138 = vmatprep.subr.mxu0 0.0
    %2139 = vmatpush1.msra.mxu0 0.0
    %2140 = vmatprep.subr.mxu0 0.0
    %2141 = vmatpush1.msra.mxu0 0.0
    %2142 = vmatprep.subr.mxu0 0.0
    %2143 = vmatpush1.msra.mxu0 0.0
    %2144 = vmatprep.subr.mxu0 0.0
    %2145 = vmatpush1.msra.mxu0 0.0
    %2146 = vmatprep.subr.mxu0 0.0
    %2147 = vmatpush1.msra.mxu0 0.0
    %2148 = vmatprep.subr.mxu0 0.0
    %2149 = vmatpush1.msra.mxu0 0.0
    %2150 = vmatprep.subr.mxu0 0.0
    %2151 = vmatpush1.msra.mxu0 0.0
    %2152 = vmatprep.subr.mxu0 0.0
    %2153 = vmatpush1.msra.mxu0 0.0
    %2154 = vmatprep.subr.mxu0 0.0
    %2155 = vmatpush1.msra.mxu0 0.0
    %2156 = vmatprep.subr.mxu0 0.0
    %2157 = vmatpush1.msra.mxu0 0.0
    %2158 = vmatprep.subr.mxu0 0.0
    %2159 = vmatpush1.msra.mxu0 0.0
    %2160 = vmatprep.subr.mxu0 0.0
    %2161 = vmatpush1.msra.mxu0 0.0
    %2162 = vmatprep.subr.mxu0 0.0
    %2163 = vmatpush1.msra.mxu0 0.0
    %2164 = vmatprep.mubr.f32.mxu0 0.0
    %2165 = vmatmul.mubr.f32.gmra.mrb[0].mxu0 %v1650
    %v2166 = vpop.f32.mrb[0].mxu0
    %v2167 = vadd.f32 %v1640, %v2166
    %v2168 = vpop.f32.mrb[0].mxu0
    %2169 = vdwg.mxu0
    %v2170 = vtanh.pop %v2167
    %v2171 = vmul.f32 %v1728, %v2170
    %v2172 = vsel %vm1731, %v2171, 0.0
    %v2173 = vrot.slane %v2172, 4
    %v2174 = vadd.f32 %v2172, %v2173
    %v2175 = vrot.slane %v2174, 2
    %v2176 = vadd.f32 %v2174, %v2175
    %v2177 = vrot.slane %v2176, 1
    %v2178 = vadd.f32 %v2176, %v2177
    %v2179 = vld [vmem:[%s1285] sm:$0x7]
    %v2180 = vld [vmem:[%s567] sm:$0x7]
    %v2182 = vrot.slane %v2180, 5
    %v2184 = vsel %vm1560, %v2179, %v2182
    %v2186 = vsel %vm275, %v2184, 0
    %2188 = vmatprep.subr.mxu0 0.0
    %2189 = vmatpush1.msra.mxu0 %v2186
    %2190 = vmatprep.subr.mxu0 0.0
    %2191 = vmatpush1.msra.mxu0 0.0
    %2192 = vmatprep.subr.mxu0 0.0
    %2193 = vmatpush1.msra.mxu0 0.0
    %2194 = vmatprep.subr.mxu0 0.0
    %2195 = vmatpush1.msra.mxu0 0.0
    %2196 = vmatprep.subr.mxu0 0.0
    %2197 = vmatpush1.msra.mxu0 0.0
    %2198 = vmatprep.subr.mxu0 0.0
    %2199 = vmatpush1.msra.mxu0 0.0
    %2200 = vmatprep.subr.mxu0 0.0
    %2201 = vmatpush1.msra.mxu0 0.0
    %2202 = vmatprep.subr.mxu0 0.0
    %2203 = vmatpush1.msra.mxu0 0.0
    %2204 = vmatprep.subr.mxu0 0.0
    %2205 = vmatpush1.msra.mxu0 0.0
    %2206 = vmatprep.subr.mxu0 0.0
    %2207 = vmatpush1.msra.mxu0 0.0
    %2208 = vmatprep.subr.mxu0 0.0
    %2209 = vmatpush1.msra.mxu0 0.0
    %2210 = vmatprep.subr.mxu0 0.0
    %2211 = vmatpush1.msra.mxu0 0.0
    %2212 = vmatprep.subr.mxu0 0.0
    %2213 = vmatpush1.msra.mxu0 0.0
    %2214 = vmatprep.subr.mxu0 0.0
    %2215 = vmatpush1.msra.mxu0 0.0
    %2216 = vmatprep.subr.mxu0 0.0
    %2217 = vmatpush1.msra.mxu0 0.0
    %2218 = vmatprep.subr.mxu0 0.0
    %2219 = vmatpush1.msra.mxu0 0.0
    %2220 = vmatprep.subr.mxu0 0.0
    %2221 = vmatpush1.msra.mxu0 0.0
    %2222 = vmatprep.subr.mxu0 0.0
    %2223 = vmatpush1.msra.mxu0 0.0
    %2224 = vmatprep.subr.mxu0 0.0
    %2225 = vmatpush1.msra.mxu0 0.0
    %2226 = vmatprep.subr.mxu0 0.0
    %2227 = vmatpush1.msra.mxu0 0.0
    %2228 = vmatprep.subr.mxu0 0.0
    %2229 = vmatpush1.msra.mxu0 0.0
    %2230 = vmatprep.subr.mxu0 0.0
    %2231 = vmatpush1.msra.mxu0 0.0
    %2232 = vmatprep.subr.mxu0 0.0
    %2233 = vmatpush1.msra.mxu0 0.0
    %2234 = vmatprep.subr.mxu0 0.0
    %2235 = vmatpush1.msra.mxu0 0.0
    %2236 = vmatprep.subr.mxu0 0.0
    %2237 = vmatpush1.msra.mxu0 0.0
    %2238 = vmatprep.subr.mxu0 0.0
    %2239 = vmatpush1.msra.mxu0 0.0
    %2240 = vmatprep.subr.mxu0 0.0
    %2241 = vmatpush1.msra.mxu0 0.0
    %2242 = vmatprep.subr.mxu0 0.0
    %2243 = vmatpush1.msra.mxu0 0.0
    %2244 = vmatprep.subr.mxu0 0.0
    %2245 = vmatpush1.msra.mxu0 0.0
    %2246 = vmatprep.subr.mxu0 0.0
    %2247 = vmatpush1.msra.mxu0 0.0
    %2248 = vmatprep.subr.mxu0 0.0
    %2249 = vmatpush1.msra.mxu0 0.0
    %2250 = vmatprep.subr.mxu0 0.0
    %2251 = vmatpush1.msra.mxu0 0.0
    %2252 = vmatprep.mubr.f32.mxu0 0.0
    %2253 = vmatmul.mubr.f32.gmra.mrb[0].mxu0 %v1650
    %v2254 = vpop.f32.mrb[0].mxu0
    %v2255 = vadd.f32 %v1640, %v2254
    %v2256 = vpop.f32.mrb[0].mxu0
    %2257 = vdwg.mxu0
    %v2258 = vtanh.pop %v2255
    %v2259 = vmul.f32 %v1728, %v2258
    %v2260 = vsel %vm1731, %v2259, 0.0
    %v2261 = vrot.slane %v2260, 4
    %v2262 = vadd.f32 %v2260, %v2261
    %v2263 = vrot.slane %v2262, 2
    %v2264 = vadd.f32 %v2262, %v2263
    %v2265 = vrot.slane %v2264, 1
    %v2266 = vadd.f32 %v2264, %v2265
    %v2267 = vld [vmem:[%s1443] sm:$0x7]
    %v2268 = vld [vmem:[%s408] sm:$0x7]
    %v2270 = vrot.slane %v2268, 5
    %v2272 = vsel %vm1560, %v2267, %v2270
    %v2274 = vsel %vm275, %v2272, 0
    %2276 = vmatprep.subr.mxu0 0.0
    %2277 = vmatpush1.msra.mxu0 %v2274
    %2278 = vmatprep.subr.mxu0 0.0
    %2279 = vmatpush1.msra.mxu0 0.0
    %2280 = vmatprep.subr.mxu0 0.0
    %2281 = vmatpush1.msra.mxu0 0.0
    %2282 = vmatprep.subr.mxu0 0.0
    %2283 = vmatpush1.msra.mxu0 0.0
    %2284 = vmatprep.subr.mxu0 0.0
    %2285 = vmatpush1.msra.mxu0 0.0
    %2286 = vmatprep.subr.mxu0 0.0
    %2287 = vmatpush1.msra.mxu0 0.0
    %2288 = vmatprep.subr.mxu0 0.0
    %2289 = vmatpush1.msra.mxu0 0.0
    %2290 = vmatprep.subr.mxu0 0.0
    %2291 = vmatpush1.msra.mxu0 0.0
    %2292 = vmatprep.subr.mxu0 0.0
    %2293 = vmatpush1.msra.mxu0 0.0
    %2294 = vmatprep.subr.mxu0 0.0
    %2295 = vmatpush1.msra.mxu0 0.0
    %2296 = vmatprep.subr.mxu0 0.0
    %2297 = vmatpush1.msra.mxu0 0.0
    %2298 = vmatprep.subr.mxu0 0.0
    %2299 = vmatpush1.msra.mxu0 0.0
    %2300 = vmatprep.subr.mxu0 0.0
    %2301 = vmatpush1.msra.mxu0 0.0
    %2302 = vmatprep.subr.mxu0 0.0
    %2303 = vmatpush1.msra.mxu0 0.0
    %2304 = vmatprep.subr.mxu0 0.0
    %2305 = vmatpush1.msra.mxu0 0.0
    %2306 = vmatprep.subr.mxu0 0.0
    %2307 = vmatpush1.msra.mxu0 0.0
    %2308 = vmatprep.subr.mxu0 0.0
    %2309 = vmatpush1.msra.mxu0 0.0
    %2310 = vmatprep.subr.mxu0 0.0
    %2311 = vmatpush1.msra.mxu0 0.0
    %2312 = vmatprep.subr.mxu0 0.0
    %2313 = vmatpush1.msra.mxu0 0.0
    %2314 = vmatprep.subr.mxu0 0.0
    %2315 = vmatpush1.msra.mxu0 0.0
    %2316 = vmatprep.subr.mxu0 0.0
    %2317 = vmatpush1.msra.mxu0 0.0
    %2318 = vmatprep.subr.mxu0 0.0
    %2319 = vmatpush1.msra.mxu0 0.0
    %2320 = vmatprep.subr.mxu0 0.0
    %2321 = vmatpush1.msra.mxu0 0.0
    %2322 = vmatprep.subr.mxu0 0.0
    %2323 = vmatpush1.msra.mxu0 0.0
    %2324 = vmatprep.subr.mxu0 0.0
    %2325 = vmatpush1.msra.mxu0 0.0
    %2326 = vmatprep.subr.mxu0 0.0
    %2327 = vmatpush1.msra.mxu0 0.0
    %2328 = vmatprep.subr.mxu0 0.0
    %2329 = vmatpush1.msra.mxu0 0.0
    %2330 = vmatprep.subr.mxu0 0.0
    %2331 = vmatpush1.msra.mxu0 0.0
    %2332 = vmatprep.subr.mxu0 0.0
    %2333 = vmatpush1.msra.mxu0 0.0
    %2334 = vmatprep.subr.mxu0 0.0
    %2335 = vmatpush1.msra.mxu0 0.0
    %2336 = vmatprep.subr.mxu0 0.0
    %2337 = vmatpush1.msra.mxu0 0.0
    %2338 = vmatprep.subr.mxu0 0.0
    %2339 = vmatpush1.msra.mxu0 0.0
    %2340 = vmatprep.mubr.f32.mxu0 0.0
    %2341 = vmatmul.mubr.f32.gmra.mrb[0].mxu0 %v1650
    %v2342 = vpop.f32.mrb[0].mxu0
    %v2343 = vadd.f32 %v1640, %v2342
    %v2344 = vpop.f32.mrb[0].mxu0
    %2345 = vdwg.mxu0
    %v2346 = vtanh.pop %v2343
    %v2347 = vmul.f32 %v1728, %v2346
    %v2348 = vsel %vm1731, %v2347, 0.0
    %v2349 = vrot.slane %v2348, 4
    %v2350 = vadd.f32 %v2348, %v2349
    %v2351 = vrot.slane %v2350, 2
    %v2352 = vadd.f32 %v2350, %v2351
    %v2353 = vrot.slane %v2352, 1
    %v2354 = vadd.f32 %v2352, %v2353
    %vm2355 = vcmask 1040384
    %v2356 = vsel %vm2355, %v1738, %v1826
    %v2357 = vsel %vm392, %v2356, %v1914
    %v2358 = vsel %vm1560, %v2357, %v2002
    %v2359 = vsel %vm375, %v2358, %v2090
    %v2360 = vsel %vm86, %v2359, %v2178
    %v2361 = vsel %vm275, %v2360, %v2266
    %vm2362 = vcmask 1046528
    %v2363 = vsel %vm2362, %v2361, %v2354
    %v2364 = vsel %vm1476, %v2363, -inf
    %v2365 = vrot.slane %v2364, 4
    %v2366 = vmax.f32 %v2364, %v2365
    %v2367 = vrot.slane %v2366, 2
    %v2368 = vmax.f32 %v2366, %v2367
    %v2369 = vrot.slane %v2368, 1
    %v2370 = vmax.f32 %v2368, %v2369
    %v2371 = vsub.f32 %v2363, %v2370
    %v2372 = vmul.f32 %v2371, 1.442695
    %v2373 = vpow.pop %v2372
    %v2374 = vsel %vm1476, %v2373, 0.0
    %v2375 = vrot.slane %v2374, 4
    %v2376 = vadd.f32 %v2374, %v2375
    %v2377 = vrot.slane %v2376, 2
    %v2378 = vadd.f32 %v2376, %v2377
    %v2379 = vrot.slane %v2378, 1
    %v2380 = vadd.f32 %v2378, %v2379
    %v2381 = vrcp.pop %v2380
    %v2382 = vmul.f32 %v2373, %v2381
    %v2383 = vlaneseq
    %v2384 = vshrl.u32 %v2383, 7
    %v2385 = vsub.s32 0, %v2384
    %v2386 = vrot.slane %v2382, %v2385
    %v2387 = vmul.f32 %v2386, %v1648
    %v2388 = vadd.f32 %v2387, 0.0
    %v2389 = vlaneseq
    %v2390 = vshrl.u32 %v2389, 7
    %v2391 = vsub.s32 1, %v2390
    %v2392 = vrot.slane %v2382, %v2391
    %v2393 = vmul.f32 %v2392, %v1744
    %v2394 = vadd.f32 %v2388, %v2393
    %v2395 = vlaneseq
    %v2396 = vshrl.u32 %v2395, 7
    %v2397 = vsub.s32 2, %v2396
    %v2398 = vrot.slane %v2382, %v2397
    %v2399 = vmul.f32 %v2398, %v1832
    %v2400 = vadd.f32 %v2394, %v2399
    %v2401 = vlaneseq
    %v2402 = vshrl.u32 %v2401, 7
    %v2403 = vsub.s32 3, %v2402
    %v2404 = vrot.slane %v2382, %v2403
    %v2405 = vmul.f32 %v2404, %v1920
    %v2406 = vadd.f32 %v2400, %v2405
    %v2407 = vlaneseq
    %v2408 = vshrl.u32 %v2407, 7
    %v2409 = vsub.s32 4, %v2408
    %v2410 = vrot.slane %v2382, %v2409
    %v2411 = vmul.f32 %v2410, %v2008
    %v2412 = vadd.f32 %v2406, %v2411
    %v2413 = vlaneseq
    %v2414 = vshrl.u32 %v2413, 7
    %v2415 = vsub.s32 5, %v2414
    %v2416 = vrot.slane %v2382, %v2415
    %v2417 = vmul.f32 %v2416, %v2096
    %v2418 = vadd.f32 %v2412, %v2417
    %v2419 = vlaneseq
    %v2420 = vshrl.u32 %v2419, 7
    %v2421 = vsub.s32 6, %v2420
    %v2422 = vrot.slane %v2382, %v2421
    %v2423 = vmul.f32 %v2422, %v2184
    %v2424 = vadd.f32 %v2418, %v2423
    %v2425 = vlaneseq
    %v2426 = vshrl.u32 %v2425, 7
    %v2427 = vsub.s32 7, %v2426
    %v2428 = vrot.slane %v2382, %v2427
    %v2429 = vmul.f32 %v2428, %v2272
    %v2430 = vadd.f32 %v2424, %v2429
    %2432 = vset.pattern.permute.xlu0 2
    %2433 = vperm.xlu0 %2432, %v1453
    %v2434 = vpop.permute.xlu0 %2433
    %2437 = vset.pattern.permute.xlu0 2
    %2438 = vperm.xlu0 %2437, %v1454
    %v2439 = vpop.permute.xlu0 %2438
    %2442 = vset.pattern.permute.xlu0 2
    %2443 = vperm.xlu0 %2442, %v1455
    %v2444 = vpop.permute.xlu0 %2443
    %v2447 = vsel %vm265, %v1449, 0
    %v2450 = vsel %vm265, %v1450, 0
    %v2453 = vsel %vm265, %v1451, 0
    %v2456 = vsel %vm275, %v2430, 0
    %2458 = vmatprep.subr.mxu0 0.0
    %2459 = vmatpush1.msra.mxu0 %v2456
    %2460 = vmatprep.subr.mxu0 0.0
    %2461 = vmatpush1.msra.mxu0 0.0
    %2462 = vmatprep.subr.mxu0 0.0
    %2463 = vmatpush1.msra.mxu0 0.0
    %2464 = vmatprep.subr.mxu0 0.0
    %2465 = vmatpush1.msra.mxu0 0.0
    %2466 = vmatprep.subr.mxu0 0.0
    %2467 = vmatpush1.msra.mxu0 0.0
    %2468 = vmatprep.subr.mxu0 0.0
    %2469 = vmatpush1.msra.mxu0 0.0
    %2470 = vmatprep.subr.mxu0 0.0
    %2471 = vmatpush1.msra.mxu0 0.0
    %2472 = vmatprep.subr.mxu0 0.0
    %2473 = vmatpush1.msra.mxu0 0.0
    %2474 = vmatprep.subr.mxu0 0.0
    %2475 = vmatpush1.msra.mxu0 0.0
    %2476 = vmatprep.subr.mxu0 0.0
    %2477 = vmatpush1.msra.mxu0 0.0
    %2478 = vmatprep.subr.mxu0 0.0
    %2479 = vmatpush1.msra.mxu0 0.0
    %2480 = vmatprep.subr.mxu0 0.0
    %2481 = vmatpush1.msra.mxu0 0.0
    %2482 = vmatprep.subr.mxu0 0.0
    %2483 = vmatpush1.msra.mxu0 0.0
    %2484 = vmatprep.subr.mxu0 0.0
    %2485 = vmatpush1.msra.mxu0 0.0
    %2486 = vmatprep.subr.mxu0 0.0
    %2487 = vmatpush1.msra.mxu0 0.0
    %2488 = vmatprep.subr.mxu0 0.0
    %2489 = vmatpush1.msra.mxu0 0.0
    %2490 = vmatprep.subr.mxu0 0.0
    %2491 = vmatpush1.msra.mxu0 0.0
    %2492 = vmatprep.subr.mxu0 0.0
    %2493 = vmatpush1.msra.mxu0 0.0
    %2494 = vmatprep.subr.mxu0 0.0
    %2495 = vmatpush1.msra.mxu0 0.0
    %2496 = vmatprep.subr.mxu0 0.0
    %2497 = vmatpush1.msra.mxu0 0.0
    %2498 = vmatprep.subr.mxu0 0.0
    %2499 = vmatpush1.msra.mxu0 0.0
    %2500 = vmatprep.subr.mxu0 0.0
    %2501 = vmatpush1.msra.mxu0 0.0
    %2502 = vmatprep.subr.mxu0 0.0
    %2503 = vmatpush1.msra.mxu0 0.0
    %2504 = vmatprep.subr.mxu0 0.0
    %2505 = vmatpush1.msra.mxu0 0.0
    %2506 = vmatprep.subr.mxu0 0.0
    %2507 = vmatpush1.msra.mxu0 0.0
    %2508 = vmatprep.subr.mxu0 0.0
    %2509 = vmatpush1.msra.mxu0 0.0
    %2510 = vmatprep.subr.mxu0 0.0
    %2511 = vmatpush1.msra.mxu0 0.0
    %2512 = vmatprep.subr.mxu0 0.0
    %2513 = vmatpush1.msra.mxu0 0.0
    %2514 = vmatprep.subr.mxu0 0.0
    %2515 = vmatpush1.msra.mxu0 0.0
    %2516 = vmatprep.subr.mxu0 0.0
    %2517 = vmatpush1.msra.mxu0 0.0
    %2518 = vmatprep.subr.mxu0 0.0
    %2519 = vmatpush1.msra.mxu0 0.0
    %2520 = vmatprep.subr.mxu0 0.0
    %2521 = vmatpush1.msra.mxu0 0.0
    %2522 = vmatprep.mubr.f32.mxu0 0.0
    %2523 = vmatmul.mubr.f32.gmra.mrb[0].mxu0 %v2447
    %v2524 = vpop.f32.mrb[0].mxu0
    %v2525 = vadd.f32 %v2434, %v2524
    %v2526 = vpop.f32.mrb[0].mxu0
    %2527 = vmatprep.mubr.f32.mxu0 0.0
    %2528 = vmatmul.mubr.f32.gmra.mrb[0].mxu0 %v2450
    %v2529 = vpop.f32.mrb[0].mxu0
    %v2530 = vadd.f32 %v2439, %v2529
    %v2531 = vpop.f32.mrb[0].mxu0
    %2532 = vmatprep.mubr.f32.mxu0 0.0
    %2533 = vmatmul.mubr.f32.gmra.mrb[0].mxu0 %v2453
    %v2534 = vpop.f32.mrb[0].mxu0
    %v2535 = vadd.f32 %v2444, %v2534
    %v2536 = vpop.f32.mrb[0].mxu0
    %2537 = vdwg.mxu0
    %2538 = vset.pattern.permute.xlu0 1
    %2539 = vperm.xlu0 %2538, %v1453
    %v2540 = vpop.permute.xlu0 %2539
    %v2542 = vadd.f32 %v2540, %v2525
    %v2543 = vxor.u32 %v2542, 2147483648
    %v2544 = vmul.f32 %v2543, 1.442695
    %v2545 = vpow.pop %v2544
    %v2546 = vadd.f32 %v2545, 1.0
    %v2547 = vrcp.pop %v2546
    %v2548 = vmul.f32 1.0, %v2547
    %2549 = vset.pattern.permute.xlu0 1
    %2550 = vperm.xlu0 %2549, %v1454
    %v2551 = vpop.permute.xlu0 %2550
    %v2553 = vadd.f32 %v2551, %v2530
    %v2554 = vxor.u32 %v2553, 2147483648
    %v2555 = vmul.f32 %v2554, 1.442695
    %v2556 = vpow.pop %v2555
    %v2557 = vadd.f32 %v2556, 1.0
    %v2558 = vrcp.pop %v2557
    %v2559 = vmul.f32 1.0, %v2558
    %v2562 = vrot.slane %v2530, 4
    %v2563 = vrot.slane %v2535, 4
    %v2564 = vsel %vm375, %v2562, %v2563
    %v2566 = vmul.f32 %v2548, %v2564
    %2567 = vset.pattern.permute.xlu0 1
    %2568 = vperm.xlu0 %2567, %v1455
    %v2569 = vpop.permute.xlu0 %2568
    %v2572 = vrot.slane %v2566, 4
    %v2574 = vadd.f32 %v2551, %v2572
    %v2575 = vadd.f32 %v2569, %v2572
    %v2576 = vtanh.pop %v2574
    %v2577 = vtanh.pop %v2575
    %v2578 = vsub.f32 1.0, %v2548
    %v2579 = vsub.f32 1.0, %v2559
    %v2582 = vrot.slane %v2576, 6
    %v2583 = vrot.slane %v2577, 6
    %v2584 = vsel %vm392, %v2582, %v2583
    %v2587 = vmul.f32 %v2578, %v2582
    %v2588 = vmul.f32 %v2579, %v2584
    %v2589 = vrot.slane %v2430, 2
    %v2591 = vmul.f32 %v2548, %v2589
    %v2592 = vmul.f32 %v2559, %v2589
    %v2593 = vadd.f32 %v2587, %v2591
    %v2594 = vadd.f32 %v2588, %v2592
    %2596 = vset.pattern.permute.xlu0 0
    %2597 = vperm.xlu0 %2596, %v1457
    %v2598 = vpop.permute.xlu0 %2597
    %v2602 = vrot.slane %v2593, 6
    %v2603 = vrot.slane %v2594, 6
    %v2604 = vsel %vm392, %v2602, %v2603
    %v2606 = vsel %vm265, %v1452, 0
    %v2608 = vsel %vm275, %v2604, 0
    %2610 = vmatprep.subr.mxu0 0.0
    %2611 = vmatpush1.msra.mxu0 %v2608
    %2612 = vmatprep.subr.mxu0 0.0
    %2613 = vmatpush1.msra.mxu0 0.0
    %2614 = vmatprep.subr.mxu0 0.0
    %2615 = vmatpush1.msra.mxu0 0.0
    %2616 = vmatprep.subr.mxu0 0.0
    %2617 = vmatpush1.msra.mxu0 0.0
    %2618 = vmatprep.subr.mxu0 0.0
    %2619 = vmatpush1.msra.mxu0 0.0
    %2620 = vmatprep.subr.mxu0 0.0
    %2621 = vmatpush1.msra.mxu0 0.0
    %2622 = vmatprep.subr.mxu0 0.0
    %2623 = vmatpush1.msra.mxu0 0.0
    %2624 = vmatprep.subr.mxu0 0.0
    %2625 = vmatpush1.msra.mxu0 0.0
    %2626 = vmatprep.subr.mxu0 0.0
    %2627 = vmatpush1.msra.mxu0 0.0
    %2628 = vmatprep.subr.mxu0 0.0
    %2629 = vmatpush1.msra.mxu0 0.0
    %2630 = vmatprep.subr.mxu0 0.0
    %2631 = vmatpush1.msra.mxu0 0.0
    %2632 = vmatprep.subr.mxu0 0.0
    %2633 = vmatpush1.msra.mxu0 0.0
    %2634 = vmatprep.subr.mxu0 0.0
    %2635 = vmatpush1.msra.mxu0 0.0
    %2636 = vmatprep.subr.mxu0 0.0
    %2637 = vmatpush1.msra.mxu0 0.0
    %2638 = vmatprep.subr.mxu0 0.0
    %2639 = vmatpush1.msra.mxu0 0.0
    %2640 = vmatprep.subr.mxu0 0.0
    %2641 = vmatpush1.msra.mxu0 0.0
    %2642 = vmatprep.subr.mxu0 0.0
    %2643 = vmatpush1.msra.mxu0 0.0
    %2644 = vmatprep.subr.mxu0 0.0
    %2645 = vmatpush1.msra.mxu0 0.0
    %2646 = vmatprep.subr.mxu0 0.0
    %2647 = vmatpush1.msra.mxu0 0.0
    %2648 = vmatprep.subr.mxu0 0.0
    %2649 = vmatpush1.msra.mxu0 0.0
    %2650 = vmatprep.subr.mxu0 0.0
    %2651 = vmatpush1.msra.mxu0 0.0
    %2652 = vmatprep.subr.mxu0 0.0
    %2653 = vmatpush1.msra.mxu0 0.0
    %2654 = vmatprep.subr.mxu0 0.0
    %2655 = vmatpush1.msra.mxu0 0.0
    %2656 = vmatprep.subr.mxu0 0.0
    %2657 = vmatpush1.msra.mxu0 0.0
    %2658 = vmatprep.subr.mxu0 0.0
    %2659 = vmatpush1.msra.mxu0 0.0
    %2660 = vmatprep.subr.mxu0 0.0
    %2661 = vmatpush1.msra.mxu0 0.0
    %2662 = vmatprep.subr.mxu0 0.0
    %2663 = vmatpush1.msra.mxu0 0.0
    %2664 = vmatprep.subr.mxu0 0.0
    %2665 = vmatpush1.msra.mxu0 0.0
    %2666 = vmatprep.subr.mxu0 0.0
    %2667 = vmatpush1.msra.mxu0 0.0
    %2668 = vmatprep.subr.mxu0 0.0
    %2669 = vmatpush1.msra.mxu0 0.0
    %2670 = vmatprep.subr.mxu0 0.0
    %2671 = vmatpush1.msra.mxu0 0.0
    %2672 = vmatprep.subr.mxu0 0.0
    %2673 = vmatpush1.msra.mxu0 0.0
    %2674 = vmatprep.mubr.f32.mxu0 0.0
    %2675 = vmatmul.mubr.f32.gmra.mrb[0].mxu0 %v2606
    %v2676 = vpop.f32.mrb[0].mxu0
    %v2677 = vadd.f32 %v2598, %v2676
    %v2678 = vpop.f32.mrb[0].mxu0
    %2679 = vdwg.mxu0
    %vm2680 = vcmask 517120
    %2681 = vst.msk [vmem:[#allocation9] sm:$0x3] %vm2680, %v2677
    // Predicated region
    $region18: #{tpu_custom_call.1} parent=1 // pred_check
      _
    $region19: #{tpu_custom_call.1} parent=1 // pred_check_branch
      %2683 = sbr.rel (0) target = $region21
    $region20: #{tpu_custom_call.1} parent=1 // pred_region
      %s2685 = ssub.s32 32, 32
      %2686 = vsyncadd [#allocation6], %s2685
      %s2688 = sshll.u32 [#allocation9], 4
      %s2689 = int_to_ptr.vmem [resolvable:$true] %s2688
      %2691 = dma.vmem_to_hbm [thread:$0]  %s2689, 32, %s2, [#allocation6]
    $region21: #{tpu_custom_call.1} parent=1 // pred_fallthru
      _
    // Predicated region
    $region22: #{tpu_custom_call.1} parent=1 // pred_check
      _
    $region23: #{tpu_custom_call.1} parent=1 // pred_check_branch
      %2693 = sbr.rel (0) target = $region25
    $region24: #{tpu_custom_call.1} parent=1 // pred_region
      %2694 = dma.done [#allocation6], 32
    $region25: #{tpu_custom_call.1} parent=1 // pred_fallthru
      _
    %2695 = vsyncpa [#allocation5], 1
    %2696 = vsyncpa [#allocation8], 1
    %2697 = vsyncpa [#allocation6], 1

</llo_original>
